<compile_context>
chip_gen: v5e
topology: v5e:2x2
jax: 0.10.0
libtpu: 0.0.40
codegen_flags: <defaults>
</compile_context>

<pallas_src>
import math
import functools

import numpy as np
import jax
import jax.numpy as jnp
from jax import lax
from jax.experimental import pallas as pl
from jax.experimental.pallas import tpu as pltpu


# ----------------------------- config (mirrors the PyTorch cfg dict) ----------
CFG = dict(
    in_channels=1,
    camera_num=1,                 # TODO(synk): camera_num == 2 (second NatureEncoder / neck path) not implemented
    token_dim=64,
    activation="relu",
    state_dim=16,
    hidden_dims=[32, 32],
    add_pos_emb=True,
    visual_dim=1 * 1 * 64 * 64,   # camera_num * in_channels * w * h  -> w = h = 64
    add_ln=False,
    max_pool=False,
    token_norm=True,
    transformer_params=[(4, 128)],  # (n_head, dim_feedforward)
    encoder_out=64,
)


def _rup(x, m):
    return ((x + m - 1) // m) * m


def _ln(x, g, b, eps=1e-5):
    """LayerNorm over the last dim; x:(M,D) f32, g/b:(1,D)."""
    mu = jnp.mean(x, axis=-1, keepdims=True)
    var = jnp.mean(jnp.square(x - mu), axis=-1, keepdims=True)
    return (x - mu) * lax.rsqrt(var + eps) * g + b


# ----------------------------- conv layer (im2col matmul) kernel --------------
def _mm_kernel(x_ref, w_ref, b_ref, o_ref, *, relu):
    y = jnp.dot(x_ref[...].astype(jnp.bfloat16), w_ref[...],
                preferred_element_type=jnp.float32) + b_ref[...]
    if relu:
        y = jnp.maximum(y, 0.0)
    o_ref[...] = y.astype(o_ref.dtype)


def pallas_linear(x, w, b, *, relu=True, out_dtype=jnp.bfloat16,
                  min_tiles=2, max_tm=1024):
    """y = act(x @ w + b). x:(M,K), w:(K,N) bf16, b:(1,N) f32.

    M is tiled with at least `min_tiles` tiles (so the parallel grid axis can be
    split across v7x's two TensorCores); weight/bias blocks are resident.
    # TODO(synk): at large batch, make the conv output lane-dense ((B*Ho, Wo*Cout))
    # and fold conv1's im2col into the kernel to avoid the XLA gather round-trip.
    """
    M, K = x.shape
    N = w.shape[1]
    TM = min(max_tm, max(8, _rup(-(-M // min_tiles), 8)))
    Mp = _rup(M, TM)
    xp = x if Mp == M else jnp.pad(x, ((0, Mp - M), (0, 0)))

    out = pl.pallas_call(
        functools.partial(_mm_kernel, relu=relu),
        grid=(Mp // TM,),
        in_specs=[pl.BlockSpec((TM, K), lambda i: (i, 0)),
                  pl.BlockSpec(w.shape, lambda i: (0, 0)),
                  pl.BlockSpec(b.shape, lambda i: (0, 0))],
        out_specs=pl.BlockSpec((TM, N), lambda i: (i, 0)),
        out_shape=jax.ShapeDtypeStruct((Mp, N), out_dtype),
        compiler_params=pltpu.CompilerParams(dimension_semantics=("parallel",)),
    )(xp, w, b)
    return out if Mp == M else out[:M]


# ----------------------------- fused head kernel ------------------------------
def _head_kernel(*refs, n_heads, add_pos, token_norm, max_pool, n_mlp, s_pad):
    """Per-batch program: state MLP + conv3/up-conv tokens + (pos emb) + token LN
    + transformer layers (heads packed into one wide matmul per step) + pooling
    + output projection + ReLU."""
    f32, bf16 = jnp.float32, jnp.bfloat16
    o_ref = refs[-1]
    idx = 0
    state_ref = refs[idx]; idx += 1            # (1, 1, state_dim) f32
    p3_ref = refs[idx]; idx += 1               # (1, n_vis, k*k*64) bf16
    pos_ref = None
    if add_pos:
        pos_ref = refs[idx]; idx += 1          # (s_pad, tok) f32 (zero-padded rows)
    tg_ref = tb_ref = None
    if token_norm:
        tg_ref, tb_ref = refs[idx], refs[idx + 1]; idx += 2
    c3w, c3b = refs[idx], refs[idx + 1]; idx += 2
    upw, upb = refs[idx], refs[idx + 1]; idx += 2
    mlp_refs = refs[idx: idx + 2 * n_mlp]; idx += 2 * n_mlp
    n_layers = len(n_heads)
    layer_refs = [refs[idx + 13 * l: idx + 13 * (l + 1)] for l in range(n_layers)]
    idx += 13 * n_layers
    ow_ref, ob_ref = refs[idx], refs[idx + 1]  # (2D, enc) bf16, (1, enc) f32

    # ---- state MLP + projector (all-ReLU chain) ----
    s = state_ref[0]                                              # (1, state_dim)
    for i in range(n_mlp):
        wm, bm = mlp_refs[2 * i], mlp_refs[2 * i + 1]
        s = jnp.maximum(jnp.dot(s.astype(bf16), wm[...],
                                preferred_element_type=f32) + bm[...], 0.0)
    tok = s.shape[1]

    # ---- conv3 (+ReLU) and 1x1 up-conv -> visual tokens ----
    patches = p3_ref[0].astype(bf16)                              # (n_vis, K3)
    c3 = jnp.maximum(jnp.dot(patches, c3w[...],
                             preferred_element_type=f32) + c3b[...], 0.0)
    vis = jnp.dot(c3.astype(bf16), upw[...],
                  preferred_element_type=f32) + upb[...]          # (n_vis, tok)
    n_vis = vis.shape[0]
    S = 1 + n_vis

    # ---- assemble tokens: [state | visual | zero pad rows] (+ pos-emb lanes) ----
    x = jnp.concatenate([s, vis, jnp.zeros((s_pad - S, tok), f32)], axis=0)
    if add_pos:
        x = jnp.concatenate([x, pos_ref[...]], axis=-1)           # (s_pad, D)
    D = x.shape[1]
    if token_norm:
        x = _ln(x, tg_ref[...], tb_ref[...])   # pad rows -> beta; masked & never pooled

    # ---- nn.TransformerEncoderLayer (post-norm, relu, dropout=0), unrolled -----
    for li in range(n_layers):
        (mask_ref, wq, bq, wo, bo, g1, be1, w1, bf1, w2, bf2, g2, be2) = layer_refs[li]
        nh = n_heads[li]
        Dh = D // nh
        scale = 1.0 / math.sqrt(Dh)
        qkv = jnp.dot(x.astype(bf16), wq[...],
                      preferred_element_type=f32) + bq[...]       # (s_pad, 3D)
        q = qkv[:, 0:D] * scale
        k = qkv[:, D:2 * D]
        v = qkv[:, 2 * D:3 * D]
        # pack heads along sublanes -> one (nh*s_pad, Dh) operand per tensor
        q2 = jnp.concatenate([q[:, hh * Dh:(hh + 1) * Dh] for hh in range(nh)], axis=0)
        k2 = jnp.concatenate([k[:, hh * Dh:(hh + 1) * Dh] for hh in range(nh)], axis=0)
        v2 = jnp.concatenate([v[:, hh * Dh:(hh + 1) * Dh] for hh in range(nh)], axis=0)
        sc = lax.dot_general(q2.astype(bf16), k2.astype(bf16),
                             (((1,), (1,)), ((), ())),
                             preferred_element_type=f32)          # (nh*s_pad, nh*s_pad)
        sc = sc + mask_ref[...]            # block-diagonal head mask + key-pad mask
        sc = sc - jnp.max(sc, axis=-1, keepdims=True)
        p = jnp.exp(sc)
        p = p * pl.reciprocal(jnp.sum(p, axis=-1, keepdims=True), approx=True)
        o2 = jnp.dot(p.astype(bf16), v2.astype(bf16),
                     preferred_element_type=f32)                  # (nh*s_pad, Dh)
        attn = jnp.concatenate([o2[hh * s_pad:(hh + 1) * s_pad, :] for hh in range(nh)],
                               axis=-1)                           # (s_pad, D)
        attn = jnp.dot(attn.astype(bf16), wo[...],
                       preferred_element_type=f32) + bo[...]
        h1 = _ln(x + attn, g1[...], be1[...])                     # residual + norm1
        ff = jnp.maximum(jnp.dot(h1.astype(bf16), w1[...],
                                 preferred_element_type=f32) + bf1[...], 0.0)
        ff = jnp.dot(ff.astype(bf16), w2[...],
                     preferred_element_type=f32) + bf2[...]
        x = _ln(h1 + ff, g2[...], be2[...])                       # residual + norm2

    # ---- pool (state token + mean/max over visual tokens) + out_linear + ReLU --
    st = x[0:1, :]
    vis_rows = x[1:1 + n_vis, :]
    vm = (jnp.max(vis_rows, axis=0, keepdims=True) if max_pool
          else jnp.mean(vis_rows, axis=0, keepdims=True))
    pooled = jnp.concatenate([st, vm], axis=-1)                   # (1, 2D)
    y = jnp.dot(pooled.astype(bf16), ow_ref[...],
                preferred_element_type=f32) + ob_ref[...]
    o_ref[0] = jnp.maximum(y, 0.0).astype(o_ref.dtype)


def _make_attn_mask(nh, s_pad, s_valid):
    """Block-diagonal (per-head) additive mask; also masks zero-padded key rows."""
    n = nh * s_pad
    m = np.full((n, n), -1e30, np.float32)
    for hh in range(nh):
        m[hh * s_pad:(hh + 1) * s_pad, hh * s_pad:hh * s_pad + s_valid] = 0.0
    return jnp.asarray(m)


def pallas_head(state_x, p3, params, cfg):
    """state_x: (B, state_dim) f32; p3: (B, 16, k*k*64) bf16 -> (B, 1, encoder_out)."""
    B = state_x.shape[0]
    tok = cfg["token_dim"]
    n_vis = p3.shape[1]
    S = 1 + n_vis
    S_pad = _rup(S, 8)
    add_pos = bool(cfg["add_pos_emb"])
    token_norm = bool(cfg["token_norm"])
    enc_out = cfg["encoder_out"]
    n_heads = tuple(nh for nh, _ in cfg["transformer_params"])
    mlp_wbs = list(params["mlp"]) + [params["state_proj"]]
    n_mlp = len(mlp_wbs)

    args = [state_x.reshape(B, 1, -1), p3]
    per_batch = [True, True]
    if add_pos:
        args.append(params["pos_emb_pad"]); per_batch.append(False)
    if token_norm:
        args.extend(params["token_ln"]); per_batch += [False, False]
    args += [params["conv3"][0], params["conv3"][1],
             params["up_conv"][0], params["up_conv"][1]]
    per_batch += [False] * 4
    for wm, bm in mlp_wbs:
        args += [wm, bm]; per_batch += [False, False]
    for li, lp in enumerate(params["layers"]):
        args += [_make_attn_mask(n_heads[li], S_pad, S),
                 lp["in_proj"][0], lp["in_proj"][1],
                 lp["out_proj"][0], lp["out_proj"][1],
                 lp["ln1"][0], lp["ln1"][1],
                 lp["lin1"][0], lp["lin1"][1],
                 lp["lin2"][0], lp["lin2"][1],
                 lp["ln2"][0], lp["ln2"][1]]
        per_batch += [False] * 13
    args += [params["out_linear"][0], params["out_linear"][1]]
    per_batch += [False, False]

    in_specs = []
    for a, pb in zip(args, per_batch):
        if pb:   # per-batch 3D block (1, ...) -- trailing dims equal full array dims
            in_specs.append(pl.BlockSpec((1,) + a.shape[1:], lambda b: (b, 0, 0)))
        else:    # resident 2D weight/constant block
            in_specs.append(pl.BlockSpec(a.shape, lambda b: (0, 0)))

    return pl.pallas_call(
        functools.partial(_head_kernel, n_heads=n_heads, add_pos=add_pos,
                          token_norm=token_norm, max_pool=bool(cfg["max_pool"]),
                          n_mlp=n_mlp, s_pad=S_pad),
        grid=(B,),
        in_specs=in_specs,
        out_specs=pl.BlockSpec((1, 1, enc_out), lambda b: (b, 0, 0)),
        out_shape=jax.ShapeDtypeStruct((B, 1, enc_out), jnp.float32),
        compiler_params=pltpu.CompilerParams(dimension_semantics=("parallel",)),
    )(*args)


# ----------------------------- glue: im2col (NHWC) ----------------------------
def im2col_nhwc(x, k, stride):
    """x: (B,H,W,C) -> patches (B*Ho*Wo, k*k*C), feature order (ki, kj, c)."""
    B, H, W, C = x.shape
    Ho = (H - k) // stride + 1
    Wo = (W - k) // stride + 1
    ii = (jnp.arange(Ho) * stride)[:, None] + jnp.arange(k)[None, :]   # (Ho, k)
    jj = (jnp.arange(Wo) * stride)[:, None] + jnp.arange(k)[None, :]   # (Wo, k)
    patches = x[:, ii[:, None, :, None], jj[None, :, None, :], :]      # (B,Ho,Wo,k,k,C)
    return patches.reshape(B * Ho * Wo, k * k * C), Ho, Wo


# ----------------------------- parameters --------------------------------------
def init_params(key, cfg):
    keys = iter(jax.random.split(key, 64))

    def uniform(shape, bound):
        return jax.random.uniform(next(keys), shape, jnp.float32, -bound, bound)

    def lin(in_dim, out_dim):
        bound = 1.0 / math.sqrt(in_dim)
        return (uniform((in_dim, out_dim), bound).astype(jnp.bfloat16),
                uniform((1, out_dim), bound))

    def conv(cin, cout, k):
        # PyTorch Conv2d weight (Cout,Cin,k,k) pre-transformed once to an im2col
        # matmul matrix with feature order (ki, kj, c).
        bound = 1.0 / math.sqrt(cin * k * k)
        w = uniform((cout, cin, k, k), bound)
        wm = jnp.transpose(w, (2, 3, 1, 0)).reshape(k * k * cin, cout).astype(jnp.bfloat16)
        return wm, uniform((1, cout), bound)

    def ln(d):
        return jnp.ones((1, d), jnp.float32), jnp.zeros((1, d), jnp.float32)

    p = {}
    # NatureEncoder (front_base) + front_up_conv
    p["conv1"] = conv(cfg["in_channels"], 32, 8)
    p["conv2"] = conv(32, 64, 4)
    p["conv3"] = conv(64, 64, 3)
    p["up_conv"] = conv(64, cfg["token_dim"], 1)
    # MLPBase + state projector
    mlp, prev = [], cfg["state_dim"]
    for hdim in cfg["hidden_dims"]:
        mlp.append(lin(prev, hdim))
        prev = hdim
    p["mlp"] = mlp
    p["state_proj"] = lin(prev, cfg["token_dim"])
    # positional embedding (stored zero-padded to the sublane-aligned token count)
    n_tokens = (1 + int(cfg["camera_num"] == 2)) * 16 + 1
    s_pad = _rup(n_tokens, 8)
    if cfg["add_pos_emb"]:
        pe = jax.random.normal(next(keys), (n_tokens, cfg["token_dim"]), jnp.float32)
        p["pos_emb_pad"] = jnp.pad(pe, ((0, s_pad - n_tokens), (0, 0)))
    D = cfg["token_dim"] * (1 + int(cfg["add_pos_emb"]))
    if cfg["token_norm"]:
        p["token_ln"] = ln(D)
    # transformer encoder layers
    layers = []
    for _, dff in cfg["transformer_params"]:
        layers.append(dict(
            in_proj=lin(D, 3 * D),
            out_proj=lin(D, D),
            lin1=lin(D, dff),
            lin2=lin(dff, D),
            ln1=ln(D),
            ln2=ln(D),
        ))
    p["layers"] = layers
    # output projection
    p["out_linear"] = lin((cfg["camera_num"] + 1) * D, cfg["encoder_out"])
    return p


# ----------------------------- full forward pass --------------------------------
def loco_transformer_v3_forward(params, x, cfg=CFG):
    state_dim = cfg["state_dim"]
    in_ch, cam = cfg["in_channels"], cfg["camera_num"]
    w = h = int(math.sqrt(cfg["visual_dim"] // cam // in_ch))

    state_x = x[..., :state_dim]
    visual_x = x[..., state_dim:]
    orig_state_shape = state_x.shape
    state_x = state_x.reshape(-1, state_dim)
    visual_x = visual_x.reshape(-1, in_ch * cam, w, h)
    B = visual_x.shape[0]

    # --- NatureEncoder conv1/conv2: NHWC, bf16, im2col matmul + bias + relu ---
    xv = visual_x.transpose(0, 2, 3, 1).astype(jnp.bfloat16)             # (B,64,64,1)
    p1, Ho, Wo = im2col_nhwc(xv, 8, 4)                                    # (B*225, 64)
    c1 = pallas_linear(p1, *params["conv1"], relu=True).reshape(B, Ho, Wo, 32)
    p2, Ho, Wo = im2col_nhwc(c1, 4, 2)                                    # (B*36, 512)
    c2 = pallas_linear(p2, *params["conv2"], relu=True).reshape(B, Ho, Wo, 64)
    p3, Ho, Wo = im2col_nhwc(c2, 3, 1)                                    # (B*16, 576)
    p3 = p3.reshape(B, Ho * Wo, -1)                                       # (B, 16, 576)

    # --- fused head: conv3 + up-conv + state MLP + tokens + transformer + out ---
    y = pallas_head(state_x, p3, params, cfg).reshape(B, -1)              # (B, encoder_out)

    if len(orig_state_shape) >= 3:
        y = y.reshape(orig_state_shape[0], orig_state_shape[1], -1)
    return y


if __name__ == "__main__":
    key = jax.random.PRNGKey(0)
    pkey, xkey = jax.random.split(key)
    params = init_params(pkey, CFG)

    B = 2
    x = jax.random.normal(xkey, (B, CFG["state_dim"] + CFG["visual_dim"]), jnp.float32)

    fwd = jax.jit(loco_transformer_v3_forward)
    out = fwd(params, x)
    jax.block_until_ready(out)
    assert out.shape == (B, CFG["encoder_out"]), out.shape
    assert bool(jnp.all(jnp.isfinite(out)))
    print("KERNEL_OK")
</pallas_src>

<mosaic_0001>
module attributes {stable_mosaic.version = 11 : i64} {
  func.func @_mm_kernel(%arg0: i32, %arg1: memref<232x64xbf16, #tpu.memory_space<vmem>>, %arg2: memref<64x32xbf16, #tpu.memory_space<vmem>>, %arg3: memref<1x32xf32, #tpu.memory_space<vmem>>, %arg4: memref<232x32xbf16, #tpu.memory_space<vmem>>) attributes {dimension_semantics = [#tpu.dimension_semantics<parallel>], iteration_bounds = array<i64: 2>, scalar_prefetch = 0 : i64, scratch_operands = 0 : i64, tpu.core_type = #tpu.core_type<tc>, window_params = [{transform_indices = @transform_0, window_bounds = array<i64: 232, 64>}, {pipeline_mode = #tpu.pipeline_mode<synchronous>, transform_indices = @transform_1, window_bounds = array<i64: 64, 32>}, {pipeline_mode = #tpu.pipeline_mode<synchronous>, transform_indices = @transform_2, window_bounds = array<i64: 1, 32>}, {transform_indices = @transform_3, window_bounds = array<i64: 232, 32>}]} {
    %c0 = arith.constant 0 : index
    %c0_0 = arith.constant 0 : index
    %0 = vector.load %arg1[%c0, %c0_0] : memref<232x64xbf16, #tpu.memory_space<vmem>>, vector<232x64xbf16>
    %c0_1 = arith.constant 0 : index
    %c0_2 = arith.constant 0 : index
    %1 = vector.load %arg2[%c0_1, %c0_2] : memref<64x32xbf16, #tpu.memory_space<vmem>>, vector<64x32xbf16>
    %cst = arith.constant dense<0.000000e+00> : vector<232x32xf32>
    %2 = tpu.matmul %0, %1, %cst {dimension_numbers = #tpu.dot_dimension_numbers<[1], [0], [0], [1], [0, 0, 1, 1], [], []>} : vector<232x64xbf16>, vector<64x32xbf16>, vector<232x32xf32> -> vector<232x32xf32>
    %c0_3 = arith.constant 0 : index
    %c0_4 = arith.constant 0 : index
    %3 = vector.load %arg3[%c0_3, %c0_4] : memref<1x32xf32, #tpu.memory_space<vmem>>, vector<1x32xf32>
    %4 = vector.broadcast %3 : vector<1x32xf32> to vector<232x32xf32>
    %5 = arith.addf %2, %4 : vector<232x32xf32>
    %cst_5 = arith.constant 0.000000e+00 : f32
    %6 = vector.broadcast %cst_5 : f32 to vector<232x32xf32>
    %7 = arith.maximumf %5, %6 : vector<232x32xf32>
    %8 = arith.truncf %7 : vector<232x32xf32> to vector<232x32xbf16>
    %c0_6 = arith.constant 0 : index
    %c0_7 = arith.constant 0 : index
    %9 = vector.load %arg4[%c0_6, %c0_7] : memref<232x32xbf16, #tpu.memory_space<vmem>>, vector<232x32xbf16>
    tpu.vector_store %arg4[%c0_6, %c0_7], %8 {strides = array<i32>} : memref<232x32xbf16, #tpu.memory_space<vmem>>, vector<232x32xbf16>,
    return
  }
  func.func @transform_0(%arg0: i32) -> (i32, i32) {
    %c0_i32 = arith.constant 0 : i32
    %c0_i32_0 = arith.constant 0 : i32
    return %arg0, %c0_i32 : i32, i32
  }
  func.func @transform_1(%arg0: i32) -> (i32, i32) {
    %c0_i32 = arith.constant 0 : i32
    %c0_i32_0 = arith.constant 0 : i32
    %c0_i32_1 = arith.constant 0 : i32
    return %c0_i32, %c0_i32_0 : i32, i32
  }
  func.func @transform_2(%arg0: i32) -> (i32, i32) {
    %c0_i32 = arith.constant 0 : i32
    %c0_i32_0 = arith.constant 0 : i32
    %c0_i32_1 = arith.constant 0 : i32
    return %c0_i32, %c0_i32_0 : i32, i32
  }
  func.func @transform_3(%arg0: i32) -> (i32, i32) {
    %c0_i32 = arith.constant 0 : i32
    %c0_i32_0 = arith.constant 0 : i32
    return %arg0, %c0_i32 : i32, i32
  }
}

module attributes {stable_mosaic.version = 11 : i64} {
  func.func @_mm_kernel(%arg0: i32, %arg1: memref<40x512xbf16, #tpu.memory_space<vmem>>, %arg2: memref<512x64xbf16, #tpu.memory_space<vmem>>, %arg3: memref<1x64xf32, #tpu.memory_space<vmem>>, %arg4: memref<40x64xbf16, #tpu.memory_space<vmem>>) attributes {dimension_semantics = [#tpu.dimension_semantics<parallel>], iteration_bounds = array<i64: 2>, scalar_prefetch = 0 : i64, scratch_operands = 0 : i64, tpu.core_type = #tpu.core_type<tc>, window_params = [{transform_indices = @transform_0, window_bounds = array<i64: 40, 512>}, {pipeline_mode = #tpu.pipeline_mode<synchronous>, transform_indices = @transform_1, window_bounds = array<i64: 512, 64>}, {pipeline_mode = #tpu.pipeline_mode<synchronous>, transform_indices = @transform_2, window_bounds = array<i64: 1, 64>}, {transform_indices = @transform_3, window_bounds = array<i64: 40, 64>}]} {
    %c0 = arith.constant 0 : index
    %c0_0 = arith.constant 0 : index
    %0 = vector.load %arg1[%c0, %c0_0] : memref<40x512xbf16, #tpu.memory_space<vmem>>, vector<40x512xbf16>
    %c0_1 = arith.constant 0 : index
    %c0_2 = arith.constant 0 : index
    %1 = vector.load %arg2[%c0_1, %c0_2] : memref<512x64xbf16, #tpu.memory_space<vmem>>, vector<512x64xbf16>
    %cst = arith.constant dense<0.000000e+00> : vector<40x64xf32>
    %2 = tpu.matmul %0, %1, %cst {dimension_numbers = #tpu.dot_dimension_numbers<[1], [0], [0], [1], [0, 0, 1, 1], [], []>} : vector<40x512xbf16>, vector<512x64xbf16>, vector<40x64xf32> -> vector<40x64xf32>
    %c0_3 = arith.constant 0 : index
    %c0_4 = arith.constant 0 : index
    %3 = vector.load %arg3[%c0_3, %c0_4] : memref<1x64xf32, #tpu.memory_space<vmem>>, vector<1x64xf32>
    %4 = vector.broadcast %3 : vector<1x64xf32> to vector<40x64xf32>
    %5 = arith.addf %2, %4 : vector<40x64xf32>
    %cst_5 = arith.constant 0.000000e+00 : f32
    %6 = vector.broadcast %cst_5 : f32 to vector<40x64xf32>
    %7 = arith.maximumf %5, %6 : vector<40x64xf32>
    %8 = arith.truncf %7 : vector<40x64xf32> to vector<40x64xbf16>
    %c0_6 = arith.constant 0 : index
    %c0_7 = arith.constant 0 : index
    %9 = vector.load %arg4[%c0_6, %c0_7] : memref<40x64xbf16, #tpu.memory_space<vmem>>, vector<40x64xbf16>
    tpu.vector_store %arg4[%c0_6, %c0_7], %8 {strides = array<i32>} : memref<40x64xbf16, #tpu.memory_space<vmem>>, vector<40x64xbf16>,
    return
  }
  func.func @transform_0(%arg0: i32) -> (i32, i32) {
    %c0_i32 = arith.constant 0 : i32
    %c0_i32_0 = arith.constant 0 : i32
    return %arg0, %c0_i32 : i32, i32
  }
  func.func @transform_1(%arg0: i32) -> (i32, i32) {
    %c0_i32 = arith.constant 0 : i32
    %c0_i32_0 = arith.constant 0 : i32
    %c0_i32_1 = arith.constant 0 : i32
    return %c0_i32, %c0_i32_0 : i32, i32
  }
  func.func @transform_2(%arg0: i32) -> (i32, i32) {
    %c0_i32 = arith.constant 0 : i32
    %c0_i32_0 = arith.constant 0 : i32
    %c0_i32_1 = arith.constant 0 : i32
    return %c0_i32, %c0_i32_0 : i32, i32
  }
  func.func @transform_3(%arg0: i32) -> (i32, i32) {
    %c0_i32 = arith.constant 0 : i32
    %c0_i32_0 = arith.constant 0 : i32
    return %arg0, %c0_i32 : i32, i32
  }
}

module attributes {stable_mosaic.version = 11 : i64} {
  func.func @_head_kernel(%arg0: i32, %arg1: memref<1x1x16xf32, #tpu.memory_space<vmem>>, %arg2: memref<1x16x576xbf16, #tpu.memory_space<vmem>>, %arg3: memref<24x64xf32, #tpu.memory_space<vmem>>, %arg4: memref<1x128xf32, #tpu.memory_space<vmem>>, %arg5: memref<1x128xf32, #tpu.memory_space<vmem>>, %arg6: memref<576x64xbf16, #tpu.memory_space<vmem>>, %arg7: memref<1x64xf32, #tpu.memory_space<vmem>>, %arg8: memref<64x64xbf16, #tpu.memory_space<vmem>>, %arg9: memref<1x64xf32, #tpu.memory_space<vmem>>, %arg10: memref<16x32xbf16, #tpu.memory_space<vmem>>, %arg11: memref<1x32xf32, #tpu.memory_space<vmem>>, %arg12: memref<32x32xbf16, #tpu.memory_space<vmem>>, %arg13: memref<1x32xf32, #tpu.memory_space<vmem>>, %arg14: memref<32x64xbf16, #tpu.memory_space<vmem>>, %arg15: memref<1x64xf32, #tpu.memory_space<vmem>>, %arg16: memref<96x96xf32, #tpu.memory_space<vmem>>, %arg17: memref<128x384xbf16, #tpu.memory_space<vmem>>, %arg18: memref<1x384xf32, #tpu.memory_space<vmem>>, %arg19: memref<128x128xbf16, #tpu.memory_space<vmem>>, %arg20: memref<1x128xf32, #tpu.memory_space<vmem>>, %arg21: memref<1x128xf32, #tpu.memory_space<vmem>>, %arg22: memref<1x128xf32, #tpu.memory_space<vmem>>, %arg23: memref<128x128xbf16, #tpu.memory_space<vmem>>, %arg24: memref<1x128xf32, #tpu.memory_space<vmem>>, %arg25: memref<128x128xbf16, #tpu.memory_space<vmem>>, %arg26: memref<1x128xf32, #tpu.memory_space<vmem>>, %arg27: memref<1x128xf32, #tpu.memory_space<vmem>>, %arg28: memref<1x128xf32, #tpu.memory_space<vmem>>, %arg29: memref<256x64xbf16, #tpu.memory_space<vmem>>, %arg30: memref<1x64xf32, #tpu.memory_space<vmem>>, %arg31: memref<1x1x64xf32, #tpu.memory_space<vmem>>) attributes {dimension_semantics = [#tpu.dimension_semantics<parallel>], iteration_bounds = array<i64: 2>, scalar_prefetch = 0 : i64, scratch_operands = 0 : i64, tpu.core_type = #tpu.core_type<tc>, window_params = [{transform_indices = @transform_0, window_bounds = array<i64: 1, 1, 16>}, {transform_indices = @transform_1, window_bounds = array<i64: 1, 16, 576>}, {pipeline_mode = #tpu.pipeline_mode<synchronous>, transform_indices = @transform_2, window_bounds = array<i64: 24, 64>}, {pipeline_mode = #tpu.pipeline_mode<synchronous>, transform_indices = @transform_3, window_bounds = array<i64: 1, 128>}, {pipeline_mode = #tpu.pipeline_mode<synchronous>, transform_indices = @transform_4, window_bounds = array<i64: 1, 128>}, {pipeline_mode = #tpu.pipeline_mode<synchronous>, transform_indices = @transform_5, window_bounds = array<i64: 576, 64>}, {pipeline_mode = #tpu.pipeline_mode<synchronous>, transform_indices = @transform_6, window_bounds = array<i64: 1, 64>}, {pipeline_mode = #tpu.pipeline_mode<synchronous>, transform_indices = @transform_7, window_bounds = array<i64: 64, 64>}, {pipeline_mode = #tpu.pipeline_mode<synchronous>, transform_indices = @transform_8, window_bounds = array<i64: 1, 64>}, {pipeline_mode = #tpu.pipeline_mode<synchronous>, transform_indices = @transform_9, window_bounds = array<i64: 16, 32>}, {pipeline_mode = #tpu.pipeline_mode<synchronous>, transform_indices = @transform_10, window_bounds = array<i64: 1, 32>}, {pipeline_mode = #tpu.pipeline_mode<synchronous>, transform_indices = @transform_11, window_bounds = array<i64: 32, 32>}, {pipeline_mode = #tpu.pipeline_mode<synchronous>, transform_indices = @transform_12, window_bounds = array<i64: 1, 32>}, {pipeline_mode = #tpu.pipeline_mode<synchronous>, transform_indices = @transform_13, window_bounds = array<i64: 32, 64>}, {pipeline_mode = #tpu.pipeline_mode<synchronous>, transform_indices = @transform_14, window_bounds = array<i64: 1, 64>}, {pipeline_mode = #tpu.pipeline_mode<synchronous>, transform_indices = @transform_15, window_bounds = array<i64: 96, 96>}, {pipeline_mode = #tpu.pipeline_mode<synchronous>, transform_indices = @transform_16, window_bounds = array<i64: 128, 384>}, {pipeline_mode = #tpu.pipeline_mode<synchronous>, transform_indices = @transform_17, window_bounds = array<i64: 1, 384>}, {pipeline_mode = #tpu.pipeline_mode<synchronous>, transform_indices = @transform_18, window_bounds = array<i64: 128, 128>}, {pipeline_mode = #tpu.pipeline_mode<synchronous>, transform_indices = @transform_19, window_bounds = array<i64: 1, 128>}, {pipeline_mode = #tpu.pipeline_mode<synchronous>, transform_indices = @transform_20, window_bounds = array<i64: 1, 128>}, {pipeline_mode = #tpu.pipeline_mode<synchronous>, transform_indices = @transform_21, window_bounds = array<i64: 1, 128>}, {pipeline_mode = #tpu.pipeline_mode<synchronous>, transform_indices = @transform_22, window_bounds = array<i64: 128, 128>}, {pipeline_mode = #tpu.pipeline_mode<synchronous>, transform_indices = @transform_23, window_bounds = array<i64: 1, 128>}, {pipeline_mode = #tpu.pipeline_mode<synchronous>, transform_indices = @transform_24, window_bounds = array<i64: 128, 128>}, {pipeline_mode = #tpu.pipeline_mode<synchronous>, transform_indices = @transform_25, window_bounds = array<i64: 1, 128>}, {pipeline_mode = #tpu.pipeline_mode<synchronous>, transform_indices = @transform_26, window_bounds = array<i64: 1, 128>}, {pipeline_mode = #tpu.pipeline_mode<synchronous>, transform_indices = @transform_27, window_bounds = array<i64: 1, 128>}, {pipeline_mode = #tpu.pipeline_mode<synchronous>, transform_indices = @transform_28, window_bounds = array<i64: 256, 64>}, {pipeline_mode = #tpu.pipeline_mode<synchronous>, transform_indices = @transform_29, window_bounds = array<i64: 1, 64>}, {transform_indices = @transform_30, window_bounds = array<i64: 1, 1, 64>}]} {
    %c0 = arith.constant 0 : index
    %c0_0 = arith.constant 0 : index
    %c0_1 = arith.constant 0 : index
    %0 = vector.load %arg1[%c0, %c0_0, %c0_1] : memref<1x1x16xf32, #tpu.memory_space<vmem>>, vector<1x1x16xf32>
    %1 = vector.shape_cast %0 : vector<1x1x16xf32> to vector<1x16xf32>
    %2 = arith.truncf %1 : vector<1x16xf32> to vector<1x16xbf16>
    %c0_2 = arith.constant 0 : index
    %c0_3 = arith.constant 0 : index
    %3 = vector.load %arg10[%c0_2, %c0_3] : memref<16x32xbf16, #tpu.memory_space<vmem>>, vector<16x32xbf16>
    %cst = arith.constant dense<0.000000e+00> : vector<1x32xf32>
    %4 = tpu.matmul %2, %3, %cst {dimension_numbers = #tpu.dot_dimension_numbers<[1], [0], [0], [1], [0, 0, 1, 1], [], []>} : vector<1x16xbf16>, vector<16x32xbf16>, vector<1x32xf32> -> vector<1x32xf32>
    %c0_4 = arith.constant 0 : index
    %c0_5 = arith.constant 0 : index
    %5 = vector.load %arg11[%c0_4, %c0_5] : memref<1x32xf32, #tpu.memory_space<vmem>>, vector<1x32xf32>
    %6 = arith.addf %4, %5 : vector<1x32xf32>
    %cst_6 = arith.constant 0.000000e+00 : f32
    %7 = vector.broadcast %cst_6 : f32 to vector<1x32xf32>
    %8 = arith.maximumf %6, %7 : vector<1x32xf32>
    %9 = arith.truncf %8 : vector<1x32xf32> to vector<1x32xbf16>
    %c0_7 = arith.constant 0 : index
    %c0_8 = arith.constant 0 : index
    %10 = vector.load %arg12[%c0_7, %c0_8] : memref<32x32xbf16, #tpu.memory_space<vmem>>, vector<32x32xbf16>
    %cst_9 = arith.constant dense<0.000000e+00> : vector<1x32xf32>
    %11 = tpu.matmul %9, %10, %cst_9 {dimension_numbers = #tpu.dot_dimension_numbers<[1], [0], [0], [1], [0, 0, 1, 1], [], []>} : vector<1x32xbf16>, vector<32x32xbf16>, vector<1x32xf32> -> vector<1x32xf32>
    %c0_10 = arith.constant 0 : index
    %c0_11 = arith.constant 0 : index
    %12 = vector.load %arg13[%c0_10, %c0_11] : memref<1x32xf32, #tpu.memory_space<vmem>>, vector<1x32xf32>
    %13 = arith.addf %11, %12 : vector<1x32xf32>
    %cst_12 = arith.constant 0.000000e+00 : f32
    %14 = vector.broadcast %cst_12 : f32 to vector<1x32xf32>
    %15 = arith.maximumf %13, %14 : vector<1x32xf32>
    %16 = arith.truncf %15 : vector<1x32xf32> to vector<1x32xbf16>
    %c0_13 = arith.constant 0 : index
    %c0_14 = arith.constant 0 : index
    %17 = vector.load %arg14[%c0_13, %c0_14] : memref<32x64xbf16, #tpu.memory_space<vmem>>, vector<32x64xbf16>
    %cst_15 = arith.constant dense<0.000000e+00> : vector<1x64xf32>
    %18 = tpu.matmul %16, %17, %cst_15 {dimension_numbers = #tpu.dot_dimension_numbers<[1], [0], [0], [1], [0, 0, 1, 1], [], []>} : vector<1x32xbf16>, vector<32x64xbf16>, vector<1x64xf32> -> vector<1x64xf32>
    %c0_16 = arith.constant 0 : index
    %c0_17 = arith.constant 0 : index
    %19 = vector.load %arg15[%c0_16, %c0_17] : memref<1x64xf32, #tpu.memory_space<vmem>>, vector<1x64xf32>
    %20 = arith.addf %18, %19 : vector<1x64xf32>
    %cst_18 = arith.constant 0.000000e+00 : f32
    %21 = vector.broadcast %cst_18 : f32 to vector<1x64xf32>
    %22 = arith.maximumf %20, %21 : vector<1x64xf32>
    %c0_19 = arith.constant 0 : index
    %c0_20 = arith.constant 0 : index
    %c0_21 = arith.constant 0 : index
    %23 = vector.load %arg2[%c0_19, %c0_20, %c0_21] : memref<1x16x576xbf16, #tpu.memory_space<vmem>>, vector<1x16x576xbf16>
    %24 = vector.shape_cast %23 : vector<1x16x576xbf16> to vector<16x576xbf16>
    %c0_22 = arith.constant 0 : index
    %c0_23 = arith.constant 0 : index
    %25 = vector.load %arg6[%c0_22, %c0_23] : memref<576x64xbf16, #tpu.memory_space<vmem>>, vector<576x64xbf16>
    %cst_24 = arith.constant dense<0.000000e+00> : vector<16x64xf32>
    %26 = tpu.matmul %24, %25, %cst_24 {dimension_numbers = #tpu.dot_dimension_numbers<[1], [0], [0], [1], [0, 0, 1, 1], [], []>} : vector<16x576xbf16>, vector<576x64xbf16>, vector<16x64xf32> -> vector<16x64xf32>
    %c0_25 = arith.constant 0 : index
    %c0_26 = arith.constant 0 : index
    %27 = vector.load %arg7[%c0_25, %c0_26] : memref<1x64xf32, #tpu.memory_space<vmem>>, vector<1x64xf32>
    %28 = vector.broadcast %27 : vector<1x64xf32> to vector<16x64xf32>
    %29 = arith.addf %26, %28 : vector<16x64xf32>
    %cst_27 = arith.constant 0.000000e+00 : f32
    %30 = vector.broadcast %cst_27 : f32 to vector<16x64xf32>
    %31 = arith.maximumf %29, %30 : vector<16x64xf32>
    %32 = arith.truncf %31 : vector<16x64xf32> to vector<16x64xbf16>
    %c0_28 = arith.constant 0 : index
    %c0_29 = arith.constant 0 : index
    %33 = vector.load %arg8[%c0_28, %c0_29] : memref<64x64xbf16, #tpu.memory_space<vmem>>, vector<64x64xbf16>
    %cst_30 = arith.constant dense<0.000000e+00> : vector<16x64xf32>
    %34 = tpu.matmul %32, %33, %cst_30 {dimension_numbers = #tpu.dot_dimension_numbers<[1], [0], [0], [1], [0, 0, 1, 1], [], []>} : vector<16x64xbf16>, vector<64x64xbf16>, vector<16x64xf32> -> vector<16x64xf32>
    %c0_31 = arith.constant 0 : index
    %c0_32 = arith.constant 0 : index
    %35 = vector.load %arg9[%c0_31, %c0_32] : memref<1x64xf32, #tpu.memory_space<vmem>>, vector<1x64xf32>
    %36 = vector.broadcast %35 : vector<1x64xf32> to vector<16x64xf32>
    %37 = arith.addf %34, %36 : vector<16x64xf32>
    %cst_33 = arith.constant 0.000000e+00 : f32
    %38 = vector.broadcast %cst_33 : f32 to vector<7x64xf32>
    %39 = tpu.concatenate %22, %37, %38 in 0 : vector<1x64xf32>, vector<16x64xf32>, vector<7x64xf32> -> vector<24x64xf32>
    %c0_34 = arith.constant 0 : index
    %c0_35 = arith.constant 0 : index
    %40 = vector.load %arg3[%c0_34, %c0_35] : memref<24x64xf32, #tpu.memory_space<vmem>>, vector<24x64xf32>
    %41 = tpu.concatenate %39, %40 in 1 : vector<24x64xf32>, vector<24x64xf32> -> vector<24x128xf32>
    %c0_36 = arith.constant 0 : index
    %c0_37 = arith.constant 0 : index
    %42 = vector.load %arg4[%c0_36, %c0_37] : memref<1x128xf32, #tpu.memory_space<vmem>>, vector<1x128xf32>
    %c0_38 = arith.constant 0 : index
    %c0_39 = arith.constant 0 : index
    %43 = vector.load %arg5[%c0_38, %c0_39] : memref<1x128xf32, #tpu.memory_space<vmem>>, vector<1x128xf32>
    %cst_40 = arith.constant dense<0.000000e+00> : vector<24xf32>
    %44 = vector.multi_reduction <add>, %41, %cst_40 [1] : vector<24x128xf32> to vector<24xf32>
    %45 = vector.shape_cast %44 : vector<24xf32> to vector<24x1xf32>
    %cst_41 = arith.constant 1.280000e+02 : f32
    %46 = vector.broadcast %cst_41 : f32 to vector<24x1xf32>
    %47 = arith.divf %45, %46 : vector<24x1xf32>
    %48 = vector.broadcast %47 : vector<24x1xf32> to vector<24x128xf32>
    %49 = arith.subf %41, %48 : vector<24x128xf32>
    %50 = arith.mulf %49, %49 : vector<24x128xf32>
    %cst_42 = arith.constant dense<0.000000e+00> : vector<24xf32>
    %51 = vector.multi_reduction <add>, %50, %cst_42 [1] : vector<24x128xf32> to vector<24xf32>
    %52 = vector.shape_cast %51 : vector<24xf32> to vector<24x1xf32>
    %cst_43 = arith.constant 1.280000e+02 : f32
    %53 = vector.broadcast %cst_43 : f32 to vector<24x1xf32>
    %54 = arith.divf %52, %53 : vector<24x1xf32>
    %55 = vector.broadcast %47 : vector<24x1xf32> to vector<24x128xf32>
    %56 = arith.subf %41, %55 : vector<24x128xf32>
    %cst_44 = arith.constant 9.99999974E-6 : f32
    %57 = vector.broadcast %cst_44 : f32 to vector<24x1xf32>
    %58 = arith.addf %54, %57 : vector<24x1xf32>
    %59 = math.rsqrt %58 : vector<24x1xf32>
    %60 = vector.broadcast %59 : vector<24x1xf32> to vector<24x128xf32>
    %61 = arith.mulf %56, %60 : vector<24x128xf32>
    %62 = vector.broadcast %42 : vector<1x128xf32> to vector<24x128xf32>
    %63 = arith.mulf %61, %62 : vector<24x128xf32>
    %64 = vector.broadcast %43 : vector<1x128xf32> to vector<24x128xf32>
    %65 = arith.addf %63, %64 : vector<24x128xf32>
    %66 = arith.truncf %65 : vector<24x128xf32> to vector<24x128xbf16>
    %c0_45 = arith.constant 0 : index
    %c0_46 = arith.constant 0 : index
    %67 = vector.load %arg17[%c0_45, %c0_46] : memref<128x384xbf16, #tpu.memory_space<vmem>>, vector<128x384xbf16>
    %cst_47 = arith.constant dense<0.000000e+00> : vector<24x384xf32>
    %68 = tpu.matmul %66, %67, %cst_47 {dimension_numbers = #tpu.dot_dimension_numbers<[1], [0], [0], [1], [0, 0, 1, 1], [], []>} : vector<24x128xbf16>, vector<128x384xbf16>, vector<24x384xf32> -> vector<24x384xf32>
    %c0_48 = arith.constant 0 : index
    %c0_49 = arith.constant 0 : index
    %69 = vector.load %arg18[%c0_48, %c0_49] : memref<1x384xf32, #tpu.memory_space<vmem>>, vector<1x384xf32>
    %70 = vector.broadcast %69 : vector<1x384xf32> to vector<24x384xf32>
    %71 = arith.addf %68, %70 : vector<24x384xf32>
    %72 = vector.extract_strided_slice %71 {offsets = [0, 0], sizes = [24, 128], strides = [1, 1]} : vector<24x384xf32> to vector<24x128xf32>
    %cst_50 = arith.constant 0.176776692 : f32
    %73 = vector.broadcast %cst_50 : f32 to vector<24x128xf32>
    %74 = arith.mulf %72, %73 : vector<24x128xf32>
    %75 = vector.extract_strided_slice %71 {offsets = [0, 128], sizes = [24, 128], strides = [1, 1]} : vector<24x384xf32> to vector<24x128xf32>
    %76 = vector.extract_strided_slice %71 {offsets = [0, 256], sizes = [24, 128], strides = [1, 1]} : vector<24x384xf32> to vector<24x128xf32>
    %77 = vector.extract_strided_slice %74 {offsets = [0, 0], sizes = [24, 32], strides = [1, 1]} : vector<24x128xf32> to vector<24x32xf32>
    %78 = vector.extract_strided_slice %74 {offsets = [0, 32], sizes = [24, 32], strides = [1, 1]} : vector<24x128xf32> to vector<24x32xf32>
    %79 = vector.extract_strided_slice %74 {offsets = [0, 64], sizes = [24, 32], strides = [1, 1]} : vector<24x128xf32> to vector<24x32xf32>
    %80 = vector.extract_strided_slice %74 {offsets = [0, 96], sizes = [24, 32], strides = [1, 1]} : vector<24x128xf32> to vector<24x32xf32>
    %81 = tpu.concatenate %77, %78, %79, %80 in 0 : vector<24x32xf32>, vector<24x32xf32>, vector<24x32xf32>, vector<24x32xf32> -> vector<96x32xf32>
    %82 = vector.extract_strided_slice %75 {offsets = [0, 0], sizes = [24, 32], strides = [1, 1]} : vector<24x128xf32> to vector<24x32xf32>
    %83 = vector.extract_strided_slice %75 {offsets = [0, 32], sizes = [24, 32], strides = [1, 1]} : vector<24x128xf32> to vector<24x32xf32>
    %84 = vector.extract_strided_slice %75 {offsets = [0, 64], sizes = [24, 32], strides = [1, 1]} : vector<24x128xf32> to vector<24x32xf32>
    %85 = vector.extract_strided_slice %75 {offsets = [0, 96], sizes = [24, 32], strides = [1, 1]} : vector<24x128xf32> to vector<24x32xf32>
    %86 = tpu.concatenate %82, %83, %84, %85 in 0 : vector<24x32xf32>, vector<24x32xf32>, vector<24x32xf32>, vector<24x32xf32> -> vector<96x32xf32>
    %87 = vector.extract_strided_slice %76 {offsets = [0, 0], sizes = [24, 32], strides = [1, 1]} : vector<24x128xf32> to vector<24x32xf32>
    %88 = vector.extract_strided_slice %76 {offsets = [0, 32], sizes = [24, 32], strides = [1, 1]} : vector<24x128xf32> to vector<24x32xf32>
    %89 = vector.extract_strided_slice %76 {offsets = [0, 64], sizes = [24, 32], strides = [1, 1]} : vector<24x128xf32> to vector<24x32xf32>
    %90 = vector.extract_strided_slice %76 {offsets = [0, 96], sizes = [24, 32], strides = [1, 1]} : vector<24x128xf32> to vector<24x32xf32>
    %91 = tpu.concatenate %87, %88, %89, %90 in 0 : vector<24x32xf32>, vector<24x32xf32>, vector<24x32xf32>, vector<24x32xf32> -> vector<96x32xf32>
    %92 = arith.truncf %81 : vector<96x32xf32> to vector<96x32xbf16>
    %93 = arith.truncf %86 : vector<96x32xf32> to vector<96x32xbf16>
    %cst_51 = arith.constant dense<0.000000e+00> : vector<96x96xf32>
    %94 = tpu.matmul %92, %93, %cst_51 {dimension_numbers = #tpu.dot_dimension_numbers<[1], [1], [0], [0], [0, 0, 1, 0], [], []>} : vector<96x32xbf16>, vector<96x32xbf16>, vector<96x96xf32> -> vector<96x96xf32>
    %c0_52 = arith.constant 0 : index
    %c0_53 = arith.constant 0 : index
    %95 = vector.load %arg16[%c0_52, %c0_53] : memref<96x96xf32, #tpu.memory_space<vmem>>, vector<96x96xf32>
    %96 = arith.addf %94, %95 : vector<96x96xf32>
    %cst_54 = arith.constant dense<0xFF800000> : vector<96xf32>
    %97 = vector.multi_reduction <maximumf>, %96, %cst_54 [1] : vector<96x96xf32> to vector<96xf32>
    %98 = vector.shape_cast %97 : vector<96xf32> to vector<96x1xf32>
    %99 = vector.broadcast %98 : vector<96x1xf32> to vector<96x96xf32>
    %100 = arith.subf %96, %99 : vector<96x96xf32>
    %101 = math.exp %100 : vector<96x96xf32>
    %cst_55 = arith.constant dense<0.000000e+00> : vector<96xf32>
    %102 = vector.multi_reduction <add>, %101, %cst_55 [1] : vector<96x96xf32> to vector<96xf32>
    %103 = vector.shape_cast %102 : vector<96xf32> to vector<96x1xf32>
    %104 = tpu.reciprocal %103 {approx = true} : vector<96x1xf32> -> vector<96x1xf32>
    %105 = vector.broadcast %104 : vector<96x1xf32> to vector<96x96xf32>
    %106 = arith.mulf %101, %105 : vector<96x96xf32>
    %107 = arith.truncf %106 : vector<96x96xf32> to vector<96x96xbf16>
    %108 = arith.truncf %91 : vector<96x32xf32> to vector<96x32xbf16>
    %cst_56 = arith.constant dense<0.000000e+00> : vector<96x32xf32>
    %109 = tpu.matmul %107, %108, %cst_56 {dimension_numbers = #tpu.dot_dimension_numbers<[1], [0], [0], [1], [0, 0, 1, 1], [], []>} : vector<96x96xbf16>, vector<96x32xbf16>, vector<96x32xf32> -> vector<96x32xf32>
    %110 = vector.extract_strided_slice %109 {offsets = [0, 0], sizes = [24, 32], strides = [1, 1]} : vector<96x32xf32> to vector<24x32xf32>
    %111 = vector.extract_strided_slice %109 {offsets = [24, 0], sizes = [24, 32], strides = [1, 1]} : vector<96x32xf32> to vector<24x32xf32>
    %112 = vector.extract_strided_slice %109 {offsets = [48, 0], sizes = [24, 32], strides = [1, 1]} : vector<96x32xf32> to vector<24x32xf32>
    %113 = vector.extract_strided_slice %109 {offsets = [72, 0], sizes = [24, 32], strides = [1, 1]} : vector<96x32xf32> to vector<24x32xf32>
    %114 = tpu.concatenate %110, %111, %112, %113 in 1 : vector<24x32xf32>, vector<24x32xf32>, vector<24x32xf32>, vector<24x32xf32> -> vector<24x128xf32>
    %115 = arith.truncf %114 : vector<24x128xf32> to vector<24x128xbf16>
    %c0_57 = arith.constant 0 : index
    %c0_58 = arith.constant 0 : index
    %116 = vector.load %arg19[%c0_57, %c0_58] : memref<128x128xbf16, #tpu.memory_space<vmem>>, vector<128x128xbf16>
    %cst_59 = arith.constant dense<0.000000e+00> : vector<24x128xf32>
    %117 = tpu.matmul %115, %116, %cst_59 {dimension_numbers = #tpu.dot_dimension_numbers<[1], [0], [0], [1], [0, 0, 1, 1], [], []>} : vector<24x128xbf16>, vector<128x128xbf16>, vector<24x128xf32> -> vector<24x128xf32>
    %c0_60 = arith.constant 0 : index
    %c0_61 = arith.constant 0 : index
    %118 = vector.load %arg20[%c0_60, %c0_61] : memref<1x128xf32, #tpu.memory_space<vmem>>, vector<1x128xf32>
    %119 = vector.broadcast %118 : vector<1x128xf32> to vector<24x128xf32>
    %120 = arith.addf %117, %119 : vector<24x128xf32>
    %121 = arith.addf %65, %120 : vector<24x128xf32>
    %c0_62 = arith.constant 0 : index
    %c0_63 = arith.constant 0 : index
    %122 = vector.load %arg21[%c0_62, %c0_63] : memref<1x128xf32, #tpu.memory_space<vmem>>, vector<1x128xf32>
    %c0_64 = arith.constant 0 : index
    %c0_65 = arith.constant 0 : index
    %123 = vector.load %arg22[%c0_64, %c0_65] : memref<1x128xf32, #tpu.memory_space<vmem>>, vector<1x128xf32>
    %cst_66 = arith.constant dense<0.000000e+00> : vector<24xf32>
    %124 = vector.multi_reduction <add>, %121, %cst_66 [1] : vector<24x128xf32> to vector<24xf32>
    %125 = vector.shape_cast %124 : vector<24xf32> to vector<24x1xf32>
    %cst_67 = arith.constant 1.280000e+02 : f32
    %126 = vector.broadcast %cst_67 : f32 to vector<24x1xf32>
    %127 = arith.divf %125, %126 : vector<24x1xf32>
    %128 = vector.broadcast %127 : vector<24x1xf32> to vector<24x128xf32>
    %129 = arith.subf %121, %128 : vector<24x128xf32>
    %130 = arith.mulf %129, %129 : vector<24x128xf32>
    %cst_68 = arith.constant dense<0.000000e+00> : vector<24xf32>
    %131 = vector.multi_reduction <add>, %130, %cst_68 [1] : vector<24x128xf32> to vector<24xf32>
    %132 = vector.shape_cast %131 : vector<24xf32> to vector<24x1xf32>
    %cst_69 = arith.constant 1.280000e+02 : f32
    %133 = vector.broadcast %cst_69 : f32 to vector<24x1xf32>
    %134 = arith.divf %132, %133 : vector<24x1xf32>
    %135 = vector.broadcast %127 : vector<24x1xf32> to vector<24x128xf32>
    %136 = arith.subf %121, %135 : vector<24x128xf32>
    %cst_70 = arith.constant 9.99999974E-6 : f32
    %137 = vector.broadcast %cst_70 : f32 to vector<24x1xf32>
    %138 = arith.addf %134, %137 : vector<24x1xf32>
    %139 = math.rsqrt %138 : vector<24x1xf32>
    %140 = vector.broadcast %139 : vector<24x1xf32> to vector<24x128xf32>
    %141 = arith.mulf %136, %140 : vector<24x128xf32>
    %142 = vector.broadcast %122 : vector<1x128xf32> to vector<24x128xf32>
    %143 = arith.mulf %141, %142 : vector<24x128xf32>
    %144 = vector.broadcast %123 : vector<1x128xf32> to vector<24x128xf32>
    %145 = arith.addf %143, %144 : vector<24x128xf32>
    %146 = arith.truncf %145 : vector<24x128xf32> to vector<24x128xbf16>
    %c0_71 = arith.constant 0 : index
    %c0_72 = arith.constant 0 : index
    %147 = vector.load %arg23[%c0_71, %c0_72] : memref<128x128xbf16, #tpu.memory_space<vmem>>, vector<128x128xbf16>
    %cst_73 = arith.constant dense<0.000000e+00> : vector<24x128xf32>
    %148 = tpu.matmul %146, %147, %cst_73 {dimension_numbers = #tpu.dot_dimension_numbers<[1], [0], [0], [1], [0, 0, 1, 1], [], []>} : vector<24x128xbf16>, vector<128x128xbf16>, vector<24x128xf32> -> vector<24x128xf32>
    %c0_74 = arith.constant 0 : index
    %c0_75 = arith.constant 0 : index
    %149 = vector.load %arg24[%c0_74, %c0_75] : memref<1x128xf32, #tpu.memory_space<vmem>>, vector<1x128xf32>
    %150 = vector.broadcast %149 : vector<1x128xf32> to vector<24x128xf32>
    %151 = arith.addf %148, %150 : vector<24x128xf32>
    %cst_76 = arith.constant 0.000000e+00 : f32
    %152 = vector.broadcast %cst_76 : f32 to vector<24x128xf32>
    %153 = arith.maximumf %151, %152 : vector<24x128xf32>
    %154 = arith.truncf %153 : vector<24x128xf32> to vector<24x128xbf16>
    %c0_77 = arith.constant 0 : index
    %c0_78 = arith.constant 0 : index
    %155 = vector.load %arg25[%c0_77, %c0_78] : memref<128x128xbf16, #tpu.memory_space<vmem>>, vector<128x128xbf16>
    %cst_79 = arith.constant dense<0.000000e+00> : vector<24x128xf32>
    %156 = tpu.matmul %154, %155, %cst_79 {dimension_numbers = #tpu.dot_dimension_numbers<[1], [0], [0], [1], [0, 0, 1, 1], [], []>} : vector<24x128xbf16>, vector<128x128xbf16>, vector<24x128xf32> -> vector<24x128xf32>
    %c0_80 = arith.constant 0 : index
    %c0_81 = arith.constant 0 : index
    %157 = vector.load %arg26[%c0_80, %c0_81] : memref<1x128xf32, #tpu.memory_space<vmem>>, vector<1x128xf32>
    %158 = vector.broadcast %157 : vector<1x128xf32> to vector<24x128xf32>
    %159 = arith.addf %156, %158 : vector<24x128xf32>
    %160 = arith.addf %145, %159 : vector<24x128xf32>
    %c0_82 = arith.constant 0 : index
    %c0_83 = arith.constant 0 : index
    %161 = vector.load %arg27[%c0_82, %c0_83] : memref<1x128xf32, #tpu.memory_space<vmem>>, vector<1x128xf32>
    %c0_84 = arith.constant 0 : index
    %c0_85 = arith.constant 0 : index
    %162 = vector.load %arg28[%c0_84, %c0_85] : memref<1x128xf32, #tpu.memory_space<vmem>>, vector<1x128xf32>
    %cst_86 = arith.constant dense<0.000000e+00> : vector<24xf32>
    %163 = vector.multi_reduction <add>, %160, %cst_86 [1] : vector<24x128xf32> to vector<24xf32>
    %164 = vector.shape_cast %163 : vector<24xf32> to vector<24x1xf32>
    %cst_87 = arith.constant 1.280000e+02 : f32
    %165 = vector.broadcast %cst_87 : f32 to vector<24x1xf32>
    %166 = arith.divf %164, %165 : vector<24x1xf32>
    %167 = vector.broadcast %166 : vector<24x1xf32> to vector<24x128xf32>
    %168 = arith.subf %160, %167 : vector<24x128xf32>
    %169 = arith.mulf %168, %168 : vector<24x128xf32>
    %cst_88 = arith.constant dense<0.000000e+00> : vector<24xf32>
    %170 = vector.multi_reduction <add>, %169, %cst_88 [1] : vector<24x128xf32> to vector<24xf32>
    %171 = vector.shape_cast %170 : vector<24xf32> to vector<24x1xf32>
    %cst_89 = arith.constant 1.280000e+02 : f32
    %172 = vector.broadcast %cst_89 : f32 to vector<24x1xf32>
    %173 = arith.divf %171, %172 : vector<24x1xf32>
    %174 = vector.broadcast %166 : vector<24x1xf32> to vector<24x128xf32>
    %175 = arith.subf %160, %174 : vector<24x128xf32>
    %cst_90 = arith.constant 9.99999974E-6 : f32
    %176 = vector.broadcast %cst_90 : f32 to vector<24x1xf32>
    %177 = arith.addf %173, %176 : vector<24x1xf32>
    %178 = math.rsqrt %177 : vector<24x1xf32>
    %179 = vector.broadcast %178 : vector<24x1xf32> to vector<24x128xf32>
    %180 = arith.mulf %175, %179 : vector<24x128xf32>
    %181 = vector.broadcast %161 : vector<1x128xf32> to vector<24x128xf32>
    %182 = arith.mulf %180, %181 : vector<24x128xf32>
    %183 = vector.broadcast %162 : vector<1x128xf32> to vector<24x128xf32>
    %184 = arith.addf %182, %183 : vector<24x128xf32>
    %185 = vector.extract_strided_slice %184 {offsets = [0, 0], sizes = [1, 128], strides = [1, 1]} : vector<24x128xf32> to vector<1x128xf32>
    %186 = vector.extract_strided_slice %184 {offsets = [1, 0], sizes = [16, 128], strides = [1, 1]} : vector<24x128xf32> to vector<16x128xf32>
    %cst_91 = arith.constant dense<0.000000e+00> : vector<128xf32>
    %187 = vector.multi_reduction <add>, %186, %cst_91 [0] : vector<16x128xf32> to vector<128xf32>
    %188 = vector.shape_cast %187 : vector<128xf32> to vector<1x128xf32>
    %cst_92 = arith.constant 1.600000e+01 : f32
    %189 = vector.broadcast %cst_92 : f32 to vector<1x128xf32>
    %190 = arith.divf %188, %189 : vector<1x128xf32>
    %191 = tpu.concatenate %185, %190 in 1 : vector<1x128xf32>, vector<1x128xf32> -> vector<1x256xf32>
    %192 = arith.truncf %191 : vector<1x256xf32> to vector<1x256xbf16>
    %c0_93 = arith.constant 0 : index
    %c0_94 = arith.constant 0 : index
    %193 = vector.load %arg29[%c0_93, %c0_94] : memref<256x64xbf16, #tpu.memory_space<vmem>>, vector<256x64xbf16>
    %cst_95 = arith.constant dense<0.000000e+00> : vector<1x64xf32>
    %194 = tpu.matmul %192, %193, %cst_95 {dimension_numbers = #tpu.dot_dimension_numbers<[1], [0], [0], [1], [0, 0, 1, 1], [], []>} : vector<1x256xbf16>, vector<256x64xbf16>, vector<1x64xf32> -> vector<1x64xf32>
    %c0_96 = arith.constant 0 : index
    %c0_97 = arith.constant 0 : index
    %195 = vector.load %arg30[%c0_96, %c0_97] : memref<1x64xf32, #tpu.memory_space<vmem>>, vector<1x64xf32>
    %196 = arith.addf %194, %195 : vector<1x64xf32>
    %cst_98 = arith.constant 0.000000e+00 : f32
    %197 = vector.broadcast %cst_98 : f32 to vector<1x64xf32>
    %198 = arith.maximumf %196, %197 : vector<1x64xf32>
    %c0_99 = arith.constant 0 : index
    %c0_100 = arith.constant 0 : index
    %c0_101 = arith.constant 0 : index
    %199 = vector.load %arg31[%c0_99, %c0_100, %c0_101] : memref<1x1x64xf32, #tpu.memory_space<vmem>>, vector<1x1x64xf32>
    %200 = vector.shape_cast %199 : vector<1x1x64xf32> to vector<1x64xf32>
    %201 = vector.shape_cast %198 : vector<1x64xf32> to vector<1x1x64xf32>
    tpu.vector_store %arg31[%c0_99, %c0_100, %c0_101], %201 {strides = array<i32>} : memref<1x1x64xf32, #tpu.memory_space<vmem>>, vector<1x1x64xf32>,
    return
  }
  func.func @transform_0(%arg0: i32) -> (i32, i32, i32) {
    %c0_i32 = arith.constant 0 : i32
    %c0_i32_0 = arith.constant 0 : i32
    %c0_i32_1 = arith.constant 0 : i32
    return %arg0, %c0_i32, %c0_i32_0 : i32, i32, i32
  }
  func.func @transform_1(%arg0: i32) -> (i32, i32, i32) {
    %c0_i32 = arith.constant 0 : i32
    %c0_i32_0 = arith.constant 0 : i32
    %c0_i32_1 = arith.constant 0 : i32
    return %arg0, %c0_i32, %c0_i32_0 : i32, i32, i32
  }
  func.func @transform_2(%arg0: i32) -> (i32, i32) {
    %c0_i32 = arith.constant 0 : i32
    %c0_i32_0 = arith.constant 0 : i32
    %c0_i32_1 = arith.constant 0 : i32
    return %c0_i32, %c0_i32_0 : i32, i32
  }
  func.func @transform_3(%arg0: i32) -> (i32, i32) {
    %c0_i32 = arith.constant 0 : i32
    %c0_i32_0 = arith.constant 0 : i32
    %c0_i32_1 = arith.constant 0 : i32
    return %c0_i32, %c0_i32_0 : i32, i32
  }
  func.func @transform_4(%arg0: i32) -> (i32, i32) {
    %c0_i32 = arith.constant 0 : i32
    %c0_i32_0 = arith.constant 0 : i32
    %c0_i32_1 = arith.constant 0 : i32
    return %c0_i32, %c0_i32_0 : i32, i32
  }
  func.func @transform_5(%arg0: i32) -> (i32, i32) {
    %c0_i32 = arith.constant 0 : i32
    %c0_i32_0 = arith.constant 0 : i32
    %c0_i32_1 = arith.constant 0 : i32
    return %c0_i32, %c0_i32_0 : i32, i32
  }
  func.func @transform_6(%arg0: i32) -> (i32, i32) {
    %c0_i32 = arith.constant 0 : i32
    %c0_i32_0 = arith.constant 0 : i32
    %c0_i32_1 = arith.constant 0 : i32
    return %c0_i32, %c0_i32_0 : i32, i32
  }
  func.func @transform_7(%arg0: i32) -> (i32, i32) {
    %c0_i32 = arith.constant 0 : i32
    %c0_i32_0 = arith.constant 0 : i32
    %c0_i32_1 = arith.constant 0 : i32
    return %c0_i32, %c0_i32_0 : i32, i32
  }
  func.func @transform_8(%arg0: i32) -> (i32, i32) {
    %c0_i32 = arith.constant 0 : i32
    %c0_i32_0 = arith.constant 0 : i32
    %c0_i32_1 = arith.constant 0 : i32
    return %c0_i32, %c0_i32_0 : i32, i32
  }
  func.func @transform_9(%arg0: i32) -> (i32, i32) {
    %c0_i32 = arith.constant 0 : i32
    %c0_i32_0 = arith.constant 0 : i32
    %c0_i32_1 = arith.constant 0 : i32
    return %c0_i32, %c0_i32_0 : i32, i32
  }
  func.func @transform_10(%arg0: i32) -> (i32, i32) {
    %c0_i32 = arith.constant 0 : i32
    %c0_i32_0 = arith.constant 0 : i32
    %c0_i32_1 = arith.constant 0 : i32
    return %c0_i32, %c0_i32_0 : i32, i32
  }
  func.func @transform_11(%arg0: i32) -> (i32, i32) {
    %c0_i32 = arith.constant 0 : i32
    %c0_i32_0 = arith.constant 0 : i32
    %c0_i32_1 = arith.constant 0 : i32
    return %c0_i32, %c0_i32_0 : i32, i32
  }
  func.func @transform_12(%arg0: i32) -> (i32, i32) {
    %c0_i32 = arith.constant 0 : i32
    %c0_i32_0 = arith.constant 0 : i32
    %c0_i32_1 = arith.constant 0 : i32
    return %c0_i32, %c0_i32_0 : i32, i32
  }
  func.func @transform_13(%arg0: i32) -> (i32, i32) {
    %c0_i32 = arith.constant 0 : i32
    %c0_i32_0 = arith.constant 0 : i32
    %c0_i32_1 = arith.constant 0 : i32
    return %c0_i32, %c0_i32_0 : i32, i32
  }
  func.func @transform_14(%arg0: i32) -> (i32, i32) {
    %c0_i32 = arith.constant 0 : i32
    %c0_i32_0 = arith.constant 0 : i32
    %c0_i32_1 = arith.constant 0 : i32
    return %c0_i32, %c0_i32_0 : i32, i32
  }
  func.func @transform_15(%arg0: i32) -> (i32, i32) {
    %c0_i32 = arith.constant 0 : i32
    %c0_i32_0 = arith.constant 0 : i32
    %c0_i32_1 = arith.constant 0 : i32
    return %c0_i32, %c0_i32_0 : i32, i32
  }
  func.func @transform_16(%arg0: i32) -> (i32, i32) {
    %c0_i32 = arith.constant 0 : i32
    %c0_i32_0 = arith.constant 0 : i32
    %c0_i32_1 = arith.constant 0 : i32
    return %c0_i32, %c0_i32_0 : i32, i32
  }
  func.func @transform_17(%arg0: i32) -> (i32, i32) {
    %c0_i32 = arith.constant 0 : i32
    %c0_i32_0 = arith.constant 0 : i32
    %c0_i32_1 = arith.constant 0 : i32
    return %c0_i32, %c0_i32_0 : i32, i32
  }
  func.func @transform_18(%arg0: i32) -> (i32, i32) {
    %c0_i32 = arith.constant 0 : i32
    %c0_i32_0 = arith.constant 0 : i32
    %c0_i32_1 = arith.constant 0 : i32
    return %c0_i32, %c0_i32_0 : i32, i32
  }
  func.func @transform_19(%arg0: i32) -> (i32, i32) {
    %c0_i32 = arith.constant 0 : i32
    %c0_i32_0 = arith.constant 0 : i32
    %c0_i32_1 = arith.constant 0 : i32
    return %c0_i32, %c0_i32_0 : i32, i32
  }
  func.func @transform_20(%arg0: i32) -> (i32, i32) {
    %c0_i32 = arith.constant 0 : i32
    %c0_i32_0 = arith.constant 0 : i32
    %c0_i32_1 = arith.constant 0 : i32
    return %c0_i32, %c0_i32_0 : i32, i32
  }
  func.func @transform_21(%arg0: i32) -> (i32, i32) {
    %c0_i32 = arith.constant 0 : i32
    %c0_i32_0 = arith.constant 0 : i32
    %c0_i32_1 = arith.constant 0 : i32
    return %c0_i32, %c0_i32_0 : i32, i32
  }
  func.func @transform_22(%arg0: i32) -> (i32, i32) {
    %c0_i32 = arith.constant 0 : i32
    %c0_i32_0 = arith.constant 0 : i32
    %c0_i32_1 = arith.constant 0 : i32
    return %c0_i32, %c0_i32_0 : i32, i32
  }
  func.func @transform_23(%arg0: i32) -> (i32, i32) {
    %c0_i32 = arith.constant 0 : i32
    %c0_i32_0 = arith.constant 0 : i32
    %c0_i32_1 = arith.constant 0 : i32
    return %c0_i32, %c0_i32_0 : i32, i32
  }
  func.func @transform_24(%arg0: i32) -> (i32, i32) {
    %c0_i32 = arith.constant 0 : i32
    %c0_i32_0 = arith.constant 0 : i32
    %c0_i32_1 = arith.constant 0 : i32
    return %c0_i32, %c0_i32_0 : i32, i32
  }
  func.func @transform_25(%arg0: i32) -> (i32, i32) {
    %c0_i32 = arith.constant 0 : i32
    %c0_i32_0 = arith.constant 0 : i32
    %c0_i32_1 = arith.constant 0 : i32
    return %c0_i32, %c0_i32_0 : i32, i32
  }
  func.func @transform_26(%arg0: i32) -> (i32, i32) {
    %c0_i32 = arith.constant 0 : i32
    %c0_i32_0 = arith.constant 0 : i32
    %c0_i32_1 = arith.constant 0 : i32
    return %c0_i32, %c0_i32_0 : i32, i32
  }
  func.func @transform_27(%arg0: i32) -> (i32, i32) {
    %c0_i32 = arith.constant 0 : i32
    %c0_i32_0 = arith.constant 0 : i32
    %c0_i32_1 = arith.constant 0 : i32
    return %c0_i32, %c0_i32_0 : i32, i32
  }
  func.func @transform_28(%arg0: i32) -> (i32, i32) {
    %c0_i32 = arith.constant 0 : i32
    %c0_i32_0 = arith.constant 0 : i32
    %c0_i32_1 = arith.constant 0 : i32
    return %c0_i32, %c0_i32_0 : i32, i32
  }
  func.func @transform_29(%arg0: i32) -> (i32, i32) {
    %c0_i32 = arith.constant 0 : i32
    %c0_i32_0 = arith.constant 0 : i32
    %c0_i32_1 = arith.constant 0 : i32
    return %c0_i32, %c0_i32_0 : i32, i32
  }
  func.func @transform_30(%arg0: i32) -> (i32, i32, i32) {
    %c0_i32 = arith.constant 0 : i32
    %c0_i32_0 = arith.constant 0 : i32
    %c0_i32_1 = arith.constant 0 : i32
    return %arg0, %c0_i32, %c0_i32_0 : i32, i32, i32
  }
}

</mosaic_0001>

<llo_original>
// kernel: loco_transformer_v3_forward.3
$region0: #{loco_transformer_v3_forward.3}
  #allocation0 [shape = 'u32[]', space=smem, size = 0x4, offset = 0x4, fixed_abs, tag = 'smem constant byte address 0x4 - core index']
  #allocation1 [shape = 'u32[72,128]{1,0:T(1,128)}', space=vmem, size = 0x9000, scoped, tag = 'internal scratch']
  %s0 = inlined_call_operand.vmem [shape: bf16[464,64], index: 0, kind: input, shape index: {}]
  %s1 = inlined_call_operand.vmem [shape: bf16[64,32], index: 1, kind: input, shape index: {}]
  %s2 = inlined_call_operand.vmem [shape: f32[1,32], index: 2, kind: input, shape index: {}]
  %s3 = inlined_call_operand.vmem [shape: bf16[464,32], index: 3, kind: output, shape index: {}]
  %s4 = sld [smem:[#allocation0]]
  $region45: #{loco_transformer_v3_forward.3} parent=0
    _
  %s6 = ssub.s32 1, %s4
  %s7 = scalar_select 0, %s6, %s4
  loop: start=0, step=1, limit=4
  $region2: #{loco_transformer_v3_forward.3} parent=0 // loop_pre_header
    _
  $region3: #{loco_transformer_v3_forward.3} parent=0 // loop_header
    %s9 = sphi 0, %s13
    %p10 = scmp.ge.s32.totalorder %s9, 4
    %s19 = sphi 0, %s21
    %s22 = sphi 0, %s19
    %s23 = sphi 0, %s22
    %s39 = sphi 0, %s23
    %s43 = sphi 0, %s43
    %s45 = sphi 0, %s43
    %s46 = sphi 0, %s45
    %s60 = sphi 0, %s46
    %s64 = sphi 0, %s64
    %s66 = sphi 0, %s64
    %s67 = sphi 0, %s66
    %s81 = sphi 0, %s67
    %s87 = sphi 0, %s89
    %s90 = sphi 0, %s87
    %s91 = sphi 0, %s90
    %s107 = sphi 0, %s91
  $region4: #{loco_transformer_v3_forward.3} parent=0 // loop_header_branch
    %12 = sbr.rel (%p10) target = $region8
  $region5: #{loco_transformer_v3_forward.3} parent=0 // loop_body
    %s14 = ssub.s32 %s9, 1
    %s15 = ssub.s32 %s9, 2
    %s16 = sadd.s32 %s9, 1
    %s17 = ssub.s32 %s9, %s16
    %p18 = scmp.eq.s32.totalorder %s17, 0
    %s20 = sadd.s32 %s19, 1
    %s21 = scalar_select %p18, %s19, %s20
    %p24 = pneg %p18
    %p25 = scmp.eq.s32.totalorder %s9, 1
    %p26 = por %p24, %p25
    %p27 = scmp.ne.s32.totalorder %s19, %s22
    %p28 = scmp.eq.s32.totalorder %s9, 0
    %p29 = por %p27, %p28
    %p30 = scmp.ne.s32.totalorder %s19, %s22
    %p31 = scmp.eq.s32.totalorder %s14, 1
    %p32 = por %p30, %p31
    %p33 = scmp.ne.s32.totalorder %s22, %s23
    %p34 = scmp.eq.s32.totalorder %s14, 0
    %p35 = por %p33, %p34
    %p36 = scmp.ne.s32.totalorder %s22, %s23
    %p37 = scmp.eq.s32.totalorder %s15, 1
    %p38 = por %p36, %p37
    %p40 = scmp.ne.s32.totalorder %s23, %s39
    %p41 = scmp.eq.s32.totalorder %s15, 0
    %p42 = por %p40, %p41
    %s44 = sadd.s32 %s43, 1
    %p47 = scmp.eq.s32.totalorder %s9, 1
    %p48 = scmp.ne.s32.totalorder %s43, %s45
    %p49 = scmp.eq.s32.totalorder %s9, 0
    %p50 = por %p48, %p49
    %p51 = scmp.ne.s32.totalorder %s43, %s45
    %p52 = scmp.eq.s32.totalorder %s14, 1
    %p53 = por %p51, %p52
    %p54 = scmp.ne.s32.totalorder %s45, %s46
    %p55 = scmp.eq.s32.totalorder %s14, 0
    %p56 = por %p54, %p55
    %p57 = scmp.ne.s32.totalorder %s45, %s46
    %p58 = scmp.eq.s32.totalorder %s15, 1
    %p59 = por %p57, %p58
    %p61 = scmp.ne.s32.totalorder %s46, %s60
    %p62 = scmp.eq.s32.totalorder %s15, 0
    %p63 = por %p61, %p62
    %s65 = sadd.s32 %s64, 1
    %p68 = scmp.eq.s32.totalorder %s9, 1
    %p69 = scmp.ne.s32.totalorder %s64, %s66
    %p70 = scmp.eq.s32.totalorder %s9, 0
    %p71 = por %p69, %p70
    %p72 = scmp.ne.s32.totalorder %s64, %s66
    %p73 = scmp.eq.s32.totalorder %s14, 1
    %p74 = por %p72, %p73
    %p75 = scmp.ne.s32.totalorder %s66, %s67
    %p76 = scmp.eq.s32.totalorder %s14, 0
    %p77 = por %p75, %p76
    %p78 = scmp.ne.s32.totalorder %s66, %s67
    %p79 = scmp.eq.s32.totalorder %s15, 1
    %p80 = por %p78, %p79
    %p82 = scmp.ne.s32.totalorder %s67, %s81
    %p83 = scmp.eq.s32.totalorder %s15, 0
    %p84 = por %p82, %p83
    %s85 = ssub.s32 %s9, %s16
    %p86 = scmp.eq.s32.totalorder %s85, 0
    %s88 = sadd.s32 %s87, 1
    %s89 = scalar_select %p86, %s87, %s88
    %p92 = pneg %p86
    %p93 = scmp.eq.s32.totalorder %s9, 1
    %p94 = por %p92, %p93
    %p95 = scmp.ne.s32.totalorder %s87, %s90
    %p96 = scmp.eq.s32.totalorder %s9, 0
    %p97 = por %p95, %p96
    %p98 = scmp.ne.s32.totalorder %s87, %s90
    %p99 = scmp.eq.s32.totalorder %s14, 1
    %p100 = por %p98, %p99
    %p101 = scmp.ne.s32.totalorder %s90, %s91
    %p102 = scmp.eq.s32.totalorder %s14, 0
    %p103 = por %p101, %p102
    %p104 = scmp.ne.s32.totalorder %s90, %s91
    %p105 = scmp.eq.s32.totalorder %s15, 1
    %p106 = por %p104, %p105
    %p108 = scmp.ne.s32.totalorder %s91, %s107
    %p109 = scmp.eq.s32.totalorder %s15, 0
    %p110 = por %p108, %p109
    %p111 = scmp.le.s32.totalorder 1, %s9
    %p112 = scmp.lt.s32.totalorder %s9, 3
    %p113 = pnand %p111, %p112
    %p114 = pneg %p113
    // Predicated region
    $region9: #{loco_transformer_v3_forward.3} parent=5 // pred_check
      _
    $region10: #{loco_transformer_v3_forward.3} parent=5 // pred_check_branch
      %116 = sbr.rel (%p113) target = $region12
    $region11: #{loco_transformer_v3_forward.3} parent=5 // pred_region
      %s117 = ssub.s32 %s9, 1
      // Predicated region
      $region13: #{loco_transformer_v3_forward.3} parent=11 // pred_check
        %p118 = pneg %p56
      $region14: #{loco_transformer_v3_forward.3} parent=11 // pred_check_branch
        %120 = sbr.rel (%p118) target = $region16
      $region15: #{loco_transformer_v3_forward.3} parent=11 // pred_region
        _
      $region16: #{loco_transformer_v3_forward.3} parent=11 // pred_fallthru
        _
      // Predicated region
      $region17: #{loco_transformer_v3_forward.3} parent=11 // pred_check
        %p121 = pneg %p77
      $region18: #{loco_transformer_v3_forward.3} parent=11 // pred_check_branch
        %123 = sbr.rel (%p121) target = $region20
      $region19: #{loco_transformer_v3_forward.3} parent=11 // pred_region
        _
      $region20: #{loco_transformer_v3_forward.3} parent=11 // pred_fallthru
        _
    $region12: #{loco_transformer_v3_forward.3} parent=5 // pred_fallthru
      _
    %p124 = scmp.lt.s32.totalorder %s9, 2
    // Predicated region
    $region21: #{loco_transformer_v3_forward.3} parent=5 // pred_check
      %p125 = pneg %p124
    $region22: #{loco_transformer_v3_forward.3} parent=5 // pred_check_branch
      %127 = sbr.rel (%p125) target = $region24
    $region23: #{loco_transformer_v3_forward.3} parent=5 // pred_region
      // Predicated region
      $region25: #{loco_transformer_v3_forward.3} parent=23 // pred_check
        %p128 = pneg %p29
      $region26: #{loco_transformer_v3_forward.3} parent=23 // pred_check_branch
        %130 = sbr.rel (%p128) target = $region28
      $region27: #{loco_transformer_v3_forward.3} parent=23 // pred_region
        %s131 = smul.u32 29, %s9
        %p132 = scmp.lt.s32.totalorder %s131, 57
        %s133 = scalar_select %p132, %s131, 57
        %s134 = smul.addr %s133, 4
        %s135 = scalar_lea.vmem %s0, %s134
        %s136 = smul.u32 29, %s9
      $region28: #{loco_transformer_v3_forward.3} parent=23 // pred_fallthru
        _
    $region24: #{loco_transformer_v3_forward.3} parent=5 // pred_fallthru
      _
    %p137 = scmp.le.s32.totalorder 1, %s9
    %p138 = scmp.lt.s32.totalorder %s9, 3
    %p139 = pnand %p137, %p138
    %p140 = pneg %p139
    // Predicated region
    $region29: #{loco_transformer_v3_forward.3} parent=5 // pred_check
      _
    $region30: #{loco_transformer_v3_forward.3} parent=5 // pred_check_branch
      %142 = sbr.rel (%p139) target = $region32
    $region31: #{loco_transformer_v3_forward.3} parent=5 // pred_region
      %s143 = ssub.s32 %s9, 1
      %s144 = smul.u32 29, %s14
      %p145 = scmp.lt.s32.totalorder %s144, 57
      %s146 = scalar_select %p145, %s144, 57
      %s147 = smul.addr %s146, 4
      %s148 = scalar_lea.vmem %s0, %s147
      %p149 = pneg %p35
      %p150 = pneg %p32
      %p151 = pneg %p56
      %p152 = pneg %p53
      %p153 = pneg %p77
      %p154 = pneg %p74
      %p155 = pneg %p103
      %p156 = pneg %p100
      %s157 = smul.u32 29, %s14
      %p158 = scmp.lt.s32.totalorder %s157, 57
      %s159 = scalar_select %p158, %s157, 57
      %s160 = smul.addr %s159, 4
      %s161 = scalar_lea.vmem %s3, %s160
      %s162 = smul.u32 29, %s14
      %p163 = scmp.lt.s32.totalorder %s162, 57
      %s164 = scalar_select %p163, %s162, 57
      %s165 = smul.addr %s164, 4
      %s166 = scalar_lea.vmem %s0, %s165
      %s167 = smul.u32 29, %s14
      %s168 = smul.u32 29, %s14
      %p169 = scmp.lt.s32.totalorder %s168, 57
      %s170 = scalar_select %p169, %s168, 57
      %s171 = smul.addr %s170, 4
      %s172 = scalar_lea.vmem %s3, %s171
      %s173 = smul.u32 29, %s14
      %v175 = vld [vmem:[%s166] sm:$0xf]
      %v176 = vld [vmem:[%s166 + $0x4] sm:$0xf]
      %v177 = vld [vmem:[%s166 + $0x8] sm:$0xf]
      %v178 = vld [vmem:[%s166 + $0xc] sm:$0xf]
      %v179 = vld [vmem:[%s166 + $0x10] sm:$0xf]
      %v180 = vld [vmem:[%s166 + $0x14] sm:$0xf]
      %v181 = vld [vmem:[%s166 + $0x18] sm:$0xf]
      %v182 = vld [vmem:[%s166 + $0x1c] sm:$0xf]
      %v183 = vld [vmem:[%s166 + $0x20] sm:$0xf]
      %v184 = vld [vmem:[%s166 + $0x24] sm:$0xf]
      %v185 = vld [vmem:[%s166 + $0x28] sm:$0xf]
      %v186 = vld [vmem:[%s166 + $0x2c] sm:$0xf]
      %v187 = vld [vmem:[%s166 + $0x30] sm:$0xf]
      %v188 = vld [vmem:[%s166 + $0x34] sm:$0xf]
      %v189 = vld [vmem:[%s166 + $0x38] sm:$0xf]
      %v190 = vld [vmem:[%s166 + $0x3c] sm:$0xf]
      %v191 = vld [vmem:[%s166 + $0x40] sm:$0xf]
      %v192 = vld [vmem:[%s166 + $0x44] sm:$0xf]
      %v193 = vld [vmem:[%s166 + $0x48] sm:$0xf]
      %v194 = vld [vmem:[%s166 + $0x4c] sm:$0xf]
      %v195 = vld [vmem:[%s166 + $0x50] sm:$0xf]
      %v196 = vld [vmem:[%s166 + $0x54] sm:$0xf]
      %v197 = vld [vmem:[%s166 + $0x58] sm:$0xf]
      %v198 = vld [vmem:[%s166 + $0x5c] sm:$0xf]
      %v199 = vld [vmem:[%s166 + $0x60] sm:$0xf]
      %v200 = vld [vmem:[%s166 + $0x64] sm:$0xf]
      %v201 = vld [vmem:[%s166 + $0x68] sm:$0xf]
      %v202 = vld [vmem:[%s166 + $0x6c] sm:$0xf]
      %v203 = vld [vmem:[%s166 + $0x70] sm:$0xf]
      %v204 = vld [vmem:[%s1] sm:$0xf]
      %v205 = vld [vmem:[%s1 + $0x4] sm:$0xf]
      %v206 = vld [vmem:[%s1 + $0x8] sm:$0xf]
      %v207 = vld [vmem:[%s1 + $0xc] sm:$0xf]
      %v208 = vld [vmem:[%s1 + $0x10] sm:$0xf]
      %v209 = vld [vmem:[%s1 + $0x14] sm:$0xf]
      %v210 = vld [vmem:[%s1 + $0x18] sm:$0xf]
      %v211 = vld [vmem:[%s1 + $0x1c] sm:$0xf]
      %v212 = vld [vmem:[%s2] sm:$0x1]
      %v214 = vperm.slane %v212, 0
      %v245 = vunpack.c.l.b16 %v175
      %v246 = vunpack.c.l.b16 %v176
      %v247 = vunpack.c.l.b16 %v177
      %v248 = vunpack.c.l.b16 %v178
      %v249 = vunpack.c.l.b16 %v179
      %v250 = vunpack.c.l.b16 %v180
      %v251 = vunpack.c.l.b16 %v181
      %v252 = vunpack.c.l.b16 %v182
      %v253 = vunpack.c.l.b16 %v183
      %v254 = vunpack.c.l.b16 %v184
      %v255 = vunpack.c.l.b16 %v185
      %v256 = vunpack.c.l.b16 %v186
      %v257 = vunpack.c.l.b16 %v187
      %v258 = vunpack.c.l.b16 %v188
      %v259 = vunpack.c.l.b16 %v189
      %v260 = vunpack.c.l.b16 %v190
      %v261 = vunpack.c.l.b16 %v191
      %v262 = vunpack.c.l.b16 %v192
      %v263 = vunpack.c.l.b16 %v193
      %v264 = vunpack.c.l.b16 %v194
      %v265 = vunpack.c.l.b16 %v195
      %v266 = vunpack.c.l.b16 %v196
      %v267 = vunpack.c.l.b16 %v197
      %v268 = vunpack.c.l.b16 %v198
      %v269 = vunpack.c.l.b16 %v199
      %v270 = vunpack.c.l.b16 %v200
      %v271 = vunpack.c.l.b16 %v201
      %v272 = vunpack.c.l.b16 %v202
      %v273 = vunpack.c.l.b16 %v203
      %v274 = vpack.c.b16 %v246, %v245
      %v275 = vpack.c.b16 %v248, %v247
      %v276 = vpack.c.b16 %v250, %v249
      %v277 = vpack.c.b16 %v252, %v251
      %v278 = vpack.c.b16 %v254, %v253
      %v279 = vpack.c.b16 %v256, %v255
      %v280 = vpack.c.b16 %v258, %v257
      %v281 = vpack.c.b16 %v260, %v259
      %v282 = vpack.c.b16 %v262, %v261
      %v283 = vpack.c.b16 %v264, %v263
      %v284 = vpack.c.b16 %v266, %v265
      %v285 = vpack.c.b16 %v268, %v267
      %v286 = vpack.c.b16 %v270, %v269
      %v287 = vpack.c.b16 %v272, %v271
      %v288 = vpack.c.b16 %v273, %v273
      %v297 = vunpack.c.l.b16 %v204
      %v298 = vunpack.c.l.b16 %v205
      %v299 = vunpack.c.l.b16 %v206
      %v300 = vunpack.c.l.b16 %v207
      %v301 = vunpack.c.l.b16 %v208
      %v302 = vunpack.c.l.b16 %v209
      %v303 = vunpack.c.l.b16 %v210
      %v304 = vunpack.c.l.b16 %v211
      %v305 = vpack.c.b16 %v298, %v297
      %v306 = vpack.c.b16 %v300, %v299
      %v307 = vpack.c.b16 %v302, %v301
      %v308 = vpack.c.b16 %v304, %v303
      %vm313 = vcmask 523264
      %v315 = vsel %vm313, %v274, 0
      %v318 = vsel %vm313, %v275, 0
      %v321 = vsel %vm313, %v276, 0
      %v324 = vsel %vm313, %v277, 0
      %v327 = vsel %vm313, %v278, 0
      %v330 = vsel %vm313, %v279, 0
      %v333 = vsel %vm313, %v280, 0
      %v336 = vsel %vm313, %v281, 0
      %v339 = vsel %vm313, %v282, 0
      %v342 = vsel %vm313, %v283, 0
      %v345 = vsel %vm313, %v284, 0
      %v348 = vsel %vm313, %v285, 0
      %v351 = vsel %vm313, %v286, 0
      %v354 = vsel %vm313, %v287, 0
      %v357 = vsel %vm313, %v288, 0
      %359 = vmatpush.bf16.msra.mxu0 0
      %360 = vmatpush.bf16.msra.mxu0 0
      %361 = vmatpush.bf16.msra.mxu0 0
      %362 = vmatpush.bf16.msra.mxu0 0
      %363 = vmatpush.bf16.msra.mxu0 %v308
      %364 = vmatpush.bf16.msra.mxu0 %v307
      %365 = vmatpush.bf16.msra.mxu0 %v306
      %366 = vmatpush.bf16.msra.mxu0 %v305
      %367 = vmatmul.bf16.gmra.mxu0 %v315
      %v368 = vpop.f32.mrf.mxu0
      %v369 = vadd.f32 %v214, %v368
      %v370 = vpop.f32.mrf.mxu0
      %v371 = vadd.f32 %v214, %v370
      %372 = vmatmul.bf16.gmra.mxu0 %v318
      %v373 = vpop.f32.mrf.mxu0
      %v374 = vadd.f32 %v214, %v373
      %v375 = vpop.f32.mrf.mxu0
      %v376 = vadd.f32 %v214, %v375
      %377 = vmatmul.bf16.gmra.mxu0 %v321
      %v378 = vpop.f32.mrf.mxu0
      %v379 = vadd.f32 %v214, %v378
      %v380 = vpop.f32.mrf.mxu0
      %v381 = vadd.f32 %v214, %v380
      %382 = vmatmul.bf16.gmra.mxu0 %v324
      %v383 = vpop.f32.mrf.mxu0
      %v384 = vadd.f32 %v214, %v383
      %v385 = vpop.f32.mrf.mxu0
      %v386 = vadd.f32 %v214, %v385
      %387 = vmatmul.bf16.gmra.mxu0 %v327
      %v388 = vpop.f32.mrf.mxu0
      %v389 = vadd.f32 %v214, %v388
      %v390 = vpop.f32.mrf.mxu0
      %v391 = vadd.f32 %v214, %v390
      %392 = vmatmul.bf16.gmra.mxu0 %v330
      %v393 = vpop.f32.mrf.mxu0
      %v394 = vadd.f32 %v214, %v393
      %v395 = vpop.f32.mrf.mxu0
      %v396 = vadd.f32 %v214, %v395
      %397 = vmatmul.bf16.gmra.mxu0 %v333
      %v398 = vpop.f32.mrf.mxu0
      %v399 = vadd.f32 %v214, %v398
      %v400 = vpop.f32.mrf.mxu0
      %v401 = vadd.f32 %v214, %v400
      %402 = vmatmul.bf16.gmra.mxu0 %v336
      %v403 = vpop.f32.mrf.mxu0
      %v404 = vadd.f32 %v214, %v403
      %v405 = vpop.f32.mrf.mxu0
      %v406 = vadd.f32 %v214, %v405
      %407 = vmatmul.bf16.gmra.mxu0 %v339
      %v408 = vpop.f32.mrf.mxu0
      %v409 = vadd.f32 %v214, %v408
      %v410 = vpop.f32.mrf.mxu0
      %v411 = vadd.f32 %v214, %v410
      %412 = vmatmul.bf16.gmra.mxu0 %v342
      %v413 = vpop.f32.mrf.mxu0
      %v414 = vadd.f32 %v214, %v413
      %v415 = vpop.f32.mrf.mxu0
      %v416 = vadd.f32 %v214, %v415
      %417 = vmatmul.bf16.gmra.mxu0 %v345
      %v418 = vpop.f32.mrf.mxu0
      %v419 = vadd.f32 %v214, %v418
      %v420 = vpop.f32.mrf.mxu0
      %v421 = vadd.f32 %v214, %v420
      %422 = vmatmul.bf16.gmra.mxu0 %v348
      %v423 = vpop.f32.mrf.mxu0
      %v424 = vadd.f32 %v214, %v423
      %v425 = vpop.f32.mrf.mxu0
      %v426 = vadd.f32 %v214, %v425
      %427 = vmatmul.bf16.gmra.mxu0 %v351
      %v428 = vpop.f32.mrf.mxu0
      %v429 = vadd.f32 %v214, %v428
      %v430 = vpop.f32.mrf.mxu0
      %v431 = vadd.f32 %v214, %v430
      %432 = vmatmul.bf16.gmra.mxu0 %v354
      %v433 = vpop.f32.mrf.mxu0
      %v434 = vadd.f32 %v214, %v433
      %v435 = vpop.f32.mrf.mxu0
      %v436 = vadd.f32 %v214, %v435
      %437 = vmatmul.bf16.gmra.mxu0 %v357
      %v438 = vpop.f32.mrf.mxu0
      %v439 = vadd.f32 %v214, %v438
      %v440 = vpop.f32.mrf.mxu0
      %441 = vdwg.mxu0
      %v442 = vmax.f32 %v369, 0.0
      %v443 = vmax.f32 %v371, 0.0
      %v444 = vmax.f32 %v374, 0.0
      %v445 = vmax.f32 %v376, 0.0
      %v446 = vmax.f32 %v379, 0.0
      %v447 = vmax.f32 %v381, 0.0
      %v448 = vmax.f32 %v384, 0.0
      %v449 = vmax.f32 %v386, 0.0
      %v450 = vmax.f32 %v389, 0.0
      %v451 = vmax.f32 %v391, 0.0
      %v452 = vmax.f32 %v394, 0.0
      %v453 = vmax.f32 %v396, 0.0
      %v454 = vmax.f32 %v399, 0.0
      %v455 = vmax.f32 %v401, 0.0
      %v456 = vmax.f32 %v404, 0.0
      %v457 = vmax.f32 %v406, 0.0
      %v458 = vmax.f32 %v409, 0.0
      %v459 = vmax.f32 %v411, 0.0
      %v460 = vmax.f32 %v414, 0.0
      %v461 = vmax.f32 %v416, 0.0
      %v462 = vmax.f32 %v419, 0.0
      %v463 = vmax.f32 %v421, 0.0
      %v464 = vmax.f32 %v424, 0.0
      %v465 = vmax.f32 %v426, 0.0
      %v466 = vmax.f32 %v429, 0.0
      %v467 = vmax.f32 %v431, 0.0
      %v468 = vmax.f32 %v434, 0.0
      %v469 = vmax.f32 %v436, 0.0
      %v470 = vmax.f32 %v439, 0.0
      %v471 = vpack.c.bf16 %v442, %v442
      %v472 = vpack.c.bf16 %v443, %v443
      %v473 = vpack.c.bf16 %v444, %v444
      %v474 = vpack.c.bf16 %v445, %v445
      %v475 = vpack.c.bf16 %v446, %v446
      %v476 = vpack.c.bf16 %v447, %v447
      %v477 = vpack.c.bf16 %v448, %v448
      %v478 = vpack.c.bf16 %v449, %v449
      %v479 = vpack.c.bf16 %v450, %v450
      %v480 = vpack.c.bf16 %v451, %v451
      %v481 = vpack.c.bf16 %v452, %v452
      %v482 = vpack.c.bf16 %v453, %v453
      %v483 = vpack.c.bf16 %v454, %v454
      %v484 = vpack.c.bf16 %v455, %v455
      %v485 = vpack.c.bf16 %v456, %v456
      %v486 = vpack.c.bf16 %v457, %v457
      %v487 = vpack.c.bf16 %v458, %v458
      %v488 = vpack.c.bf16 %v459, %v459
      %v489 = vpack.c.bf16 %v460, %v460
      %v490 = vpack.c.bf16 %v461, %v461
      %v491 = vpack.c.bf16 %v462, %v462
      %v492 = vpack.c.bf16 %v463, %v463
      %v493 = vpack.c.bf16 %v464, %v464
      %v494 = vpack.c.bf16 %v465, %v465
      %v495 = vpack.c.bf16 %v466, %v466
      %v496 = vpack.c.bf16 %v467, %v467
      %v497 = vpack.c.bf16 %v468, %v468
      %v498 = vpack.c.bf16 %v469, %v469
      %v499 = vpack.c.bf16 %v470, %v470
      %vm500 = vcmask 257024
      %501 = vst.msk [vmem:[%s172] sm:$0xf] %vm500, %v471
      %502 = vst.msk [vmem:[%s172 + $0x4] sm:$0xf] %vm500, %v472
      %503 = vst.msk [vmem:[%s172 + $0x8] sm:$0xf] %vm500, %v473
      %504 = vst.msk [vmem:[%s172 + $0xc] sm:$0xf] %vm500, %v474
      %505 = vst.msk [vmem:[%s172 + $0x10] sm:$0xf] %vm500, %v475
      %506 = vst.msk [vmem:[%s172 + $0x14] sm:$0xf] %vm500, %v476
      %507 = vst.msk [vmem:[%s172 + $0x18] sm:$0xf] %vm500, %v477
      %508 = vst.msk [vmem:[%s172 + $0x1c] sm:$0xf] %vm500, %v478
      %509 = vst.msk [vmem:[%s172 + $0x20] sm:$0xf] %vm500, %v479
      %510 = vst.msk [vmem:[%s172 + $0x24] sm:$0xf] %vm500, %v480
      %511 = vst.msk [vmem:[%s172 + $0x28] sm:$0xf] %vm500, %v481
      %512 = vst.msk [vmem:[%s172 + $0x2c] sm:$0xf] %vm500, %v482
      %513 = vst.msk [vmem:[%s172 + $0x30] sm:$0xf] %vm500, %v483
      %514 = vst.msk [vmem:[%s172 + $0x34] sm:$0xf] %vm500, %v484
      %515 = vst.msk [vmem:[%s172 + $0x38] sm:$0xf] %vm500, %v485
      %516 = vst.msk [vmem:[%s172 + $0x3c] sm:$0xf] %vm500, %v486
      %517 = vst.msk [vmem:[%s172 + $0x40] sm:$0xf] %vm500, %v487
      %518 = vst.msk [vmem:[%s172 + $0x44] sm:$0xf] %vm500, %v488
      %519 = vst.msk [vmem:[%s172 + $0x48] sm:$0xf] %vm500, %v489
      %520 = vst.msk [vmem:[%s172 + $0x4c] sm:$0xf] %vm500, %v490
      %521 = vst.msk [vmem:[%s172 + $0x50] sm:$0xf] %vm500, %v491
      %522 = vst.msk [vmem:[%s172 + $0x54] sm:$0xf] %vm500, %v492
      %523 = vst.msk [vmem:[%s172 + $0x58] sm:$0xf] %vm500, %v493
      %524 = vst.msk [vmem:[%s172 + $0x5c] sm:$0xf] %vm500, %v494
      %525 = vst.msk [vmem:[%s172 + $0x60] sm:$0xf] %vm500, %v495
      %526 = vst.msk [vmem:[%s172 + $0x64] sm:$0xf] %vm500, %v496
      %527 = vst.msk [vmem:[%s172 + $0x68] sm:$0xf] %vm500, %v497
      %528 = vst.msk [vmem:[%s172 + $0x6c] sm:$0xf] %vm500, %v498
      %529 = vst.msk [vmem:[%s172 + $0x70] sm:$0xf] %vm500, %v499
      %s530 = smul.u32 29, %s14
      %p531 = scmp.lt.s32.totalorder %s530, 57
      %s532 = scalar_select %p531, %s530, 57
      %s533 = smul.addr %s532, 4
      %s534 = scalar_lea.vmem %s3, %s533
      // Predicated region
      $region33: #{loco_transformer_v3_forward.3} parent=31 // pred_check
        %p535 = pneg %p100
      $region34: #{loco_transformer_v3_forward.3} parent=31 // pred_check_branch
        %537 = sbr.rel (%p535) target = $region36
      $region35: #{loco_transformer_v3_forward.3} parent=31 // pred_region
        %s538 = smul.u32 29, %s14
      $region36: #{loco_transformer_v3_forward.3} parent=31 // pred_fallthru
        _
    $region32: #{loco_transformer_v3_forward.3} parent=5 // pred_fallthru
      _
    %p539 = scmp.le.s32.totalorder 2, %s9
    // Predicated region
    $region37: #{loco_transformer_v3_forward.3} parent=5 // pred_check
      %p540 = pneg %p539
    $region38: #{loco_transformer_v3_forward.3} parent=5 // pred_check_branch
      %542 = sbr.rel (%p540) target = $region40
    $region39: #{loco_transformer_v3_forward.3} parent=5 // pred_region
      %s543 = ssub.s32 %s9, 2
      // Predicated region
      $region41: #{loco_transformer_v3_forward.3} parent=39 // pred_check
        %p544 = pneg %p106
      $region42: #{loco_transformer_v3_forward.3} parent=39 // pred_check_branch
        %546 = sbr.rel (%p544) target = $region44
      $region43: #{loco_transformer_v3_forward.3} parent=39 // pred_region
        %s547 = smul.u32 29, %s15
        %p548 = scmp.lt.s32.totalorder %s547, 57
        %s549 = scalar_select %p548, %s547, 57
        %s550 = smul.addr %s549, 4
        %s551 = scalar_lea.vmem %s3, %s550
      $region44: #{loco_transformer_v3_forward.3} parent=39 // pred_fallthru
        _
    $region40: #{loco_transformer_v3_forward.3} parent=5 // pred_fallthru
      _
  $region6: #{loco_transformer_v3_forward.3} parent=0 // loop_footer
    %s13 = sadd.s32 1, %s9
  $region7: #{loco_transformer_v3_forward.3} parent=0 // loop_footer_branch
    %8 = sbr.rel target = $region3
  $region8: #{loco_transformer_v3_forward.3} parent=0 // loop_exit
    _

// kernel: loco_transformer_v3_forward.4
$region0: #{loco_transformer_v3_forward.4}
  #allocation0 [shape = 'u32[]', space=smem, size = 0x4, offset = 0x4, fixed_abs, tag = 'smem constant byte address 0x4 - core index']
  #allocation1 [shape = 'u32[72,128]{1,0:T(1,128)}', space=vmem, size = 0x9000, scoped, tag = 'internal scratch']
  %s0 = inlined_call_operand.vmem [shape: bf16[80,512], index: 0, kind: input, shape index: {}]
  %s1 = inlined_call_operand.vmem [shape: bf16[512,64], index: 1, kind: input, shape index: {}]
  %s2 = inlined_call_operand.vmem [shape: f32[1,64], index: 2, kind: input, shape index: {}]
  %s3 = inlined_call_operand.vmem [shape: bf16[80,64], index: 3, kind: output, shape index: {}]
  %s4 = sld [smem:[#allocation0]]
  $region45: #{loco_transformer_v3_forward.4} parent=0
    _
  %s6 = ssub.s32 1, %s4
  %s7 = scalar_select 0, %s6, %s4
  loop: start=0, step=1, limit=4
  $region2: #{loco_transformer_v3_forward.4} parent=0 // loop_pre_header
    _
  $region3: #{loco_transformer_v3_forward.4} parent=0 // loop_header
    %s9 = sphi 0, %s13
    %p10 = scmp.ge.s32.totalorder %s9, 4
    %s19 = sphi 0, %s21
    %s22 = sphi 0, %s19
    %s23 = sphi 0, %s22
    %s39 = sphi 0, %s23
    %s43 = sphi 0, %s43
    %s45 = sphi 0, %s43
    %s46 = sphi 0, %s45
    %s60 = sphi 0, %s46
    %s64 = sphi 0, %s64
    %s66 = sphi 0, %s64
    %s67 = sphi 0, %s66
    %s81 = sphi 0, %s67
    %s87 = sphi 0, %s89
    %s90 = sphi 0, %s87
    %s91 = sphi 0, %s90
    %s107 = sphi 0, %s91
  $region4: #{loco_transformer_v3_forward.4} parent=0 // loop_header_branch
    %12 = sbr.rel (%p10) target = $region8
  $region5: #{loco_transformer_v3_forward.4} parent=0 // loop_body
    %s14 = ssub.s32 %s9, 1
    %s15 = ssub.s32 %s9, 2
    %s16 = sadd.s32 %s9, 1
    %s17 = ssub.s32 %s9, %s16
    %p18 = scmp.eq.s32.totalorder %s17, 0
    %s20 = sadd.s32 %s19, 1
    %s21 = scalar_select %p18, %s19, %s20
    %p24 = pneg %p18
    %p25 = scmp.eq.s32.totalorder %s9, 1
    %p26 = por %p24, %p25
    %p27 = scmp.ne.s32.totalorder %s19, %s22
    %p28 = scmp.eq.s32.totalorder %s9, 0
    %p29 = por %p27, %p28
    %p30 = scmp.ne.s32.totalorder %s19, %s22
    %p31 = scmp.eq.s32.totalorder %s14, 1
    %p32 = por %p30, %p31
    %p33 = scmp.ne.s32.totalorder %s22, %s23
    %p34 = scmp.eq.s32.totalorder %s14, 0
    %p35 = por %p33, %p34
    %p36 = scmp.ne.s32.totalorder %s22, %s23
    %p37 = scmp.eq.s32.totalorder %s15, 1
    %p38 = por %p36, %p37
    %p40 = scmp.ne.s32.totalorder %s23, %s39
    %p41 = scmp.eq.s32.totalorder %s15, 0
    %p42 = por %p40, %p41
    %s44 = sadd.s32 %s43, 1
    %p47 = scmp.eq.s32.totalorder %s9, 1
    %p48 = scmp.ne.s32.totalorder %s43, %s45
    %p49 = scmp.eq.s32.totalorder %s9, 0
    %p50 = por %p48, %p49
    %p51 = scmp.ne.s32.totalorder %s43, %s45
    %p52 = scmp.eq.s32.totalorder %s14, 1
    %p53 = por %p51, %p52
    %p54 = scmp.ne.s32.totalorder %s45, %s46
    %p55 = scmp.eq.s32.totalorder %s14, 0
    %p56 = por %p54, %p55
    %p57 = scmp.ne.s32.totalorder %s45, %s46
    %p58 = scmp.eq.s32.totalorder %s15, 1
    %p59 = por %p57, %p58
    %p61 = scmp.ne.s32.totalorder %s46, %s60
    %p62 = scmp.eq.s32.totalorder %s15, 0
    %p63 = por %p61, %p62
    %s65 = sadd.s32 %s64, 1
    %p68 = scmp.eq.s32.totalorder %s9, 1
    %p69 = scmp.ne.s32.totalorder %s64, %s66
    %p70 = scmp.eq.s32.totalorder %s9, 0
    %p71 = por %p69, %p70
    %p72 = scmp.ne.s32.totalorder %s64, %s66
    %p73 = scmp.eq.s32.totalorder %s14, 1
    %p74 = por %p72, %p73
    %p75 = scmp.ne.s32.totalorder %s66, %s67
    %p76 = scmp.eq.s32.totalorder %s14, 0
    %p77 = por %p75, %p76
    %p78 = scmp.ne.s32.totalorder %s66, %s67
    %p79 = scmp.eq.s32.totalorder %s15, 1
    %p80 = por %p78, %p79
    %p82 = scmp.ne.s32.totalorder %s67, %s81
    %p83 = scmp.eq.s32.totalorder %s15, 0
    %p84 = por %p82, %p83
    %s85 = ssub.s32 %s9, %s16
    %p86 = scmp.eq.s32.totalorder %s85, 0
    %s88 = sadd.s32 %s87, 1
    %s89 = scalar_select %p86, %s87, %s88
    %p92 = pneg %p86
    %p93 = scmp.eq.s32.totalorder %s9, 1
    %p94 = por %p92, %p93
    %p95 = scmp.ne.s32.totalorder %s87, %s90
    %p96 = scmp.eq.s32.totalorder %s9, 0
    %p97 = por %p95, %p96
    %p98 = scmp.ne.s32.totalorder %s87, %s90
    %p99 = scmp.eq.s32.totalorder %s14, 1
    %p100 = por %p98, %p99
    %p101 = scmp.ne.s32.totalorder %s90, %s91
    %p102 = scmp.eq.s32.totalorder %s14, 0
    %p103 = por %p101, %p102
    %p104 = scmp.ne.s32.totalorder %s90, %s91
    %p105 = scmp.eq.s32.totalorder %s15, 1
    %p106 = por %p104, %p105
    %p108 = scmp.ne.s32.totalorder %s91, %s107
    %p109 = scmp.eq.s32.totalorder %s15, 0
    %p110 = por %p108, %p109
    %p111 = scmp.le.s32.totalorder 1, %s9
    %p112 = scmp.lt.s32.totalorder %s9, 3
    %p113 = pnand %p111, %p112
    %p114 = pneg %p113
    // Predicated region
    $region9: #{loco_transformer_v3_forward.4} parent=5 // pred_check
      _
    $region10: #{loco_transformer_v3_forward.4} parent=5 // pred_check_branch
      %116 = sbr.rel (%p113) target = $region12
    $region11: #{loco_transformer_v3_forward.4} parent=5 // pred_region
      %s117 = ssub.s32 %s9, 1
      // Predicated region
      $region13: #{loco_transformer_v3_forward.4} parent=11 // pred_check
        %p118 = pneg %p56
      $region14: #{loco_transformer_v3_forward.4} parent=11 // pred_check_branch
        %120 = sbr.rel (%p118) target = $region16
      $region15: #{loco_transformer_v3_forward.4} parent=11 // pred_region
        _
      $region16: #{loco_transformer_v3_forward.4} parent=11 // pred_fallthru
        _
      // Predicated region
      $region17: #{loco_transformer_v3_forward.4} parent=11 // pred_check
        %p121 = pneg %p77
      $region18: #{loco_transformer_v3_forward.4} parent=11 // pred_check_branch
        %123 = sbr.rel (%p121) target = $region20
      $region19: #{loco_transformer_v3_forward.4} parent=11 // pred_region
        _
      $region20: #{loco_transformer_v3_forward.4} parent=11 // pred_fallthru
        _
    $region12: #{loco_transformer_v3_forward.4} parent=5 // pred_fallthru
      _
    %p124 = scmp.lt.s32.totalorder %s9, 2
    // Predicated region
    $region21: #{loco_transformer_v3_forward.4} parent=5 // pred_check
      %p125 = pneg %p124
    $region22: #{loco_transformer_v3_forward.4} parent=5 // pred_check_branch
      %127 = sbr.rel (%p125) target = $region24
    $region23: #{loco_transformer_v3_forward.4} parent=5 // pred_region
      // Predicated region
      $region25: #{loco_transformer_v3_forward.4} parent=23 // pred_check
        %p128 = pneg %p29
      $region26: #{loco_transformer_v3_forward.4} parent=23 // pred_check_branch
        %130 = sbr.rel (%p128) target = $region28
      $region27: #{loco_transformer_v3_forward.4} parent=23 // pred_region
        %s131 = smul.u32 5, %s9
        %p132 = scmp.lt.s32.totalorder %s131, 9
        %s133 = scalar_select %p132, %s131, 9
        %s134 = smul.addr %s133, 4
        %s135 = smul.addr %s134, 4
        %s136 = scalar_lea.vmem %s0, %s135
        %s137 = smul.u32 5, %s9
      $region28: #{loco_transformer_v3_forward.4} parent=23 // pred_fallthru
        _
    $region24: #{loco_transformer_v3_forward.4} parent=5 // pred_fallthru
      _
    %p138 = scmp.le.s32.totalorder 1, %s9
    %p139 = scmp.lt.s32.totalorder %s9, 3
    %p140 = pnand %p138, %p139
    %p141 = pneg %p140
    // Predicated region
    $region29: #{loco_transformer_v3_forward.4} parent=5 // pred_check
      _
    $region30: #{loco_transformer_v3_forward.4} parent=5 // pred_check_branch
      %143 = sbr.rel (%p140) target = $region32
    $region31: #{loco_transformer_v3_forward.4} parent=5 // pred_region
      %s144 = ssub.s32 %s9, 1
      %s145 = smul.u32 5, %s14
      %p146 = scmp.lt.s32.totalorder %s145, 9
      %s147 = scalar_select %p146, %s145, 9
      %s148 = smul.addr %s147, 4
      %s149 = smul.addr %s148, 4
      %s150 = scalar_lea.vmem %s0, %s149
      %p151 = pneg %p35
      %p152 = pneg %p32
      %p153 = pneg %p56
      %p154 = pneg %p53
      %p155 = pneg %p77
      %p156 = pneg %p74
      %p157 = pneg %p103
      %p158 = pneg %p100
      %s159 = smul.u32 5, %s14
      %p160 = scmp.lt.s32.totalorder %s159, 9
      %s161 = scalar_select %p160, %s159, 9
      %s162 = smul.addr %s161, 4
      %s163 = scalar_lea.vmem %s3, %s162
      %s164 = smul.u32 5, %s14
      %p165 = scmp.lt.s32.totalorder %s164, 9
      %s166 = scalar_select %p165, %s164, 9
      %s167 = smul.addr %s166, 4
      %s168 = smul.addr %s167, 4
      %s169 = scalar_lea.vmem %s0, %s168
      %s170 = smul.u32 5, %s14
      %s171 = smul.u32 5, %s14
      %p172 = scmp.lt.s32.totalorder %s171, 9
      %s173 = scalar_select %p172, %s171, 9
      %s174 = smul.addr %s173, 4
      %s175 = scalar_lea.vmem %s3, %s174
      %s176 = smul.u32 5, %s14
      %v177 = vld [vmem:[%s169] sm:$0xff]
      %v178 = vld [vmem:[%s169 + $0x8] sm:$0xff]
      %v179 = vld [vmem:[%s169 + $0x10] sm:$0xff]
      %v180 = vld [vmem:[%s169 + $0x18] sm:$0xff]
      %v181 = vld [vmem:[%s169 + $0x20] sm:$0xff]
      %v182 = vld [vmem:[%s169 + $0x28] sm:$0xff]
      %v183 = vld [vmem:[%s169 + $0x30] sm:$0xff]
      %v184 = vld [vmem:[%s169 + $0x38] sm:$0xff]
      %v185 = vld [vmem:[%s169 + $0x40] sm:$0xff]
      %v186 = vld [vmem:[%s169 + $0x48] sm:$0xff]
      %v187 = vld [vmem:[%s1] sm:$0xf]
      %v188 = vld [vmem:[%s1 + $0x4] sm:$0xf]
      %v189 = vld [vmem:[%s1 + $0x8] sm:$0xf]
      %v190 = vld [vmem:[%s1 + $0xc] sm:$0xf]
      %v191 = vld [vmem:[%s1 + $0x10] sm:$0xf]
      %v192 = vld [vmem:[%s1 + $0x14] sm:$0xf]
      %v193 = vld [vmem:[%s1 + $0x18] sm:$0xf]
      %v194 = vld [vmem:[%s1 + $0x1c] sm:$0xf]
      %v195 = vld [vmem:[%s1 + $0x20] sm:$0xf]
      %v196 = vld [vmem:[%s1 + $0x24] sm:$0xf]
      %v197 = vld [vmem:[%s1 + $0x28] sm:$0xf]
      %v198 = vld [vmem:[%s1 + $0x2c] sm:$0xf]
      %v199 = vld [vmem:[%s1 + $0x30] sm:$0xf]
      %v200 = vld [vmem:[%s1 + $0x34] sm:$0xf]
      %v201 = vld [vmem:[%s1 + $0x38] sm:$0xf]
      %v202 = vld [vmem:[%s1 + $0x3c] sm:$0xf]
      %v203 = vld [vmem:[%s1 + $0x40] sm:$0xf]
      %v204 = vld [vmem:[%s1 + $0x44] sm:$0xf]
      %v205 = vld [vmem:[%s1 + $0x48] sm:$0xf]
      %v206 = vld [vmem:[%s1 + $0x4c] sm:$0xf]
      %v207 = vld [vmem:[%s1 + $0x50] sm:$0xf]
      %v208 = vld [vmem:[%s1 + $0x54] sm:$0xf]
      %v209 = vld [vmem:[%s1 + $0x58] sm:$0xf]
      %v210 = vld [vmem:[%s1 + $0x5c] sm:$0xf]
      %v211 = vld [vmem:[%s1 + $0x60] sm:$0xf]
      %v212 = vld [vmem:[%s1 + $0x64] sm:$0xf]
      %v213 = vld [vmem:[%s1 + $0x68] sm:$0xf]
      %v214 = vld [vmem:[%s1 + $0x6c] sm:$0xf]
      %v215 = vld [vmem:[%s1 + $0x70] sm:$0xf]
      %v216 = vld [vmem:[%s1 + $0x74] sm:$0xf]
      %v217 = vld [vmem:[%s1 + $0x78] sm:$0xf]
      %v218 = vld [vmem:[%s1 + $0x7c] sm:$0xf]
      %v219 = vld [vmem:[%s1 + $0x80] sm:$0xf]
      %v220 = vld [vmem:[%s1 + $0x84] sm:$0xf]
      %v221 = vld [vmem:[%s1 + $0x88] sm:$0xf]
      %v222 = vld [vmem:[%s1 + $0x8c] sm:$0xf]
      %v223 = vld [vmem:[%s1 + $0x90] sm:$0xf]
      %v224 = vld [vmem:[%s1 + $0x94] sm:$0xf]
      %v225 = vld [vmem:[%s1 + $0x98] sm:$0xf]
      %v226 = vld [vmem:[%s1 + $0x9c] sm:$0xf]
      %v227 = vld [vmem:[%s1 + $0xa0] sm:$0xf]
      %v228 = vld [vmem:[%s1 + $0xa4] sm:$0xf]
      %v229 = vld [vmem:[%s1 + $0xa8] sm:$0xf]
      %v230 = vld [vmem:[%s1 + $0xac] sm:$0xf]
      %v231 = vld [vmem:[%s1 + $0xb0] sm:$0xf]
      %v232 = vld [vmem:[%s1 + $0xb4] sm:$0xf]
      %v233 = vld [vmem:[%s1 + $0xb8] sm:$0xf]
      %v234 = vld [vmem:[%s1 + $0xbc] sm:$0xf]
      %v235 = vld [vmem:[%s1 + $0xc0] sm:$0xf]
      %v236 = vld [vmem:[%s1 + $0xc4] sm:$0xf]
      %v237 = vld [vmem:[%s1 + $0xc8] sm:$0xf]
      %v238 = vld [vmem:[%s1 + $0xcc] sm:$0xf]
      %v239 = vld [vmem:[%s1 + $0xd0] sm:$0xf]
      %v240 = vld [vmem:[%s1 + $0xd4] sm:$0xf]
      %v241 = vld [vmem:[%s1 + $0xd8] sm:$0xf]
      %v242 = vld [vmem:[%s1 + $0xdc] sm:$0xf]
      %v243 = vld [vmem:[%s1 + $0xe0] sm:$0xf]
      %v244 = vld [vmem:[%s1 + $0xe4] sm:$0xf]
      %v245 = vld [vmem:[%s1 + $0xe8] sm:$0xf]
      %v246 = vld [vmem:[%s1 + $0xec] sm:$0xf]
      %v247 = vld [vmem:[%s1 + $0xf0] sm:$0xf]
      %v248 = vld [vmem:[%s1 + $0xf4] sm:$0xf]
      %v249 = vld [vmem:[%s1 + $0xf8] sm:$0xf]
      %v250 = vld [vmem:[%s1 + $0xfc] sm:$0xf]
      %v251 = vld [vmem:[%s2] sm:$0x1]
      %v253 = vperm.slane %v251, 0
      %v265 = vunpack.c.l.b16 %v177
      %v266 = vunpack.c.h.b16 %v177
      %v267 = vunpack.c.l.b16 %v178
      %v268 = vunpack.c.h.b16 %v178
      %v269 = vunpack.c.l.b16 %v179
      %v270 = vunpack.c.h.b16 %v179
      %v271 = vunpack.c.l.b16 %v180
      %v272 = vunpack.c.h.b16 %v180
      %v273 = vunpack.c.l.b16 %v181
      %v274 = vunpack.c.h.b16 %v181
      %v275 = vunpack.c.l.b16 %v182
      %v276 = vunpack.c.h.b16 %v182
      %v277 = vunpack.c.l.b16 %v183
      %v278 = vunpack.c.h.b16 %v183
      %v279 = vunpack.c.l.b16 %v184
      %v280 = vunpack.c.h.b16 %v184
      %v281 = vunpack.c.l.b16 %v185
      %v282 = vunpack.c.h.b16 %v185
      %v283 = vunpack.c.l.b16 %v186
      %v284 = vunpack.c.h.b16 %v186
      %v285 = vpack.c.b16 %v269, %v265
      %v286 = vpack.c.b16 %v270, %v266
      %v287 = vpack.c.b16 %v271, %v267
      %v288 = vpack.c.b16 %v272, %v268
      %v289 = vpack.c.b16 %v277, %v273
      %v290 = vpack.c.b16 %v278, %v274
      %v291 = vpack.c.b16 %v279, %v275
      %v292 = vpack.c.b16 %v280, %v276
      %v293 = vpack.c.b16 %v281, %v281
      %v294 = vpack.c.b16 %v282, %v282
      %v295 = vpack.c.b16 %v283, %v283
      %v296 = vpack.c.b16 %v284, %v284
      %v373 = vunpack.c.l.b16 %v187
      %v374 = vunpack.c.l.b16 %v188
      %v375 = vunpack.c.l.b16 %v189
      %v376 = vunpack.c.l.b16 %v190
      %v377 = vunpack.c.l.b16 %v191
      %v378 = vunpack.c.l.b16 %v192
      %v379 = vunpack.c.l.b16 %v193
      %v380 = vunpack.c.l.b16 %v194
      %v381 = vunpack.c.l.b16 %v195
      %v382 = vunpack.c.l.b16 %v196
      %v383 = vunpack.c.l.b16 %v197
      %v384 = vunpack.c.l.b16 %v198
      %v385 = vunpack.c.l.b16 %v199
      %v386 = vunpack.c.l.b16 %v200
      %v387 = vunpack.c.l.b16 %v201
      %v388 = vunpack.c.l.b16 %v202
      %v389 = vunpack.c.l.b16 %v203
      %v390 = vunpack.c.l.b16 %v204
      %v391 = vunpack.c.l.b16 %v205
      %v392 = vunpack.c.l.b16 %v206
      %v393 = vunpack.c.l.b16 %v207
      %v394 = vunpack.c.l.b16 %v208
      %v395 = vunpack.c.l.b16 %v209
      %v396 = vunpack.c.l.b16 %v210
      %v397 = vunpack.c.l.b16 %v211
      %v398 = vunpack.c.l.b16 %v212
      %v399 = vunpack.c.l.b16 %v213
      %v400 = vunpack.c.l.b16 %v214
      %v401 = vunpack.c.l.b16 %v215
      %v402 = vunpack.c.l.b16 %v216
      %v403 = vunpack.c.l.b16 %v217
      %v404 = vunpack.c.l.b16 %v218
      %v405 = vunpack.c.l.b16 %v219
      %v406 = vunpack.c.l.b16 %v220
      %v407 = vunpack.c.l.b16 %v221
      %v408 = vunpack.c.l.b16 %v222
      %v409 = vunpack.c.l.b16 %v223
      %v410 = vunpack.c.l.b16 %v224
      %v411 = vunpack.c.l.b16 %v225
      %v412 = vunpack.c.l.b16 %v226
      %v413 = vunpack.c.l.b16 %v227
      %v414 = vunpack.c.l.b16 %v228
      %v415 = vunpack.c.l.b16 %v229
      %v416 = vunpack.c.l.b16 %v230
      %v417 = vunpack.c.l.b16 %v231
      %v418 = vunpack.c.l.b16 %v232
      %v419 = vunpack.c.l.b16 %v233
      %v420 = vunpack.c.l.b16 %v234
      %v421 = vunpack.c.l.b16 %v235
      %v422 = vunpack.c.l.b16 %v236
      %v423 = vunpack.c.l.b16 %v237
      %v424 = vunpack.c.l.b16 %v238
      %v425 = vunpack.c.l.b16 %v239
      %v426 = vunpack.c.l.b16 %v240
      %v427 = vunpack.c.l.b16 %v241
      %v428 = vunpack.c.l.b16 %v242
      %v429 = vunpack.c.l.b16 %v243
      %v430 = vunpack.c.l.b16 %v244
      %v431 = vunpack.c.l.b16 %v245
      %v432 = vunpack.c.l.b16 %v246
      %v433 = vunpack.c.l.b16 %v247
      %v434 = vunpack.c.l.b16 %v248
      %v435 = vunpack.c.l.b16 %v249
      %v436 = vunpack.c.l.b16 %v250
      %v437 = vpack.c.b16 %v374, %v373
      %v438 = vpack.c.b16 %v376, %v375
      %v439 = vpack.c.b16 %v378, %v377
      %v440 = vpack.c.b16 %v380, %v379
      %v441 = vpack.c.b16 %v382, %v381
      %v442 = vpack.c.b16 %v384, %v383
      %v443 = vpack.c.b16 %v386, %v385
      %v444 = vpack.c.b16 %v388, %v387
      %v445 = vpack.c.b16 %v390, %v389
      %v446 = vpack.c.b16 %v392, %v391
      %v447 = vpack.c.b16 %v394, %v393
      %v448 = vpack.c.b16 %v396, %v395
      %v449 = vpack.c.b16 %v398, %v397
      %v450 = vpack.c.b16 %v400, %v399
      %v451 = vpack.c.b16 %v402, %v401
      %v452 = vpack.c.b16 %v404, %v403
      %v453 = vpack.c.b16 %v406, %v405
      %v454 = vpack.c.b16 %v408, %v407
      %v455 = vpack.c.b16 %v410, %v409
      %v456 = vpack.c.b16 %v412, %v411
      %v457 = vpack.c.b16 %v414, %v413
      %v458 = vpack.c.b16 %v416, %v415
      %v459 = vpack.c.b16 %v418, %v417
      %v460 = vpack.c.b16 %v420, %v419
      %v461 = vpack.c.b16 %v422, %v421
      %v462 = vpack.c.b16 %v424, %v423
      %v463 = vpack.c.b16 %v426, %v425
      %v464 = vpack.c.b16 %v428, %v427
      %v465 = vpack.c.b16 %v430, %v429
      %v466 = vpack.c.b16 %v432, %v431
      %v467 = vpack.c.b16 %v434, %v433
      %v468 = vpack.c.b16 %v436, %v435
      %501 = vmatpush.bf16.msra.mxu0 %v444
      %502 = vmatpush.bf16.msra.mxu0 %v443
      %503 = vmatpush.bf16.msra.mxu0 %v442
      %504 = vmatpush.bf16.msra.mxu0 %v441
      %505 = vmatpush.bf16.msra.mxu0 %v440
      %506 = vmatpush.bf16.msra.mxu0 %v439
      %507 = vmatpush.bf16.msra.mxu0 %v438
      %508 = vmatpush.bf16.msra.mxu0 %v437
      %509 = vmatmul.bf16.gmra.mxu0 %v285
      %v510 = vpop.f32.mrf.mxu0
      %v511 = vadd.f32 %v253, %v510
      %v512 = vpop.f32.mrf.mxu0
      %v513 = vadd.f32 %v253, %v512
      %514 = vmatmul.bf16.gmra.mxu0 %v289
      %v515 = vpop.f32.mrf.mxu0
      %v516 = vadd.f32 %v253, %v515
      %v517 = vpop.f32.mrf.mxu0
      %v518 = vadd.f32 %v253, %v517
      %519 = vmatmul.bf16.gmra.mxu0 %v293
      %v520 = vpop.f32.mrf.mxu0
      %v521 = vadd.f32 %v253, %v520
      %v522 = vpop.f32.mrf.mxu0
      %523 = vdwg.mxu0
      %524 = vmatpush.bf16.msra.mxu0 %v452
      %525 = vmatpush.bf16.msra.mxu0 %v451
      %526 = vmatpush.bf16.msra.mxu0 %v450
      %527 = vmatpush.bf16.msra.mxu0 %v449
      %528 = vmatpush.bf16.msra.mxu0 %v448
      %529 = vmatpush.bf16.msra.mxu0 %v447
      %530 = vmatpush.bf16.msra.mxu0 %v446
      %531 = vmatpush.bf16.msra.mxu0 %v445
      %532 = vmatmul.bf16.gmra.mxu0 %v286
      %v533 = vpop.f32.mrf.mxu0
      %v534 = vadd.f32 %v511, %v533
      %v535 = vpop.f32.mrf.mxu0
      %v536 = vadd.f32 %v513, %v535
      %537 = vmatmul.bf16.gmra.mxu0 %v290
      %v538 = vpop.f32.mrf.mxu0
      %v539 = vadd.f32 %v516, %v538
      %v540 = vpop.f32.mrf.mxu0
      %v541 = vadd.f32 %v518, %v540
      %542 = vmatmul.bf16.gmra.mxu0 %v294
      %v543 = vpop.f32.mrf.mxu0
      %v544 = vadd.f32 %v521, %v543
      %v545 = vpop.f32.mrf.mxu0
      %546 = vdwg.mxu0
      %547 = vmatpush.bf16.msra.mxu0 %v460
      %548 = vmatpush.bf16.msra.mxu0 %v459
      %549 = vmatpush.bf16.msra.mxu0 %v458
      %550 = vmatpush.bf16.msra.mxu0 %v457
      %551 = vmatpush.bf16.msra.mxu0 %v456
      %552 = vmatpush.bf16.msra.mxu0 %v455
      %553 = vmatpush.bf16.msra.mxu0 %v454
      %554 = vmatpush.bf16.msra.mxu0 %v453
      %555 = vmatmul.bf16.gmra.mxu0 %v287
      %v556 = vpop.f32.mrf.mxu0
      %v557 = vadd.f32 %v534, %v556
      %v558 = vpop.f32.mrf.mxu0
      %v559 = vadd.f32 %v536, %v558
      %560 = vmatmul.bf16.gmra.mxu0 %v291
      %v561 = vpop.f32.mrf.mxu0
      %v562 = vadd.f32 %v539, %v561
      %v563 = vpop.f32.mrf.mxu0
      %v564 = vadd.f32 %v541, %v563
      %565 = vmatmul.bf16.gmra.mxu0 %v295
      %v566 = vpop.f32.mrf.mxu0
      %v567 = vadd.f32 %v544, %v566
      %v568 = vpop.f32.mrf.mxu0
      %569 = vdwg.mxu0
      %570 = vmatpush.bf16.msra.mxu0 %v468
      %571 = vmatpush.bf16.msra.mxu0 %v467
      %572 = vmatpush.bf16.msra.mxu0 %v466
      %573 = vmatpush.bf16.msra.mxu0 %v465
      %574 = vmatpush.bf16.msra.mxu0 %v464
      %575 = vmatpush.bf16.msra.mxu0 %v463
      %576 = vmatpush.bf16.msra.mxu0 %v462
      %577 = vmatpush.bf16.msra.mxu0 %v461
      %578 = vmatmul.bf16.gmra.mxu0 %v288
      %v579 = vpop.f32.mrf.mxu0
      %v580 = vadd.f32 %v557, %v579
      %v581 = vpop.f32.mrf.mxu0
      %v582 = vadd.f32 %v559, %v581
      %583 = vmatmul.bf16.gmra.mxu0 %v292
      %v584 = vpop.f32.mrf.mxu0
      %v585 = vadd.f32 %v562, %v584
      %v586 = vpop.f32.mrf.mxu0
      %v587 = vadd.f32 %v564, %v586
      %588 = vmatmul.bf16.gmra.mxu0 %v296
      %v589 = vpop.f32.mrf.mxu0
      %v590 = vadd.f32 %v567, %v589
      %v591 = vpop.f32.mrf.mxu0
      %592 = vdwg.mxu0
      %v593 = vmax.f32 %v580, 0.0
      %v594 = vmax.f32 %v582, 0.0
      %v595 = vmax.f32 %v585, 0.0
      %v596 = vmax.f32 %v587, 0.0
      %v597 = vmax.f32 %v590, 0.0
      %v598 = vpack.c.bf16 %v593, %v593
      %v599 = vpack.c.bf16 %v594, %v594
      %v600 = vpack.c.bf16 %v595, %v595
      %v601 = vpack.c.bf16 %v596, %v596
      %v602 = vpack.c.bf16 %v597, %v597
      %vm603 = vcmask 519168
      %604 = vst.msk [vmem:[%s175] sm:$0xf] %vm603, %v598
      %605 = vst.msk [vmem:[%s175 + $0x4] sm:$0xf] %vm603, %v599
      %606 = vst.msk [vmem:[%s175 + $0x8] sm:$0xf] %vm603, %v600
      %607 = vst.msk [vmem:[%s175 + $0xc] sm:$0xf] %vm603, %v601
      %608 = vst.msk [vmem:[%s175 + $0x10] sm:$0xf] %vm603, %v602
      %s609 = smul.u32 5, %s14
      %p610 = scmp.lt.s32.totalorder %s609, 9
      %s611 = scalar_select %p610, %s609, 9
      %s612 = smul.addr %s611, 4
      %s613 = scalar_lea.vmem %s3, %s612
      // Predicated region
      $region33: #{loco_transformer_v3_forward.4} parent=31 // pred_check
        %p614 = pneg %p100
      $region34: #{loco_transformer_v3_forward.4} parent=31 // pred_check_branch
        %616 = sbr.rel (%p614) target = $region36
      $region35: #{loco_transformer_v3_forward.4} parent=31 // pred_region
        %s617 = smul.u32 5, %s14
      $region36: #{loco_transformer_v3_forward.4} parent=31 // pred_fallthru
        _
    $region32: #{loco_transformer_v3_forward.4} parent=5 // pred_fallthru
      _
    %p618 = scmp.le.s32.totalorder 2, %s9
    // Predicated region
    $region37: #{loco_transformer_v3_forward.4} parent=5 // pred_check
      %p619 = pneg %p618
    $region38: #{loco_transformer_v3_forward.4} parent=5 // pred_check_branch
      %621 = sbr.rel (%p619) target = $region40
    $region39: #{loco_transformer_v3_forward.4} parent=5 // pred_region
      %s622 = ssub.s32 %s9, 2
      // Predicated region
      $region41: #{loco_transformer_v3_forward.4} parent=39 // pred_check
        %p623 = pneg %p106
      $region42: #{loco_transformer_v3_forward.4} parent=39 // pred_check_branch
        %625 = sbr.rel (%p623) target = $region44
      $region43: #{loco_transformer_v3_forward.4} parent=39 // pred_region
        %s626 = smul.u32 5, %s15
        %p627 = scmp.lt.s32.totalorder %s626, 9
        %s628 = scalar_select %p627, %s626, 9
        %s629 = smul.addr %s628, 4
        %s630 = scalar_lea.vmem %s3, %s629
      $region44: #{loco_transformer_v3_forward.4} parent=39 // pred_fallthru
        _
    $region40: #{loco_transformer_v3_forward.4} parent=5 // pred_fallthru
      _
  $region6: #{loco_transformer_v3_forward.4} parent=0 // loop_footer
    %s13 = sadd.s32 1, %s9
  $region7: #{loco_transformer_v3_forward.4} parent=0 // loop_footer_branch
    %8 = sbr.rel target = $region3
  $region8: #{loco_transformer_v3_forward.4} parent=0 // loop_exit
    _

// kernel: loco_transformer_v3_forward.5
$region0: #{loco_transformer_v3_forward.5}
  #allocation0 [shape = 'u32[]', space=smem, size = 0x4, offset = 0x4, fixed_abs, tag = 'smem constant byte address 0x4 - core index']
  #allocation1 [shape = 'u32[72,128]{1,0:T(1,128)}', space=vmem, size = 0x9000, scoped, tag = 'internal scratch']
  %s0 = inlined_call_operand.smem [shape: u32[31], index: -1, kind: input, shape index: {}]
  %s1 = sld [smem:[%s0]]
  %s2 = scalar_lea.smem %s0, 1
  %s3 = sld [smem:[%s2]]
  %s4 = scalar_lea.smem %s0, 2
  %s5 = sld [smem:[%s4]]
  %s6 = scalar_lea.smem %s0, 3
  %s7 = sld [smem:[%s6]]
  %s8 = scalar_lea.smem %s0, 4
  %s9 = sld [smem:[%s8]]
  %s10 = scalar_lea.smem %s0, 5
  %s11 = sld [smem:[%s10]]
  %s12 = scalar_lea.smem %s0, 6
  %s13 = sld [smem:[%s12]]
  %s14 = scalar_lea.smem %s0, 7
  %s15 = sld [smem:[%s14]]
  %s16 = scalar_lea.smem %s0, 8
  %s17 = sld [smem:[%s16]]
  %s18 = scalar_lea.smem %s0, 9
  %s19 = sld [smem:[%s18]]
  %s20 = scalar_lea.smem %s0, 10
  %s21 = sld [smem:[%s20]]
  %s22 = scalar_lea.smem %s0, 11
  %s23 = sld [smem:[%s22]]
  %s24 = scalar_lea.smem %s0, 12
  %s25 = sld [smem:[%s24]]
  %s26 = scalar_lea.smem %s0, 13
  %s27 = sld [smem:[%s26]]
  %s28 = scalar_lea.smem %s0, 14
  %s29 = sld [smem:[%s28]]
  %s30 = scalar_lea.smem %s0, 15
  %s31 = sld [smem:[%s30]]
  %s32 = scalar_lea.smem %s0, 16
  %s33 = sld [smem:[%s32]]
  %s34 = scalar_lea.smem %s0, 17
  %s35 = sld [smem:[%s34]]
  %s36 = scalar_lea.smem %s0, 18
  %s37 = sld [smem:[%s36]]
  %s38 = scalar_lea.smem %s0, 19
  %s39 = sld [smem:[%s38]]
  %s40 = scalar_lea.smem %s0, 20
  %s41 = sld [smem:[%s40]]
  %s42 = scalar_lea.smem %s0, 21
  %s43 = sld [smem:[%s42]]
  %s44 = scalar_lea.smem %s0, 22
  %s45 = sld [smem:[%s44]]
  %s46 = scalar_lea.smem %s0, 23
  %s47 = sld [smem:[%s46]]
  %s48 = scalar_lea.smem %s0, 24
  %s49 = sld [smem:[%s48]]
  %s50 = scalar_lea.smem %s0, 25
  %s51 = sld [smem:[%s50]]
  %s52 = scalar_lea.smem %s0, 26
  %s53 = sld [smem:[%s52]]
  %s54 = scalar_lea.smem %s0, 27
  %s55 = sld [smem:[%s54]]
  %s56 = scalar_lea.smem %s0, 28
  %s57 = sld [smem:[%s56]]
  %s58 = scalar_lea.smem %s0, 29
  %s59 = sld [smem:[%s58]]
  %s60 = scalar_lea.smem %s0, 30
  %s61 = sld [smem:[%s60]]
  %s62 = sld [smem:[#allocation0]]
  $region153: #{loco_transformer_v3_forward.5} parent=0
    _
  %s64 = ssub.s32 1, %s62
  %s65 = scalar_select 0, %s64, %s62
  $region1: #{loco_transformer_v3_forward.5} parent=0
    #allocation2 [shape = 'u8[1024]{0}', space=vmem, size = 0x400, scoped, tag = 'output window, operand 0']
    #allocation3 [shape = 's32[2]{0}', space=sflag, size = 0x8, scoped, tag = 'scoped memory for loco_transformer_v3_forward.5']
    %66 = vsyncpa [#allocation3], 0
    %s67 = scalar_lea.sflag [#allocation3], 1
    %68 = vsyncpa %s67, 0
    loop: start=0, step=1, limit=4
    $region2: #{loco_transformer_v3_forward.5} parent=1 // loop_pre_header
      _
    $region3: #{loco_transformer_v3_forward.5} parent=1 // loop_header
      %s70 = sphi 0, %s74
      %p71 = scmp.ge.s32.totalorder %s70, 4
      %s80 = sphi 0, %s82
      %s83 = sphi 0, %s80
      %s84 = sphi 0, %s83
      %s100 = sphi 0, %s84
      %s106 = sphi 0, %s108
      %s109 = sphi 0, %s106
      %s110 = sphi 0, %s109
      %s126 = sphi 0, %s110
      %s130 = sphi 0, %s130
      %s132 = sphi 0, %s130
      %s133 = sphi 0, %s132
      %s147 = sphi 0, %s133
      %s151 = sphi 0, %s151
      %s153 = sphi 0, %s151
      %s154 = sphi 0, %s153
      %s168 = sphi 0, %s154
      %s172 = sphi 0, %s172
      %s174 = sphi 0, %s172
      %s175 = sphi 0, %s174
      %s189 = sphi 0, %s175
      %s193 = sphi 0, %s193
      %s195 = sphi 0, %s193
      %s196 = sphi 0, %s195
      %s210 = sphi 0, %s196
      %s214 = sphi 0, %s214
      %s216 = sphi 0, %s214
      %s217 = sphi 0, %s216
      %s231 = sphi 0, %s217
      %s235 = sphi 0, %s235
      %s237 = sphi 0, %s235
      %s238 = sphi 0, %s237
      %s252 = sphi 0, %s238
      %s256 = sphi 0, %s256
      %s258 = sphi 0, %s256
      %s259 = sphi 0, %s258
      %s273 = sphi 0, %s259
      %s277 = sphi 0, %s277
      %s279 = sphi 0, %s277
      %s280 = sphi 0, %s279
      %s294 = sphi 0, %s280
      %s298 = sphi 0, %s298
      %s300 = sphi 0, %s298
      %s301 = sphi 0, %s300
      %s315 = sphi 0, %s301
      %s319 = sphi 0, %s319
      %s321 = sphi 0, %s319
      %s322 = sphi 0, %s321
      %s336 = sphi 0, %s322
      %s340 = sphi 0, %s340
      %s342 = sphi 0, %s340
      %s343 = sphi 0, %s342
      %s357 = sphi 0, %s343
      %s361 = sphi 0, %s361
      %s363 = sphi 0, %s361
      %s364 = sphi 0, %s363
      %s378 = sphi 0, %s364
      %s382 = sphi 0, %s382
      %s384 = sphi 0, %s382
      %s385 = sphi 0, %s384
      %s399 = sphi 0, %s385
      %s403 = sphi 0, %s403
      %s405 = sphi 0, %s403
      %s406 = sphi 0, %s405
      %s420 = sphi 0, %s406
      %s424 = sphi 0, %s424
      %s426 = sphi 0, %s424
      %s427 = sphi 0, %s426
      %s441 = sphi 0, %s427
      %s445 = sphi 0, %s445
      %s447 = sphi 0, %s445
      %s448 = sphi 0, %s447
      %s462 = sphi 0, %s448
      %s466 = sphi 0, %s466
      %s468 = sphi 0, %s466
      %s469 = sphi 0, %s468
      %s483 = sphi 0, %s469
      %s487 = sphi 0, %s487
      %s489 = sphi 0, %s487
      %s490 = sphi 0, %s489
      %s504 = sphi 0, %s490
      %s508 = sphi 0, %s508
      %s510 = sphi 0, %s508
      %s511 = sphi 0, %s510
      %s525 = sphi 0, %s511
      %s529 = sphi 0, %s529
      %s531 = sphi 0, %s529
      %s532 = sphi 0, %s531
      %s546 = sphi 0, %s532
      %s550 = sphi 0, %s550
      %s552 = sphi 0, %s550
      %s553 = sphi 0, %s552
      %s567 = sphi 0, %s553
      %s571 = sphi 0, %s571
      %s573 = sphi 0, %s571
      %s574 = sphi 0, %s573
      %s588 = sphi 0, %s574
      %s592 = sphi 0, %s592
      %s594 = sphi 0, %s592
      %s595 = sphi 0, %s594
      %s609 = sphi 0, %s595
      %s613 = sphi 0, %s613
      %s615 = sphi 0, %s613
      %s616 = sphi 0, %s615
      %s630 = sphi 0, %s616
      %s634 = sphi 0, %s634
      %s636 = sphi 0, %s634
      %s637 = sphi 0, %s636
      %s651 = sphi 0, %s637
      %s655 = sphi 0, %s655
      %s657 = sphi 0, %s655
      %s658 = sphi 0, %s657
      %s672 = sphi 0, %s658
      %s676 = sphi 0, %s676
      %s678 = sphi 0, %s676
      %s679 = sphi 0, %s678
      %s693 = sphi 0, %s679
      %s697 = sphi 0, %s697
      %s699 = sphi 0, %s697
      %s700 = sphi 0, %s699
      %s714 = sphi 0, %s700
      %s720 = sphi 0, %s722
      %s723 = sphi 0, %s720
      %s724 = sphi 0, %s723
      %s740 = sphi 0, %s724
    $region4: #{loco_transformer_v3_forward.5} parent=1 // loop_header_branch
      %73 = sbr.rel (%p71) target = $region8
    $region5: #{loco_transformer_v3_forward.5} parent=1 // loop_body
      %s75 = ssub.s32 %s70, 1
      %s76 = ssub.s32 %s70, 2
      %s77 = sadd.s32 %s70, 1
      %s78 = ssub.s32 %s70, %s77
      %p79 = scmp.eq.s32.totalorder %s78, 0
      %s81 = sadd.s32 %s80, 1
      %s82 = scalar_select %p79, %s80, %s81
      %p85 = pneg %p79
      %p86 = scmp.eq.s32.totalorder %s70, 1
      %p87 = por %p85, %p86
      %p88 = scmp.ne.s32.totalorder %s80, %s83
      %p89 = scmp.eq.s32.totalorder %s70, 0
      %p90 = por %p88, %p89
      %p91 = scmp.ne.s32.totalorder %s80, %s83
      %p92 = scmp.eq.s32.totalorder %s75, 1
      %p93 = por %p91, %p92
      %p94 = scmp.ne.s32.totalorder %s83, %s84
      %p95 = scmp.eq.s32.totalorder %s75, 0
      %p96 = por %p94, %p95
      %p97 = scmp.ne.s32.totalorder %s83, %s84
      %p98 = scmp.eq.s32.totalorder %s76, 1
      %p99 = por %p97, %p98
      %p101 = scmp.ne.s32.totalorder %s84, %s100
      %p102 = scmp.eq.s32.totalorder %s76, 0
      %p103 = por %p101, %p102
      %s104 = ssub.s32 %s70, %s77
      %p105 = scmp.eq.s32.totalorder %s104, 0
      %s107 = sadd.s32 %s106, 1
      %s108 = scalar_select %p105, %s106, %s107
      %p111 = pneg %p105
      %p112 = scmp.eq.s32.totalorder %s70, 1
      %p113 = por %p111, %p112
      %p114 = scmp.ne.s32.totalorder %s106, %s109
      %p115 = scmp.eq.s32.totalorder %s70, 0
      %p116 = por %p114, %p115
      %p117 = scmp.ne.s32.totalorder %s106, %s109
      %p118 = scmp.eq.s32.totalorder %s75, 1
      %p119 = por %p117, %p118
      %p120 = scmp.ne.s32.totalorder %s109, %s110
      %p121 = scmp.eq.s32.totalorder %s75, 0
      %p122 = por %p120, %p121
      %p123 = scmp.ne.s32.totalorder %s109, %s110
      %p124 = scmp.eq.s32.totalorder %s76, 1
      %p125 = por %p123, %p124
      %p127 = scmp.ne.s32.totalorder %s110, %s126
      %p128 = scmp.eq.s32.totalorder %s76, 0
      %p129 = por %p127, %p128
      %s131 = sadd.s32 %s130, 1
      %p134 = scmp.eq.s32.totalorder %s70, 1
      %p135 = scmp.ne.s32.totalorder %s130, %s132
      %p136 = scmp.eq.s32.totalorder %s70, 0
      %p137 = por %p135, %p136
      %p138 = scmp.ne.s32.totalorder %s130, %s132
      %p139 = scmp.eq.s32.totalorder %s75, 1
      %p140 = por %p138, %p139
      %p141 = scmp.ne.s32.totalorder %s132, %s133
      %p142 = scmp.eq.s32.totalorder %s75, 0
      %p143 = por %p141, %p142
      %p144 = scmp.ne.s32.totalorder %s132, %s133
      %p145 = scmp.eq.s32.totalorder %s76, 1
      %p146 = por %p144, %p145
      %p148 = scmp.ne.s32.totalorder %s133, %s147
      %p149 = scmp.eq.s32.totalorder %s76, 0
      %p150 = por %p148, %p149
      %s152 = sadd.s32 %s151, 1
      %p155 = scmp.eq.s32.totalorder %s70, 1
      %p156 = scmp.ne.s32.totalorder %s151, %s153
      %p157 = scmp.eq.s32.totalorder %s70, 0
      %p158 = por %p156, %p157
      %p159 = scmp.ne.s32.totalorder %s151, %s153
      %p160 = scmp.eq.s32.totalorder %s75, 1
      %p161 = por %p159, %p160
      %p162 = scmp.ne.s32.totalorder %s153, %s154
      %p163 = scmp.eq.s32.totalorder %s75, 0
      %p164 = por %p162, %p163
      %p165 = scmp.ne.s32.totalorder %s153, %s154
      %p166 = scmp.eq.s32.totalorder %s76, 1
      %p167 = por %p165, %p166
      %p169 = scmp.ne.s32.totalorder %s154, %s168
      %p170 = scmp.eq.s32.totalorder %s76, 0
      %p171 = por %p169, %p170
      %s173 = sadd.s32 %s172, 1
      %p176 = scmp.eq.s32.totalorder %s70, 1
      %p177 = scmp.ne.s32.totalorder %s172, %s174
      %p178 = scmp.eq.s32.totalorder %s70, 0
      %p179 = por %p177, %p178
      %p180 = scmp.ne.s32.totalorder %s172, %s174
      %p181 = scmp.eq.s32.totalorder %s75, 1
      %p182 = por %p180, %p181
      %p183 = scmp.ne.s32.totalorder %s174, %s175
      %p184 = scmp.eq.s32.totalorder %s75, 0
      %p185 = por %p183, %p184
      %p186 = scmp.ne.s32.totalorder %s174, %s175
      %p187 = scmp.eq.s32.totalorder %s76, 1
      %p188 = por %p186, %p187
      %p190 = scmp.ne.s32.totalorder %s175, %s189
      %p191 = scmp.eq.s32.totalorder %s76, 0
      %p192 = por %p190, %p191
      %s194 = sadd.s32 %s193, 1
      %p197 = scmp.eq.s32.totalorder %s70, 1
      %p198 = scmp.ne.s32.totalorder %s193, %s195
      %p199 = scmp.eq.s32.totalorder %s70, 0
      %p200 = por %p198, %p199
      %p201 = scmp.ne.s32.totalorder %s193, %s195
      %p202 = scmp.eq.s32.totalorder %s75, 1
      %p203 = por %p201, %p202
      %p204 = scmp.ne.s32.totalorder %s195, %s196
      %p205 = scmp.eq.s32.totalorder %s75, 0
      %p206 = por %p204, %p205
      %p207 = scmp.ne.s32.totalorder %s195, %s196
      %p208 = scmp.eq.s32.totalorder %s76, 1
      %p209 = por %p207, %p208
      %p211 = scmp.ne.s32.totalorder %s196, %s210
      %p212 = scmp.eq.s32.totalorder %s76, 0
      %p213 = por %p211, %p212
      %s215 = sadd.s32 %s214, 1
      %p218 = scmp.eq.s32.totalorder %s70, 1
      %p219 = scmp.ne.s32.totalorder %s214, %s216
      %p220 = scmp.eq.s32.totalorder %s70, 0
      %p221 = por %p219, %p220
      %p222 = scmp.ne.s32.totalorder %s214, %s216
      %p223 = scmp.eq.s32.totalorder %s75, 1
      %p224 = por %p222, %p223
      %p225 = scmp.ne.s32.totalorder %s216, %s217
      %p226 = scmp.eq.s32.totalorder %s75, 0
      %p227 = por %p225, %p226
      %p228 = scmp.ne.s32.totalorder %s216, %s217
      %p229 = scmp.eq.s32.totalorder %s76, 1
      %p230 = por %p228, %p229
      %p232 = scmp.ne.s32.totalorder %s217, %s231
      %p233 = scmp.eq.s32.totalorder %s76, 0
      %p234 = por %p232, %p233
      %s236 = sadd.s32 %s235, 1
      %p239 = scmp.eq.s32.totalorder %s70, 1
      %p240 = scmp.ne.s32.totalorder %s235, %s237
      %p241 = scmp.eq.s32.totalorder %s70, 0
      %p242 = por %p240, %p241
      %p243 = scmp.ne.s32.totalorder %s235, %s237
      %p244 = scmp.eq.s32.totalorder %s75, 1
      %p245 = por %p243, %p244
      %p246 = scmp.ne.s32.totalorder %s237, %s238
      %p247 = scmp.eq.s32.totalorder %s75, 0
      %p248 = por %p246, %p247
      %p249 = scmp.ne.s32.totalorder %s237, %s238
      %p250 = scmp.eq.s32.totalorder %s76, 1
      %p251 = por %p249, %p250
      %p253 = scmp.ne.s32.totalorder %s238, %s252
      %p254 = scmp.eq.s32.totalorder %s76, 0
      %p255 = por %p253, %p254
      %s257 = sadd.s32 %s256, 1
      %p260 = scmp.eq.s32.totalorder %s70, 1
      %p261 = scmp.ne.s32.totalorder %s256, %s258
      %p262 = scmp.eq.s32.totalorder %s70, 0
      %p263 = por %p261, %p262
      %p264 = scmp.ne.s32.totalorder %s256, %s258
      %p265 = scmp.eq.s32.totalorder %s75, 1
      %p266 = por %p264, %p265
      %p267 = scmp.ne.s32.totalorder %s258, %s259
      %p268 = scmp.eq.s32.totalorder %s75, 0
      %p269 = por %p267, %p268
      %p270 = scmp.ne.s32.totalorder %s258, %s259
      %p271 = scmp.eq.s32.totalorder %s76, 1
      %p272 = por %p270, %p271
      %p274 = scmp.ne.s32.totalorder %s259, %s273
      %p275 = scmp.eq.s32.totalorder %s76, 0
      %p276 = por %p274, %p275
      %s278 = sadd.s32 %s277, 1
      %p281 = scmp.eq.s32.totalorder %s70, 1
      %p282 = scmp.ne.s32.totalorder %s277, %s279
      %p283 = scmp.eq.s32.totalorder %s70, 0
      %p284 = por %p282, %p283
      %p285 = scmp.ne.s32.totalorder %s277, %s279
      %p286 = scmp.eq.s32.totalorder %s75, 1
      %p287 = por %p285, %p286
      %p288 = scmp.ne.s32.totalorder %s279, %s280
      %p289 = scmp.eq.s32.totalorder %s75, 0
      %p290 = por %p288, %p289
      %p291 = scmp.ne.s32.totalorder %s279, %s280
      %p292 = scmp.eq.s32.totalorder %s76, 1
      %p293 = por %p291, %p292
      %p295 = scmp.ne.s32.totalorder %s280, %s294
      %p296 = scmp.eq.s32.totalorder %s76, 0
      %p297 = por %p295, %p296
      %s299 = sadd.s32 %s298, 1
      %p302 = scmp.eq.s32.totalorder %s70, 1
      %p303 = scmp.ne.s32.totalorder %s298, %s300
      %p304 = scmp.eq.s32.totalorder %s70, 0
      %p305 = por %p303, %p304
      %p306 = scmp.ne.s32.totalorder %s298, %s300
      %p307 = scmp.eq.s32.totalorder %s75, 1
      %p308 = por %p306, %p307
      %p309 = scmp.ne.s32.totalorder %s300, %s301
      %p310 = scmp.eq.s32.totalorder %s75, 0
      %p311 = por %p309, %p310
      %p312 = scmp.ne.s32.totalorder %s300, %s301
      %p313 = scmp.eq.s32.totalorder %s76, 1
      %p314 = por %p312, %p313
      %p316 = scmp.ne.s32.totalorder %s301, %s315
      %p317 = scmp.eq.s32.totalorder %s76, 0
      %p318 = por %p316, %p317
      %s320 = sadd.s32 %s319, 1
      %p323 = scmp.eq.s32.totalorder %s70, 1
      %p324 = scmp.ne.s32.totalorder %s319, %s321
      %p325 = scmp.eq.s32.totalorder %s70, 0
      %p326 = por %p324, %p325
      %p327 = scmp.ne.s32.totalorder %s319, %s321
      %p328 = scmp.eq.s32.totalorder %s75, 1
      %p329 = por %p327, %p328
      %p330 = scmp.ne.s32.totalorder %s321, %s322
      %p331 = scmp.eq.s32.totalorder %s75, 0
      %p332 = por %p330, %p331
      %p333 = scmp.ne.s32.totalorder %s321, %s322
      %p334 = scmp.eq.s32.totalorder %s76, 1
      %p335 = por %p333, %p334
      %p337 = scmp.ne.s32.totalorder %s322, %s336
      %p338 = scmp.eq.s32.totalorder %s76, 0
      %p339 = por %p337, %p338
      %s341 = sadd.s32 %s340, 1
      %p344 = scmp.eq.s32.totalorder %s70, 1
      %p345 = scmp.ne.s32.totalorder %s340, %s342
      %p346 = scmp.eq.s32.totalorder %s70, 0
      %p347 = por %p345, %p346
      %p348 = scmp.ne.s32.totalorder %s340, %s342
      %p349 = scmp.eq.s32.totalorder %s75, 1
      %p350 = por %p348, %p349
      %p351 = scmp.ne.s32.totalorder %s342, %s343
      %p352 = scmp.eq.s32.totalorder %s75, 0
      %p353 = por %p351, %p352
      %p354 = scmp.ne.s32.totalorder %s342, %s343
      %p355 = scmp.eq.s32.totalorder %s76, 1
      %p356 = por %p354, %p355
      %p358 = scmp.ne.s32.totalorder %s343, %s357
      %p359 = scmp.eq.s32.totalorder %s76, 0
      %p360 = por %p358, %p359
      %s362 = sadd.s32 %s361, 1
      %p365 = scmp.eq.s32.totalorder %s70, 1
      %p366 = scmp.ne.s32.totalorder %s361, %s363
      %p367 = scmp.eq.s32.totalorder %s70, 0
      %p368 = por %p366, %p367
      %p369 = scmp.ne.s32.totalorder %s361, %s363
      %p370 = scmp.eq.s32.totalorder %s75, 1
      %p371 = por %p369, %p370
      %p372 = scmp.ne.s32.totalorder %s363, %s364
      %p373 = scmp.eq.s32.totalorder %s75, 0
      %p374 = por %p372, %p373
      %p375 = scmp.ne.s32.totalorder %s363, %s364
      %p376 = scmp.eq.s32.totalorder %s76, 1
      %p377 = por %p375, %p376
      %p379 = scmp.ne.s32.totalorder %s364, %s378
      %p380 = scmp.eq.s32.totalorder %s76, 0
      %p381 = por %p379, %p380
      %s383 = sadd.s32 %s382, 1
      %p386 = scmp.eq.s32.totalorder %s70, 1
      %p387 = scmp.ne.s32.totalorder %s382, %s384
      %p388 = scmp.eq.s32.totalorder %s70, 0
      %p389 = por %p387, %p388
      %p390 = scmp.ne.s32.totalorder %s382, %s384
      %p391 = scmp.eq.s32.totalorder %s75, 1
      %p392 = por %p390, %p391
      %p393 = scmp.ne.s32.totalorder %s384, %s385
      %p394 = scmp.eq.s32.totalorder %s75, 0
      %p395 = por %p393, %p394
      %p396 = scmp.ne.s32.totalorder %s384, %s385
      %p397 = scmp.eq.s32.totalorder %s76, 1
      %p398 = por %p396, %p397
      %p400 = scmp.ne.s32.totalorder %s385, %s399
      %p401 = scmp.eq.s32.totalorder %s76, 0
      %p402 = por %p400, %p401
      %s404 = sadd.s32 %s403, 1
      %p407 = scmp.eq.s32.totalorder %s70, 1
      %p408 = scmp.ne.s32.totalorder %s403, %s405
      %p409 = scmp.eq.s32.totalorder %s70, 0
      %p410 = por %p408, %p409
      %p411 = scmp.ne.s32.totalorder %s403, %s405
      %p412 = scmp.eq.s32.totalorder %s75, 1
      %p413 = por %p411, %p412
      %p414 = scmp.ne.s32.totalorder %s405, %s406
      %p415 = scmp.eq.s32.totalorder %s75, 0
      %p416 = por %p414, %p415
      %p417 = scmp.ne.s32.totalorder %s405, %s406
      %p418 = scmp.eq.s32.totalorder %s76, 1
      %p419 = por %p417, %p418
      %p421 = scmp.ne.s32.totalorder %s406, %s420
      %p422 = scmp.eq.s32.totalorder %s76, 0
      %p423 = por %p421, %p422
      %s425 = sadd.s32 %s424, 1
      %p428 = scmp.eq.s32.totalorder %s70, 1
      %p429 = scmp.ne.s32.totalorder %s424, %s426
      %p430 = scmp.eq.s32.totalorder %s70, 0
      %p431 = por %p429, %p430
      %p432 = scmp.ne.s32.totalorder %s424, %s426
      %p433 = scmp.eq.s32.totalorder %s75, 1
      %p434 = por %p432, %p433
      %p435 = scmp.ne.s32.totalorder %s426, %s427
      %p436 = scmp.eq.s32.totalorder %s75, 0
      %p437 = por %p435, %p436
      %p438 = scmp.ne.s32.totalorder %s426, %s427
      %p439 = scmp.eq.s32.totalorder %s76, 1
      %p440 = por %p438, %p439
      %p442 = scmp.ne.s32.totalorder %s427, %s441
      %p443 = scmp.eq.s32.totalorder %s76, 0
      %p444 = por %p442, %p443
      %s446 = sadd.s32 %s445, 1
      %p449 = scmp.eq.s32.totalorder %s70, 1
      %p450 = scmp.ne.s32.totalorder %s445, %s447
      %p451 = scmp.eq.s32.totalorder %s70, 0
      %p452 = por %p450, %p451
      %p453 = scmp.ne.s32.totalorder %s445, %s447
      %p454 = scmp.eq.s32.totalorder %s75, 1
      %p455 = por %p453, %p454
      %p456 = scmp.ne.s32.totalorder %s447, %s448
      %p457 = scmp.eq.s32.totalorder %s75, 0
      %p458 = por %p456, %p457
      %p459 = scmp.ne.s32.totalorder %s447, %s448
      %p460 = scmp.eq.s32.totalorder %s76, 1
      %p461 = por %p459, %p460
      %p463 = scmp.ne.s32.totalorder %s448, %s462
      %p464 = scmp.eq.s32.totalorder %s76, 0
      %p465 = por %p463, %p464
      %s467 = sadd.s32 %s466, 1
      %p470 = scmp.eq.s32.totalorder %s70, 1
      %p471 = scmp.ne.s32.totalorder %s466, %s468
      %p472 = scmp.eq.s32.totalorder %s70, 0
      %p473 = por %p471, %p472
      %p474 = scmp.ne.s32.totalorder %s466, %s468
      %p475 = scmp.eq.s32.totalorder %s75, 1
      %p476 = por %p474, %p475
      %p477 = scmp.ne.s32.totalorder %s468, %s469
      %p478 = scmp.eq.s32.totalorder %s75, 0
      %p479 = por %p477, %p478
      %p480 = scmp.ne.s32.totalorder %s468, %s469
      %p481 = scmp.eq.s32.totalorder %s76, 1
      %p482 = por %p480, %p481
      %p484 = scmp.ne.s32.totalorder %s469, %s483
      %p485 = scmp.eq.s32.totalorder %s76, 0
      %p486 = por %p484, %p485
      %s488 = sadd.s32 %s487, 1
      %p491 = scmp.eq.s32.totalorder %s70, 1
      %p492 = scmp.ne.s32.totalorder %s487, %s489
      %p493 = scmp.eq.s32.totalorder %s70, 0
      %p494 = por %p492, %p493
      %p495 = scmp.ne.s32.totalorder %s487, %s489
      %p496 = scmp.eq.s32.totalorder %s75, 1
      %p497 = por %p495, %p496
      %p498 = scmp.ne.s32.totalorder %s489, %s490
      %p499 = scmp.eq.s32.totalorder %s75, 0
      %p500 = por %p498, %p499
      %p501 = scmp.ne.s32.totalorder %s489, %s490
      %p502 = scmp.eq.s32.totalorder %s76, 1
      %p503 = por %p501, %p502
      %p505 = scmp.ne.s32.totalorder %s490, %s504
      %p506 = scmp.eq.s32.totalorder %s76, 0
      %p507 = por %p505, %p506
      %s509 = sadd.s32 %s508, 1
      %p512 = scmp.eq.s32.totalorder %s70, 1
      %p513 = scmp.ne.s32.totalorder %s508, %s510
      %p514 = scmp.eq.s32.totalorder %s70, 0
      %p515 = por %p513, %p514
      %p516 = scmp.ne.s32.totalorder %s508, %s510
      %p517 = scmp.eq.s32.totalorder %s75, 1
      %p518 = por %p516, %p517
      %p519 = scmp.ne.s32.totalorder %s510, %s511
      %p520 = scmp.eq.s32.totalorder %s75, 0
      %p521 = por %p519, %p520
      %p522 = scmp.ne.s32.totalorder %s510, %s511
      %p523 = scmp.eq.s32.totalorder %s76, 1
      %p524 = por %p522, %p523
      %p526 = scmp.ne.s32.totalorder %s511, %s525
      %p527 = scmp.eq.s32.totalorder %s76, 0
      %p528 = por %p526, %p527
      %s530 = sadd.s32 %s529, 1
      %p533 = scmp.eq.s32.totalorder %s70, 1
      %p534 = scmp.ne.s32.totalorder %s529, %s531
      %p535 = scmp.eq.s32.totalorder %s70, 0
      %p536 = por %p534, %p535
      %p537 = scmp.ne.s32.totalorder %s529, %s531
      %p538 = scmp.eq.s32.totalorder %s75, 1
      %p539 = por %p537, %p538
      %p540 = scmp.ne.s32.totalorder %s531, %s532
      %p541 = scmp.eq.s32.totalorder %s75, 0
      %p542 = por %p540, %p541
      %p543 = scmp.ne.s32.totalorder %s531, %s532
      %p544 = scmp.eq.s32.totalorder %s76, 1
      %p545 = por %p543, %p544
      %p547 = scmp.ne.s32.totalorder %s532, %s546
      %p548 = scmp.eq.s32.totalorder %s76, 0
      %p549 = por %p547, %p548
      %s551 = sadd.s32 %s550, 1
      %p554 = scmp.eq.s32.totalorder %s70, 1
      %p555 = scmp.ne.s32.totalorder %s550, %s552
      %p556 = scmp.eq.s32.totalorder %s70, 0
      %p557 = por %p555, %p556
      %p558 = scmp.ne.s32.totalorder %s550, %s552
      %p559 = scmp.eq.s32.totalorder %s75, 1
      %p560 = por %p558, %p559
      %p561 = scmp.ne.s32.totalorder %s552, %s553
      %p562 = scmp.eq.s32.totalorder %s75, 0
      %p563 = por %p561, %p562
      %p564 = scmp.ne.s32.totalorder %s552, %s553
      %p565 = scmp.eq.s32.totalorder %s76, 1
      %p566 = por %p564, %p565
      %p568 = scmp.ne.s32.totalorder %s553, %s567
      %p569 = scmp.eq.s32.totalorder %s76, 0
      %p570 = por %p568, %p569
      %s572 = sadd.s32 %s571, 1
      %p575 = scmp.eq.s32.totalorder %s70, 1
      %p576 = scmp.ne.s32.totalorder %s571, %s573
      %p577 = scmp.eq.s32.totalorder %s70, 0
      %p578 = por %p576, %p577
      %p579 = scmp.ne.s32.totalorder %s571, %s573
      %p580 = scmp.eq.s32.totalorder %s75, 1
      %p581 = por %p579, %p580
      %p582 = scmp.ne.s32.totalorder %s573, %s574
      %p583 = scmp.eq.s32.totalorder %s75, 0
      %p584 = por %p582, %p583
      %p585 = scmp.ne.s32.totalorder %s573, %s574
      %p586 = scmp.eq.s32.totalorder %s76, 1
      %p587 = por %p585, %p586
      %p589 = scmp.ne.s32.totalorder %s574, %s588
      %p590 = scmp.eq.s32.totalorder %s76, 0
      %p591 = por %p589, %p590
      %s593 = sadd.s32 %s592, 1
      %p596 = scmp.eq.s32.totalorder %s70, 1
      %p597 = scmp.ne.s32.totalorder %s592, %s594
      %p598 = scmp.eq.s32.totalorder %s70, 0
      %p599 = por %p597, %p598
      %p600 = scmp.ne.s32.totalorder %s592, %s594
      %p601 = scmp.eq.s32.totalorder %s75, 1
      %p602 = por %p600, %p601
      %p603 = scmp.ne.s32.totalorder %s594, %s595
      %p604 = scmp.eq.s32.totalorder %s75, 0
      %p605 = por %p603, %p604
      %p606 = scmp.ne.s32.totalorder %s594, %s595
      %p607 = scmp.eq.s32.totalorder %s76, 1
      %p608 = por %p606, %p607
      %p610 = scmp.ne.s32.totalorder %s595, %s609
      %p611 = scmp.eq.s32.totalorder %s76, 0
      %p612 = por %p610, %p611
      %s614 = sadd.s32 %s613, 1
      %p617 = scmp.eq.s32.totalorder %s70, 1
      %p618 = scmp.ne.s32.totalorder %s613, %s615
      %p619 = scmp.eq.s32.totalorder %s70, 0
      %p620 = por %p618, %p619
      %p621 = scmp.ne.s32.totalorder %s613, %s615
      %p622 = scmp.eq.s32.totalorder %s75, 1
      %p623 = por %p621, %p622
      %p624 = scmp.ne.s32.totalorder %s615, %s616
      %p625 = scmp.eq.s32.totalorder %s75, 0
      %p626 = por %p624, %p625
      %p627 = scmp.ne.s32.totalorder %s615, %s616
      %p628 = scmp.eq.s32.totalorder %s76, 1
      %p629 = por %p627, %p628
      %p631 = scmp.ne.s32.totalorder %s616, %s630
      %p632 = scmp.eq.s32.totalorder %s76, 0
      %p633 = por %p631, %p632
      %s635 = sadd.s32 %s634, 1
      %p638 = scmp.eq.s32.totalorder %s70, 1
      %p639 = scmp.ne.s32.totalorder %s634, %s636
      %p640 = scmp.eq.s32.totalorder %s70, 0
      %p641 = por %p639, %p640
      %p642 = scmp.ne.s32.totalorder %s634, %s636
      %p643 = scmp.eq.s32.totalorder %s75, 1
      %p644 = por %p642, %p643
      %p645 = scmp.ne.s32.totalorder %s636, %s637
      %p646 = scmp.eq.s32.totalorder %s75, 0
      %p647 = por %p645, %p646
      %p648 = scmp.ne.s32.totalorder %s636, %s637
      %p649 = scmp.eq.s32.totalorder %s76, 1
      %p650 = por %p648, %p649
      %p652 = scmp.ne.s32.totalorder %s637, %s651
      %p653 = scmp.eq.s32.totalorder %s76, 0
      %p654 = por %p652, %p653
      %s656 = sadd.s32 %s655, 1
      %p659 = scmp.eq.s32.totalorder %s70, 1
      %p660 = scmp.ne.s32.totalorder %s655, %s657
      %p661 = scmp.eq.s32.totalorder %s70, 0
      %p662 = por %p660, %p661
      %p663 = scmp.ne.s32.totalorder %s655, %s657
      %p664 = scmp.eq.s32.totalorder %s75, 1
      %p665 = por %p663, %p664
      %p666 = scmp.ne.s32.totalorder %s657, %s658
      %p667 = scmp.eq.s32.totalorder %s75, 0
      %p668 = por %p666, %p667
      %p669 = scmp.ne.s32.totalorder %s657, %s658
      %p670 = scmp.eq.s32.totalorder %s76, 1
      %p671 = por %p669, %p670
      %p673 = scmp.ne.s32.totalorder %s658, %s672
      %p674 = scmp.eq.s32.totalorder %s76, 0
      %p675 = por %p673, %p674
      %s677 = sadd.s32 %s676, 1
      %p680 = scmp.eq.s32.totalorder %s70, 1
      %p681 = scmp.ne.s32.totalorder %s676, %s678
      %p682 = scmp.eq.s32.totalorder %s70, 0
      %p683 = por %p681, %p682
      %p684 = scmp.ne.s32.totalorder %s676, %s678
      %p685 = scmp.eq.s32.totalorder %s75, 1
      %p686 = por %p684, %p685
      %p687 = scmp.ne.s32.totalorder %s678, %s679
      %p688 = scmp.eq.s32.totalorder %s75, 0
      %p689 = por %p687, %p688
      %p690 = scmp.ne.s32.totalorder %s678, %s679
      %p691 = scmp.eq.s32.totalorder %s76, 1
      %p692 = por %p690, %p691
      %p694 = scmp.ne.s32.totalorder %s679, %s693
      %p695 = scmp.eq.s32.totalorder %s76, 0
      %p696 = por %p694, %p695
      %s698 = sadd.s32 %s697, 1
      %p701 = scmp.eq.s32.totalorder %s70, 1
      %p702 = scmp.ne.s32.totalorder %s697, %s699
      %p703 = scmp.eq.s32.totalorder %s70, 0
      %p704 = por %p702, %p703
      %p705 = scmp.ne.s32.totalorder %s697, %s699
      %p706 = scmp.eq.s32.totalorder %s75, 1
      %p707 = por %p705, %p706
      %p708 = scmp.ne.s32.totalorder %s699, %s700
      %p709 = scmp.eq.s32.totalorder %s75, 0
      %p710 = por %p708, %p709
      %p711 = scmp.ne.s32.totalorder %s699, %s700
      %p712 = scmp.eq.s32.totalorder %s76, 1
      %p713 = por %p711, %p712
      %p715 = scmp.ne.s32.totalorder %s700, %s714
      %p716 = scmp.eq.s32.totalorder %s76, 0
      %p717 = por %p715, %p716
      %s718 = ssub.s32 %s70, %s77
      %p719 = scmp.eq.s32.totalorder %s718, 0
      %s721 = sadd.s32 %s720, 1
      %s722 = scalar_select %p719, %s720, %s721
      %p725 = pneg %p719
      %p726 = scmp.eq.s32.totalorder %s70, 1
      %p727 = por %p725, %p726
      %p728 = scmp.ne.s32.totalorder %s720, %s723
      %p729 = scmp.eq.s32.totalorder %s70, 0
      %p730 = por %p728, %p729
      %p731 = scmp.ne.s32.totalorder %s720, %s723
      %p732 = scmp.eq.s32.totalorder %s75, 1
      %p733 = por %p731, %p732
      %p734 = scmp.ne.s32.totalorder %s723, %s724
      %p735 = scmp.eq.s32.totalorder %s75, 0
      %p736 = por %p734, %p735
      %p737 = scmp.ne.s32.totalorder %s723, %s724
      %p738 = scmp.eq.s32.totalorder %s76, 1
      %p739 = por %p737, %p738
      %p741 = scmp.ne.s32.totalorder %s724, %s740
      %p742 = scmp.eq.s32.totalorder %s76, 0
      %p743 = por %p741, %p742
      %p744 = scmp.le.s32.totalorder 1, %s70
      %p745 = scmp.lt.s32.totalorder %s70, 3
      %p746 = pnand %p744, %p745
      %p747 = pneg %p746
      // Predicated region
      $region9: #{loco_transformer_v3_forward.5} parent=5 // pred_check
        _
      $region10: #{loco_transformer_v3_forward.5} parent=5 // pred_check_branch
        %749 = sbr.rel (%p746) target = $region12
      $region11: #{loco_transformer_v3_forward.5} parent=5 // pred_region
        %s750 = ssub.s32 %s70, 1
        // Predicated region
        $region13: #{loco_transformer_v3_forward.5} parent=11 // pred_check
          %p751 = pneg %p143
        $region14: #{loco_transformer_v3_forward.5} parent=11 // pred_check_branch
          %753 = sbr.rel (%p751) target = $region16
        $region15: #{loco_transformer_v3_forward.5} parent=11 // pred_region
          _
        $region16: #{loco_transformer_v3_forward.5} parent=11 // pred_fallthru
          _
        // Predicated region
        $region17: #{loco_transformer_v3_forward.5} parent=11 // pred_check
          %p754 = pneg %p164
        $region18: #{loco_transformer_v3_forward.5} parent=11 // pred_check_branch
          %756 = sbr.rel (%p754) target = $region20
        $region19: #{loco_transformer_v3_forward.5} parent=11 // pred_region
          _
        $region20: #{loco_transformer_v3_forward.5} parent=11 // pred_fallthru
          _
        // Predicated region
        $region21: #{loco_transformer_v3_forward.5} parent=11 // pred_check
          %p757 = pneg %p185
        $region22: #{loco_transformer_v3_forward.5} parent=11 // pred_check_branch
          %759 = sbr.rel (%p757) target = $region24
        $region23: #{loco_transformer_v3_forward.5} parent=11 // pred_region
          _
        $region24: #{loco_transformer_v3_forward.5} parent=11 // pred_fallthru
          _
        // Predicated region
        $region25: #{loco_transformer_v3_forward.5} parent=11 // pred_check
          %p760 = pneg %p206
        $region26: #{loco_transformer_v3_forward.5} parent=11 // pred_check_branch
          %762 = sbr.rel (%p760) target = $region28
        $region27: #{loco_transformer_v3_forward.5} parent=11 // pred_region
          _
        $region28: #{loco_transformer_v3_forward.5} parent=11 // pred_fallthru
          _
        // Predicated region
        $region29: #{loco_transformer_v3_forward.5} parent=11 // pred_check
          %p763 = pneg %p227
        $region30: #{loco_transformer_v3_forward.5} parent=11 // pred_check_branch
          %765 = sbr.rel (%p763) target = $region32
        $region31: #{loco_transformer_v3_forward.5} parent=11 // pred_region
          _
        $region32: #{loco_transformer_v3_forward.5} parent=11 // pred_fallthru
          _
        // Predicated region
        $region33: #{loco_transformer_v3_forward.5} parent=11 // pred_check
          %p766 = pneg %p248
        $region34: #{loco_transformer_v3_forward.5} parent=11 // pred_check_branch
          %768 = sbr.rel (%p766) target = $region36
        $region35: #{loco_transformer_v3_forward.5} parent=11 // pred_region
          _
        $region36: #{loco_transformer_v3_forward.5} parent=11 // pred_fallthru
          _
        // Predicated region
        $region37: #{loco_transformer_v3_forward.5} parent=11 // pred_check
          %p769 = pneg %p269
        $region38: #{loco_transformer_v3_forward.5} parent=11 // pred_check_branch
          %771 = sbr.rel (%p769) target = $region40
        $region39: #{loco_transformer_v3_forward.5} parent=11 // pred_region
          _
        $region40: #{loco_transformer_v3_forward.5} parent=11 // pred_fallthru
          _
        // Predicated region
        $region41: #{loco_transformer_v3_forward.5} parent=11 // pred_check
          %p772 = pneg %p290
        $region42: #{loco_transformer_v3_forward.5} parent=11 // pred_check_branch
          %774 = sbr.rel (%p772) target = $region44
        $region43: #{loco_transformer_v3_forward.5} parent=11 // pred_region
          _
        $region44: #{loco_transformer_v3_forward.5} parent=11 // pred_fallthru
          _
        // Predicated region
        $region45: #{loco_transformer_v3_forward.5} parent=11 // pred_check
          %p775 = pneg %p311
        $region46: #{loco_transformer_v3_forward.5} parent=11 // pred_check_branch
          %777 = sbr.rel (%p775) target = $region48
        $region47: #{loco_transformer_v3_forward.5} parent=11 // pred_region
          _
        $region48: #{loco_transformer_v3_forward.5} parent=11 // pred_fallthru
          _
        // Predicated region
        $region49: #{loco_transformer_v3_forward.5} parent=11 // pred_check
          %p778 = pneg %p332
        $region50: #{loco_transformer_v3_forward.5} parent=11 // pred_check_branch
          %780 = sbr.rel (%p778) target = $region52
        $region51: #{loco_transformer_v3_forward.5} parent=11 // pred_region
          _
        $region52: #{loco_transformer_v3_forward.5} parent=11 // pred_fallthru
          _
        // Predicated region
        $region53: #{loco_transformer_v3_forward.5} parent=11 // pred_check
          %p781 = pneg %p353
        $region54: #{loco_transformer_v3_forward.5} parent=11 // pred_check_branch
          %783 = sbr.rel (%p781) target = $region56
        $region55: #{loco_transformer_v3_forward.5} parent=11 // pred_region
          _
        $region56: #{loco_transformer_v3_forward.5} parent=11 // pred_fallthru
          _
        // Predicated region
        $region57: #{loco_transformer_v3_forward.5} parent=11 // pred_check
          %p784 = pneg %p374
        $region58: #{loco_transformer_v3_forward.5} parent=11 // pred_check_branch
          %786 = sbr.rel (%p784) target = $region60
        $region59: #{loco_transformer_v3_forward.5} parent=11 // pred_region
          _
        $region60: #{loco_transformer_v3_forward.5} parent=11 // pred_fallthru
          _
        // Predicated region
        $region61: #{loco_transformer_v3_forward.5} parent=11 // pred_check
          %p787 = pneg %p395
        $region62: #{loco_transformer_v3_forward.5} parent=11 // pred_check_branch
          %789 = sbr.rel (%p787) target = $region64
        $region63: #{loco_transformer_v3_forward.5} parent=11 // pred_region
          _
        $region64: #{loco_transformer_v3_forward.5} parent=11 // pred_fallthru
          _
        // Predicated region
        $region65: #{loco_transformer_v3_forward.5} parent=11 // pred_check
          %p790 = pneg %p416
        $region66: #{loco_transformer_v3_forward.5} parent=11 // pred_check_branch
          %792 = sbr.rel (%p790) target = $region68
        $region67: #{loco_transformer_v3_forward.5} parent=11 // pred_region
          _
        $region68: #{loco_transformer_v3_forward.5} parent=11 // pred_fallthru
          _
        // Predicated region
        $region69: #{loco_transformer_v3_forward.5} parent=11 // pred_check
          %p793 = pneg %p437
        $region70: #{loco_transformer_v3_forward.5} parent=11 // pred_check_branch
          %795 = sbr.rel (%p793) target = $region72
        $region71: #{loco_transformer_v3_forward.5} parent=11 // pred_region
          _
        $region72: #{loco_transformer_v3_forward.5} parent=11 // pred_fallthru
          _
        // Predicated region
        $region73: #{loco_transformer_v3_forward.5} parent=11 // pred_check
          %p796 = pneg %p458
        $region74: #{loco_transformer_v3_forward.5} parent=11 // pred_check_branch
          %798 = sbr.rel (%p796) target = $region76
        $region75: #{loco_transformer_v3_forward.5} parent=11 // pred_region
          _
        $region76: #{loco_transformer_v3_forward.5} parent=11 // pred_fallthru
          _
        // Predicated region
        $region77: #{loco_transformer_v3_forward.5} parent=11 // pred_check
          %p799 = pneg %p479
        $region78: #{loco_transformer_v3_forward.5} parent=11 // pred_check_branch
          %801 = sbr.rel (%p799) target = $region80
        $region79: #{loco_transformer_v3_forward.5} parent=11 // pred_region
          _
        $region80: #{loco_transformer_v3_forward.5} parent=11 // pred_fallthru
          _
        // Predicated region
        $region81: #{loco_transformer_v3_forward.5} parent=11 // pred_check
          %p802 = pneg %p500
        $region82: #{loco_transformer_v3_forward.5} parent=11 // pred_check_branch
          %804 = sbr.rel (%p802) target = $region84
        $region83: #{loco_transformer_v3_forward.5} parent=11 // pred_region
          _
        $region84: #{loco_transformer_v3_forward.5} parent=11 // pred_fallthru
          _
        // Predicated region
        $region85: #{loco_transformer_v3_forward.5} parent=11 // pred_check
          %p805 = pneg %p521
        $region86: #{loco_transformer_v3_forward.5} parent=11 // pred_check_branch
          %807 = sbr.rel (%p805) target = $region88
        $region87: #{loco_transformer_v3_forward.5} parent=11 // pred_region
          _
        $region88: #{loco_transformer_v3_forward.5} parent=11 // pred_fallthru
          _
        // Predicated region
        $region89: #{loco_transformer_v3_forward.5} parent=11 // pred_check
          %p808 = pneg %p542
        $region90: #{loco_transformer_v3_forward.5} parent=11 // pred_check_branch
          %810 = sbr.rel (%p808) target = $region92
        $region91: #{loco_transformer_v3_forward.5} parent=11 // pred_region
          _
        $region92: #{loco_transformer_v3_forward.5} parent=11 // pred_fallthru
          _
        // Predicated region
        $region93: #{loco_transformer_v3_forward.5} parent=11 // pred_check
          %p811 = pneg %p563
        $region94: #{loco_transformer_v3_forward.5} parent=11 // pred_check_branch
          %813 = sbr.rel (%p811) target = $region96
        $region95: #{loco_transformer_v3_forward.5} parent=11 // pred_region
          _
        $region96: #{loco_transformer_v3_forward.5} parent=11 // pred_fallthru
          _
        // Predicated region
        $region97: #{loco_transformer_v3_forward.5} parent=11 // pred_check
          %p814 = pneg %p584
        $region98: #{loco_transformer_v3_forward.5} parent=11 // pred_check_branch
          %816 = sbr.rel (%p814) target = $region100
        $region99: #{loco_transformer_v3_forward.5} parent=11 // pred_region
          _
        $region100: #{loco_transformer_v3_forward.5} parent=11 // pred_fallthru
          _
        // Predicated region
        $region101: #{loco_transformer_v3_forward.5} parent=11 // pred_check
          %p817 = pneg %p605
        $region102: #{loco_transformer_v3_forward.5} parent=11 // pred_check_branch
          %819 = sbr.rel (%p817) target = $region104
        $region103: #{loco_transformer_v3_forward.5} parent=11 // pred_region
          _
        $region104: #{loco_transformer_v3_forward.5} parent=11 // pred_fallthru
          _
        // Predicated region
        $region105: #{loco_transformer_v3_forward.5} parent=11 // pred_check
          %p820 = pneg %p626
        $region106: #{loco_transformer_v3_forward.5} parent=11 // pred_check_branch
          %822 = sbr.rel (%p820) target = $region108
        $region107: #{loco_transformer_v3_forward.5} parent=11 // pred_region
          _
        $region108: #{loco_transformer_v3_forward.5} parent=11 // pred_fallthru
          _
        // Predicated region
        $region109: #{loco_transformer_v3_forward.5} parent=11 // pred_check
          %p823 = pneg %p647
        $region110: #{loco_transformer_v3_forward.5} parent=11 // pred_check_branch
          %825 = sbr.rel (%p823) target = $region112
        $region111: #{loco_transformer_v3_forward.5} parent=11 // pred_region
          _
        $region112: #{loco_transformer_v3_forward.5} parent=11 // pred_fallthru
          _
        // Predicated region
        $region113: #{loco_transformer_v3_forward.5} parent=11 // pred_check
          %p826 = pneg %p668
        $region114: #{loco_transformer_v3_forward.5} parent=11 // pred_check_branch
          %828 = sbr.rel (%p826) target = $region116
        $region115: #{loco_transformer_v3_forward.5} parent=11 // pred_region
          _
        $region116: #{loco_transformer_v3_forward.5} parent=11 // pred_fallthru
          _
        // Predicated region
        $region117: #{loco_transformer_v3_forward.5} parent=11 // pred_check
          %p829 = pneg %p689
        $region118: #{loco_transformer_v3_forward.5} parent=11 // pred_check_branch
          %831 = sbr.rel (%p829) target = $region120
        $region119: #{loco_transformer_v3_forward.5} parent=11 // pred_region
          _
        $region120: #{loco_transformer_v3_forward.5} parent=11 // pred_fallthru
          _
        // Predicated region
        $region121: #{loco_transformer_v3_forward.5} parent=11 // pred_check
          %p832 = pneg %p710
        $region122: #{loco_transformer_v3_forward.5} parent=11 // pred_check_branch
          %834 = sbr.rel (%p832) target = $region124
        $region123: #{loco_transformer_v3_forward.5} parent=11 // pred_region
          _
        $region124: #{loco_transformer_v3_forward.5} parent=11 // pred_fallthru
          _
      $region12: #{loco_transformer_v3_forward.5} parent=5 // pred_fallthru
        _
      %p835 = scmp.lt.s32.totalorder %s70, 2
      // Predicated region
      $region125: #{loco_transformer_v3_forward.5} parent=5 // pred_check
        %p836 = pneg %p835
      $region126: #{loco_transformer_v3_forward.5} parent=5 // pred_check_branch
        %838 = sbr.rel (%p836) target = $region128
      $region127: #{loco_transformer_v3_forward.5} parent=5 // pred_region
        // Predicated region
        $region129: #{loco_transformer_v3_forward.5} parent=127 // pred_check
          %p839 = pneg %p90
        $region130: #{loco_transformer_v3_forward.5} parent=127 // pred_check_branch
          %841 = sbr.rel (%p839) target = $region132
        $region131: #{loco_transformer_v3_forward.5} parent=127 // pred_region
          %p842 = scmp.lt.s32.totalorder %s70, 1
          %s843 = scalar_select %p842, %s70, 1
          %s844 = scalar_lea.vmem %s1, %s843
        $region132: #{loco_transformer_v3_forward.5} parent=127 // pred_fallthru
          _
        // Predicated region
        $region133: #{loco_transformer_v3_forward.5} parent=127 // pred_check
          %p845 = pneg %p116
        $region134: #{loco_transformer_v3_forward.5} parent=127 // pred_check_branch
          %847 = sbr.rel (%p845) target = $region136
        $region135: #{loco_transformer_v3_forward.5} parent=127 // pred_region
          %p848 = scmp.lt.s32.totalorder %s70, 1
          %s849 = scalar_select %p848, %s70, 1
          %s850 = smul.addr %s849, 10
          %s851 = smul.addr %s850, 4
          %s852 = scalar_lea.vmem %s3, %s851
        $region136: #{loco_transformer_v3_forward.5} parent=127 // pred_fallthru
          _
      $region128: #{loco_transformer_v3_forward.5} parent=5 // pred_fallthru
        _
      %p853 = scmp.le.s32.totalorder 1, %s70
      %p854 = scmp.lt.s32.totalorder %s70, 3
      %p855 = pnand %p853, %p854
      %p856 = pneg %p855
      // Predicated region
      $region137: #{loco_transformer_v3_forward.5} parent=5 // pred_check
        _
      $region138: #{loco_transformer_v3_forward.5} parent=5 // pred_check_branch
        %858 = sbr.rel (%p855) target = $region140
      $region139: #{loco_transformer_v3_forward.5} parent=5 // pred_region
        %s859 = ssub.s32 %s70, 1
        %p860 = scmp.lt.s32.totalorder %s75, 1
        %s861 = scalar_select %p860, %s75, 1
        %s862 = scalar_lea.vmem %s1, %s861
        %p863 = pneg %p96
        %p864 = pneg %p93
        %p865 = scmp.lt.s32.totalorder %s75, 1
        %s866 = scalar_select %p865, %s75, 1
        %s867 = smul.addr %s866, 10
        %s868 = smul.addr %s867, 4
        %s869 = scalar_lea.vmem %s3, %s868
        %p870 = pneg %p122
        %p871 = pneg %p119
        %p872 = pneg %p143
        %p873 = pneg %p140
        %p874 = pneg %p164
        %p875 = pneg %p161
        %p876 = pneg %p185
        %p877 = pneg %p182
        %p878 = pneg %p206
        %p879 = pneg %p203
        %p880 = pneg %p227
        %p881 = pneg %p224
        %p882 = pneg %p248
        %p883 = pneg %p245
        %p884 = pneg %p269
        %p885 = pneg %p266
        %p886 = pneg %p290
        %p887 = pneg %p287
        %p888 = pneg %p311
        %p889 = pneg %p308
        %p890 = pneg %p332
        %p891 = pneg %p329
        %p892 = pneg %p353
        %p893 = pneg %p350
        %p894 = pneg %p374
        %p895 = pneg %p371
        %p896 = pneg %p395
        %p897 = pneg %p392
        %p898 = pneg %p416
        %p899 = pneg %p413
        %p900 = pneg %p437
        %p901 = pneg %p434
        %p902 = pneg %p458
        %p903 = pneg %p455
        %p904 = pneg %p479
        %p905 = pneg %p476
        %p906 = pneg %p500
        %p907 = pneg %p497
        %p908 = pneg %p521
        %p909 = pneg %p518
        %p910 = pneg %p542
        %p911 = pneg %p539
        %p912 = pneg %p563
        %p913 = pneg %p560
        %p914 = pneg %p584
        %p915 = pneg %p581
        %p916 = pneg %p605
        %p917 = pneg %p602
        %p918 = pneg %p626
        %p919 = pneg %p623
        %p920 = pneg %p647
        %p921 = pneg %p644
        %p922 = pneg %p668
        %p923 = pneg %p665
        %p924 = pneg %p689
        %p925 = pneg %p686
        %p926 = pneg %p710
        %p927 = pneg %p707
        %p928 = pneg %p736
        %p929 = pneg %p733
        %s930 = sand.u32 %s723, 1
        %s931 = scalar_lea.sflag [#allocation3], %s930
        %s932 = sand.u32 %s723, 1
        %s933 = scalar_lea.vmem [#allocation2], %s932
        %p934 = scmp.lt.s32.totalorder %s75, 1
        %s935 = scalar_select %p934, %s75, 1
        %s936 = scalar_lea.vmem %s1, %s935
        %p937 = scmp.lt.s32.totalorder %s75, 1
        %s938 = scalar_select %p937, %s75, 1
        %s939 = smul.addr %s938, 10
        %s940 = smul.addr %s939, 4
        %s941 = scalar_lea.vmem %s3, %s940
        %v943 = vld [vmem:[%s936] sm:$0x1]
        %v944 = vpack.c.bf16 %v943, %v943
        %v945 = vld [vmem:[%s19] sm:$0xf]
        %v946 = vld [vmem:[%s19 + $0x4] sm:$0xf]
        %v947 = vld [vmem:[%s21] sm:$0x1]
        %v950 = vunpack.c.l.b16 %v945
        %v951 = vunpack.c.l.b16 %v946
        %v952 = vpack.c.b16 %v951, %v950
        %vm954 = vcmask 130048
        %v956 = vsel %vm954, %v944, 0
        %958 = vmatpush.bf16.msra.mxu0 0
        %959 = vmatpush.bf16.msra.mxu0 0
        %960 = vmatpush.bf16.msra.mxu0 0
        %961 = vmatpush.bf16.msra.mxu0 0
        %962 = vmatpush.bf16.msra.mxu0 0
        %963 = vmatpush.bf16.msra.mxu0 0
        %964 = vmatpush.bf16.msra.mxu0 0
        %965 = vmatpush.bf16.msra.mxu0 %v952
        %966 = vmatmul.bf16.gmra.mxu0 %v956
        %v967 = vpop.f32.mrf.mxu0
        %v968 = vadd.f32 %v947, %v967
        %v969 = vpop.f32.mrf.mxu0
        %970 = vdwg.mxu0
        %v971 = vmax.f32 %v968, 0.0
        %v972 = vpack.c.bf16 %v971, %v971
        %v973 = vld [vmem:[%s23] sm:$0xf]
        %v974 = vld [vmem:[%s23 + $0x4] sm:$0xf]
        %v975 = vld [vmem:[%s23 + $0x8] sm:$0xf]
        %v976 = vld [vmem:[%s23 + $0xc] sm:$0xf]
        %v977 = vld [vmem:[%s25] sm:$0x1]
        %v982 = vunpack.c.l.b16 %v973
        %v983 = vunpack.c.l.b16 %v974
        %v984 = vunpack.c.l.b16 %v975
        %v985 = vunpack.c.l.b16 %v976
        %v986 = vpack.c.b16 %v983, %v982
        %v987 = vpack.c.b16 %v985, %v984
        %vm990 = vcmask 261120
        %v992 = vsel %vm990, %v972, 0
        %994 = vmatpush.bf16.msra.mxu0 0
        %995 = vmatpush.bf16.msra.mxu0 0
        %996 = vmatpush.bf16.msra.mxu0 0
        %997 = vmatpush.bf16.msra.mxu0 0
        %998 = vmatpush.bf16.msra.mxu0 0
        %999 = vmatpush.bf16.msra.mxu0 0
        %1000 = vmatpush.bf16.msra.mxu0 %v987
        %1001 = vmatpush.bf16.msra.mxu0 %v986
        %1002 = vmatmul.bf16.gmra.mxu0 %v992
        %v1003 = vpop.f32.mrf.mxu0
        %v1004 = vadd.f32 %v977, %v1003
        %v1005 = vpop.f32.mrf.mxu0
        %1006 = vdwg.mxu0
        %v1007 = vmax.f32 %v1004, 0.0
        %v1008 = vpack.c.bf16 %v1007, %v1007
        %v1009 = vld [vmem:[%s27] sm:$0xf]
        %v1010 = vld [vmem:[%s27 + $0x4] sm:$0xf]
        %v1011 = vld [vmem:[%s27 + $0x8] sm:$0xf]
        %v1012 = vld [vmem:[%s27 + $0xc] sm:$0xf]
        %v1013 = vld [vmem:[%s29] sm:$0x1]
        %v1018 = vunpack.c.l.b16 %v1009
        %v1019 = vunpack.c.l.b16 %v1010
        %v1020 = vunpack.c.l.b16 %v1011
        %v1021 = vunpack.c.l.b16 %v1012
        %v1022 = vpack.c.b16 %v1019, %v1018
        %v1023 = vpack.c.b16 %v1021, %v1020
        %v1027 = vsel %vm990, %v1008, 0
        %1029 = vmatpush.bf16.msra.mxu0 0
        %1030 = vmatpush.bf16.msra.mxu0 0
        %1031 = vmatpush.bf16.msra.mxu0 0
        %1032 = vmatpush.bf16.msra.mxu0 0
        %1033 = vmatpush.bf16.msra.mxu0 0
        %1034 = vmatpush.bf16.msra.mxu0 0
        %1035 = vmatpush.bf16.msra.mxu0 %v1023
        %1036 = vmatpush.bf16.msra.mxu0 %v1022
        %1037 = vmatmul.bf16.gmra.mxu0 %v1027
        %v1038 = vpop.f32.mrf.mxu0
        %v1039 = vadd.f32 %v1013, %v1038
        %v1040 = vpop.f32.mrf.mxu0
        %1041 = vdwg.mxu0
        %v1042 = vmax.f32 %v1039, 0.0
        %v1043 = vld [vmem:[%s941] sm:$0xff]
        %v1044 = vld [vmem:[%s941 + $0x8] sm:$0xff]
        %v1045 = vld [vmem:[%s941 + $0x10] sm:$0xf]
        %v1046 = vld [vmem:[%s941 + $0x14] sm:$0xff]
        %v1047 = vld [vmem:[%s941 + $0x1c] sm:$0xff]
        %v1048 = vld [vmem:[%s941 + $0x24] sm:$0xf]
        %v1049 = vld [vmem:[%s11] sm:$0xf]
        %v1050 = vld [vmem:[%s11 + $0x4] sm:$0xf]
        %v1051 = vld [vmem:[%s11 + $0x8] sm:$0xf]
        %v1052 = vld [vmem:[%s11 + $0xc] sm:$0xf]
        %v1053 = vld [vmem:[%s11 + $0x10] sm:$0xf]
        %v1054 = vld [vmem:[%s11 + $0x14] sm:$0xf]
        %v1055 = vld [vmem:[%s11 + $0x18] sm:$0xf]
        %v1056 = vld [vmem:[%s11 + $0x1c] sm:$0xf]
        %v1057 = vld [vmem:[%s11 + $0x20] sm:$0xf]
        %v1058 = vld [vmem:[%s11 + $0x24] sm:$0xf]
        %v1059 = vld [vmem:[%s11 + $0x28] sm:$0xf]
        %v1060 = vld [vmem:[%s11 + $0x2c] sm:$0xf]
        %v1061 = vld [vmem:[%s11 + $0x30] sm:$0xf]
        %v1062 = vld [vmem:[%s11 + $0x34] sm:$0xf]
        %v1063 = vld [vmem:[%s11 + $0x38] sm:$0xf]
        %v1064 = vld [vmem:[%s11 + $0x3c] sm:$0xf]
        %v1065 = vld [vmem:[%s11 + $0x40] sm:$0xf]
        %v1066 = vld [vmem:[%s11 + $0x44] sm:$0xf]
        %v1067 = vld [vmem:[%s11 + $0x48] sm:$0xf]
        %v1068 = vld [vmem:[%s11 + $0x4c] sm:$0xf]
        %v1069 = vld [vmem:[%s11 + $0x50] sm:$0xf]
        %v1070 = vld [vmem:[%s11 + $0x54] sm:$0xf]
        %v1071 = vld [vmem:[%s11 + $0x58] sm:$0xf]
        %v1072 = vld [vmem:[%s11 + $0x5c] sm:$0xf]
        %v1073 = vld [vmem:[%s11 + $0x60] sm:$0xf]
        %v1074 = vld [vmem:[%s11 + $0x64] sm:$0xf]
        %v1075 = vld [vmem:[%s11 + $0x68] sm:$0xf]
        %v1076 = vld [vmem:[%s11 + $0x6c] sm:$0xf]
        %v1077 = vld [vmem:[%s11 + $0x70] sm:$0xf]
        %v1078 = vld [vmem:[%s11 + $0x74] sm:$0xf]
        %v1079 = vld [vmem:[%s11 + $0x78] sm:$0xf]
        %v1080 = vld [vmem:[%s11 + $0x7c] sm:$0xf]
        %v1081 = vld [vmem:[%s11 + $0x80] sm:$0xf]
        %v1082 = vld [vmem:[%s11 + $0x84] sm:$0xf]
        %v1083 = vld [vmem:[%s11 + $0x88] sm:$0xf]
        %v1084 = vld [vmem:[%s11 + $0x8c] sm:$0xf]
        %v1085 = vld [vmem:[%s11 + $0x90] sm:$0xf]
        %v1086 = vld [vmem:[%s11 + $0x94] sm:$0xf]
        %v1087 = vld [vmem:[%s11 + $0x98] sm:$0xf]
        %v1088 = vld [vmem:[%s11 + $0x9c] sm:$0xf]
        %v1089 = vld [vmem:[%s11 + $0xa0] sm:$0xf]
        %v1090 = vld [vmem:[%s11 + $0xa4] sm:$0xf]
        %v1091 = vld [vmem:[%s11 + $0xa8] sm:$0xf]
        %v1092 = vld [vmem:[%s11 + $0xac] sm:$0xf]
        %v1093 = vld [vmem:[%s11 + $0xb0] sm:$0xf]
        %v1094 = vld [vmem:[%s11 + $0xb4] sm:$0xf]
        %v1095 = vld [vmem:[%s11 + $0xb8] sm:$0xf]
        %v1096 = vld [vmem:[%s11 + $0xbc] sm:$0xf]
        %v1097 = vld [vmem:[%s11 + $0xc0] sm:$0xf]
        %v1098 = vld [vmem:[%s11 + $0xc4] sm:$0xf]
        %v1099 = vld [vmem:[%s11 + $0xc8] sm:$0xf]
        %v1100 = vld [vmem:[%s11 + $0xcc] sm:$0xf]
        %v1101 = vld [vmem:[%s11 + $0xd0] sm:$0xf]
        %v1102 = vld [vmem:[%s11 + $0xd4] sm:$0xf]
        %v1103 = vld [vmem:[%s11 + $0xd8] sm:$0xf]
        %v1104 = vld [vmem:[%s11 + $0xdc] sm:$0xf]
        %v1105 = vld [vmem:[%s11 + $0xe0] sm:$0xf]
        %v1106 = vld [vmem:[%s11 + $0xe4] sm:$0xf]
        %v1107 = vld [vmem:[%s11 + $0xe8] sm:$0xf]
        %v1108 = vld [vmem:[%s11 + $0xec] sm:$0xf]
        %v1109 = vld [vmem:[%s11 + $0xf0] sm:$0xf]
        %v1110 = vld [vmem:[%s11 + $0xf4] sm:$0xf]
        %v1111 = vld [vmem:[%s11 + $0xf8] sm:$0xf]
        %v1112 = vld [vmem:[%s11 + $0xfc] sm:$0xf]
        %v1113 = vld [vmem:[%s11 + $0x100] sm:$0xf]
        %v1114 = vld [vmem:[%s11 + $0x104] sm:$0xf]
        %v1115 = vld [vmem:[%s11 + $0x108] sm:$0xf]
        %v1116 = vld [vmem:[%s11 + $0x10c] sm:$0xf]
        %v1117 = vld [vmem:[%s11 + $0x110] sm:$0xf]
        %v1118 = vld [vmem:[%s11 + $0x114] sm:$0xf]
        %v1119 = vld [vmem:[%s11 + $0x118] sm:$0xf]
        %v1120 = vld [vmem:[%s11 + $0x11c] sm:$0xf]
        %v1121 = vld [vmem:[%s13] sm:$0x1]
        %v1123 = vperm.slane %v1121, 0
        %v1131 = vunpack.c.l.b16 %v1043
        %v1132 = vunpack.c.h.b16 %v1043
        %v1133 = vunpack.c.l.b16 %v1044
        %v1134 = vunpack.c.h.b16 %v1044
        %v1135 = vunpack.c.l.b16 %v1045
        %v1136 = vunpack.c.l.b16 %v1046
        %v1137 = vunpack.c.h.b16 %v1046
        %v1138 = vunpack.c.l.b16 %v1047
        %v1139 = vunpack.c.h.b16 %v1047
        %v1140 = vunpack.c.l.b16 %v1048
        %v1141 = vpack.c.b16 %v1136, %v1131
        %v1142 = vpack.c.b16 %v1137, %v1132
        %v1143 = vpack.c.b16 %v1138, %v1133
        %v1144 = vpack.c.b16 %v1139, %v1134
        %v1145 = vpack.c.b16 %v1140, %v1135
        %v1222 = vunpack.c.l.b16 %v1049
        %v1223 = vunpack.c.l.b16 %v1050
        %v1224 = vunpack.c.l.b16 %v1051
        %v1225 = vunpack.c.l.b16 %v1052
        %v1226 = vunpack.c.l.b16 %v1053
        %v1227 = vunpack.c.l.b16 %v1054
        %v1228 = vunpack.c.l.b16 %v1055
        %v1229 = vunpack.c.l.b16 %v1056
        %v1230 = vunpack.c.l.b16 %v1057
        %v1231 = vunpack.c.l.b16 %v1058
        %v1232 = vunpack.c.l.b16 %v1059
        %v1233 = vunpack.c.l.b16 %v1060
        %v1234 = vunpack.c.l.b16 %v1061
        %v1235 = vunpack.c.l.b16 %v1062
        %v1236 = vunpack.c.l.b16 %v1063
        %v1237 = vunpack.c.l.b16 %v1064
        %v1238 = vunpack.c.l.b16 %v1065
        %v1239 = vunpack.c.l.b16 %v1066
        %v1240 = vunpack.c.l.b16 %v1067
        %v1241 = vunpack.c.l.b16 %v1068
        %v1242 = vunpack.c.l.b16 %v1069
        %v1243 = vunpack.c.l.b16 %v1070
        %v1244 = vunpack.c.l.b16 %v1071
        %v1245 = vunpack.c.l.b16 %v1072
        %v1246 = vunpack.c.l.b16 %v1073
        %v1247 = vunpack.c.l.b16 %v1074
        %v1248 = vunpack.c.l.b16 %v1075
        %v1249 = vunpack.c.l.b16 %v1076
        %v1250 = vunpack.c.l.b16 %v1077
        %v1251 = vunpack.c.l.b16 %v1078
        %v1252 = vunpack.c.l.b16 %v1079
        %v1253 = vunpack.c.l.b16 %v1080
        %v1254 = vunpack.c.l.b16 %v1081
        %v1255 = vunpack.c.l.b16 %v1082
        %v1256 = vunpack.c.l.b16 %v1083
        %v1257 = vunpack.c.l.b16 %v1084
        %v1258 = vunpack.c.l.b16 %v1085
        %v1259 = vunpack.c.l.b16 %v1086
        %v1260 = vunpack.c.l.b16 %v1087
        %v1261 = vunpack.c.l.b16 %v1088
        %v1262 = vunpack.c.l.b16 %v1089
        %v1263 = vunpack.c.l.b16 %v1090
        %v1264 = vunpack.c.l.b16 %v1091
        %v1265 = vunpack.c.l.b16 %v1092
        %v1266 = vunpack.c.l.b16 %v1093
        %v1267 = vunpack.c.l.b16 %v1094
        %v1268 = vunpack.c.l.b16 %v1095
        %v1269 = vunpack.c.l.b16 %v1096
        %v1270 = vunpack.c.l.b16 %v1097
        %v1271 = vunpack.c.l.b16 %v1098
        %v1272 = vunpack.c.l.b16 %v1099
        %v1273 = vunpack.c.l.b16 %v1100
        %v1274 = vunpack.c.l.b16 %v1101
        %v1275 = vunpack.c.l.b16 %v1102
        %v1276 = vunpack.c.l.b16 %v1103
        %v1277 = vunpack.c.l.b16 %v1104
        %v1278 = vunpack.c.l.b16 %v1105
        %v1279 = vunpack.c.l.b16 %v1106
        %v1280 = vunpack.c.l.b16 %v1107
        %v1281 = vunpack.c.l.b16 %v1108
        %v1282 = vunpack.c.l.b16 %v1109
        %v1283 = vunpack.c.l.b16 %v1110
        %v1284 = vunpack.c.l.b16 %v1111
        %v1285 = vunpack.c.l.b16 %v1112
        %v1286 = vunpack.c.l.b16 %v1113
        %v1287 = vunpack.c.l.b16 %v1114
        %v1288 = vunpack.c.l.b16 %v1115
        %v1289 = vunpack.c.l.b16 %v1116
        %v1290 = vunpack.c.l.b16 %v1117
        %v1291 = vunpack.c.l.b16 %v1118
        %v1292 = vunpack.c.l.b16 %v1119
        %v1293 = vunpack.c.l.b16 %v1120
        %v1294 = vpack.c.b16 %v1223, %v1222
        %v1295 = vpack.c.b16 %v1225, %v1224
        %v1296 = vpack.c.b16 %v1227, %v1226
        %v1297 = vpack.c.b16 %v1229, %v1228
        %v1298 = vpack.c.b16 %v1231, %v1230
        %v1299 = vpack.c.b16 %v1233, %v1232
        %v1300 = vpack.c.b16 %v1235, %v1234
        %v1301 = vpack.c.b16 %v1237, %v1236
        %v1302 = vpack.c.b16 %v1239, %v1238
        %v1303 = vpack.c.b16 %v1241, %v1240
        %v1304 = vpack.c.b16 %v1243, %v1242
        %v1305 = vpack.c.b16 %v1245, %v1244
        %v1306 = vpack.c.b16 %v1247, %v1246
        %v1307 = vpack.c.b16 %v1249, %v1248
        %v1308 = vpack.c.b16 %v1251, %v1250
        %v1309 = vpack.c.b16 %v1253, %v1252
        %v1310 = vpack.c.b16 %v1255, %v1254
        %v1311 = vpack.c.b16 %v1257, %v1256
        %v1312 = vpack.c.b16 %v1259, %v1258
        %v1313 = vpack.c.b16 %v1261, %v1260
        %v1314 = vpack.c.b16 %v1263, %v1262
        %v1315 = vpack.c.b16 %v1265, %v1264
        %v1316 = vpack.c.b16 %v1267, %v1266
        %v1317 = vpack.c.b16 %v1269, %v1268
        %v1318 = vpack.c.b16 %v1271, %v1270
        %v1319 = vpack.c.b16 %v1273, %v1272
        %v1320 = vpack.c.b16 %v1275, %v1274
        %v1321 = vpack.c.b16 %v1277, %v1276
        %v1322 = vpack.c.b16 %v1279, %v1278
        %v1323 = vpack.c.b16 %v1281, %v1280
        %v1324 = vpack.c.b16 %v1283, %v1282
        %v1325 = vpack.c.b16 %v1285, %v1284
        %v1326 = vpack.c.b16 %v1287, %v1286
        %v1327 = vpack.c.b16 %v1289, %v1288
        %v1328 = vpack.c.b16 %v1291, %v1290
        %v1329 = vpack.c.b16 %v1293, %v1292
        %vm1366 = vcmask 523264
        %v1368 = vsel %vm1366, %v1145, 0
        %1370 = vmatpush.bf16.msra.mxu0 %v1301
        %1371 = vmatpush.bf16.msra.mxu0 %v1300
        %1372 = vmatpush.bf16.msra.mxu0 %v1299
        %1373 = vmatpush.bf16.msra.mxu0 %v1298
        %1374 = vmatpush.bf16.msra.mxu0 %v1297
        %1375 = vmatpush.bf16.msra.mxu0 %v1296
        %1376 = vmatpush.bf16.msra.mxu0 %v1295
        %1377 = vmatpush.bf16.msra.mxu0 %v1294
        %1378 = vmatmul.bf16.gmra.mxu0 %v1141
        %v1379 = vpop.f32.mrf.mxu0
        %v1380 = vadd.f32 %v1123, %v1379
        %v1381 = vpop.f32.mrf.mxu0
        %v1382 = vadd.f32 %v1123, %v1381
        %1383 = vdwg.mxu0
        %1384 = vmatpush.bf16.msra.mxu0 %v1309
        %1385 = vmatpush.bf16.msra.mxu0 %v1308
        %1386 = vmatpush.bf16.msra.mxu0 %v1307
        %1387 = vmatpush.bf16.msra.mxu0 %v1306
        %1388 = vmatpush.bf16.msra.mxu0 %v1305
        %1389 = vmatpush.bf16.msra.mxu0 %v1304
        %1390 = vmatpush.bf16.msra.mxu0 %v1303
        %1391 = vmatpush.bf16.msra.mxu0 %v1302
        %1392 = vmatmul.bf16.gmra.mxu0 %v1142
        %v1393 = vpop.f32.mrf.mxu0
        %v1394 = vadd.f32 %v1380, %v1393
        %v1395 = vpop.f32.mrf.mxu0
        %v1396 = vadd.f32 %v1382, %v1395
        %1397 = vdwg.mxu0
        %1398 = vmatpush.bf16.msra.mxu0 %v1317
        %1399 = vmatpush.bf16.msra.mxu0 %v1316
        %1400 = vmatpush.bf16.msra.mxu0 %v1315
        %1401 = vmatpush.bf16.msra.mxu0 %v1314
        %1402 = vmatpush.bf16.msra.mxu0 %v1313
        %1403 = vmatpush.bf16.msra.mxu0 %v1312
        %1404 = vmatpush.bf16.msra.mxu0 %v1311
        %1405 = vmatpush.bf16.msra.mxu0 %v1310
        %1406 = vmatmul.bf16.gmra.mxu0 %v1143
        %v1407 = vpop.f32.mrf.mxu0
        %v1408 = vadd.f32 %v1394, %v1407
        %v1409 = vpop.f32.mrf.mxu0
        %v1410 = vadd.f32 %v1396, %v1409
        %1411 = vdwg.mxu0
        %1412 = vmatpush.bf16.msra.mxu0 %v1325
        %1413 = vmatpush.bf16.msra.mxu0 %v1324
        %1414 = vmatpush.bf16.msra.mxu0 %v1323
        %1415 = vmatpush.bf16.msra.mxu0 %v1322
        %1416 = vmatpush.bf16.msra.mxu0 %v1321
        %1417 = vmatpush.bf16.msra.mxu0 %v1320
        %1418 = vmatpush.bf16.msra.mxu0 %v1319
        %1419 = vmatpush.bf16.msra.mxu0 %v1318
        %1420 = vmatmul.bf16.gmra.mxu0 %v1144
        %v1421 = vpop.f32.mrf.mxu0
        %v1422 = vadd.f32 %v1408, %v1421
        %v1423 = vpop.f32.mrf.mxu0
        %v1424 = vadd.f32 %v1410, %v1423
        %1425 = vdwg.mxu0
        %1426 = vmatpush.bf16.msra.mxu0 0
        %1427 = vmatpush.bf16.msra.mxu0 0
        %1428 = vmatpush.bf16.msra.mxu0 0
        %1429 = vmatpush.bf16.msra.mxu0 0
        %1430 = vmatpush.bf16.msra.mxu0 %v1329
        %1431 = vmatpush.bf16.msra.mxu0 %v1328
        %1432 = vmatpush.bf16.msra.mxu0 %v1327
        %1433 = vmatpush.bf16.msra.mxu0 %v1326
        %1434 = vmatmul.bf16.gmra.mxu0 %v1368
        %v1435 = vpop.f32.mrf.mxu0
        %v1436 = vadd.f32 %v1422, %v1435
        %v1437 = vpop.f32.mrf.mxu0
        %v1438 = vadd.f32 %v1424, %v1437
        %1439 = vdwg.mxu0
        %v1440 = vmax.f32 %v1436, 0.0
        %v1441 = vmax.f32 %v1438, 0.0
        %v1442 = vpack.c.bf16 %v1441, %v1440
        %v1443 = vld [vmem:[%s15] sm:$0xf]
        %v1444 = vld [vmem:[%s15 + $0x4] sm:$0xf]
        %v1445 = vld [vmem:[%s15 + $0x8] sm:$0xf]
        %v1446 = vld [vmem:[%s15 + $0xc] sm:$0xf]
        %v1447 = vld [vmem:[%s15 + $0x10] sm:$0xf]
        %v1448 = vld [vmem:[%s15 + $0x14] sm:$0xf]
        %v1449 = vld [vmem:[%s15 + $0x18] sm:$0xf]
        %v1450 = vld [vmem:[%s15 + $0x1c] sm:$0xf]
        %v1451 = vld [vmem:[%s17] sm:$0x1]
        %v1453 = vperm.slane %v1451, 0
        %v1463 = vunpack.c.l.b16 %v1443
        %v1464 = vunpack.c.l.b16 %v1444
        %v1465 = vunpack.c.l.b16 %v1445
        %v1466 = vunpack.c.l.b16 %v1446
        %v1467 = vunpack.c.l.b16 %v1447
        %v1468 = vunpack.c.l.b16 %v1448
        %v1469 = vunpack.c.l.b16 %v1449
        %v1470 = vunpack.c.l.b16 %v1450
        %v1471 = vpack.c.b16 %v1464, %v1463
        %v1472 = vpack.c.b16 %v1466, %v1465
        %v1473 = vpack.c.b16 %v1468, %v1467
        %v1474 = vpack.c.b16 %v1470, %v1469
        %v1480 = vsel %vm1366, %v1442, 0
        %1482 = vmatpush.bf16.msra.mxu0 0
        %1483 = vmatpush.bf16.msra.mxu0 0
        %1484 = vmatpush.bf16.msra.mxu0 0
        %1485 = vmatpush.bf16.msra.mxu0 0
        %1486 = vmatpush.bf16.msra.mxu0 %v1474
        %1487 = vmatpush.bf16.msra.mxu0 %v1473
        %1488 = vmatpush.bf16.msra.mxu0 %v1472
        %1489 = vmatpush.bf16.msra.mxu0 %v1471
        %1490 = vmatmul.bf16.gmra.mxu0 %v1480
        %v1491 = vpop.f32.mrf.mxu0
        %v1492 = vadd.f32 %v1453, %v1491
        %v1493 = vpop.f32.mrf.mxu0
        %v1494 = vadd.f32 %v1453, %v1493
        %1495 = vdwg.mxu0
        %vm1498 = vcmask 1040384
        %v1499 = vrot.slane %v1492, 7
        %v1500 = vrot.slane %v1494, 7
        %v1501 = vsel %vm1498, %v1499, %v1500
        %v1505 = vsel %vm1498, %v1042, %v1499
        %v1506 = vsel %vm1498, %v1500, 0.0
        %v1507 = vld [vmem:[%s5] sm:$0xff]
        %v1508 = vld [vmem:[%s5 + $0x8] sm:$0xff]
        %v1509 = vld [vmem:[%s5 + $0x10] sm:$0xff]
        %1513 = vrot.lane.b32.xlu0 %v1507, 64
        %v1514 = vpop.permute.xlu0 %1513
        %1515 = vrot.lane.b32.xlu0 %v1508, 64
        %v1516 = vpop.permute.xlu0 %1515
        %1517 = vrot.lane.b32.xlu0 %v1509, 64
        %v1518 = vpop.permute.xlu0 %1517
        %v1522 = vsel %vm1366, %v1505, %v1514
        %v1523 = vsel %vm1366, %v1501, %v1516
        %v1524 = vsel %vm1366, %v1506, %v1518
        %v1525 = vld [vmem:[%s7] sm:$0x1]
        %v1526 = vld [vmem:[%s9] sm:$0x1]
        %1527 = vadd.xlane.f32.xlu0 %v1522
        %v1528 = vpop.xlane.xlu0 %1527
        %1529 = vadd.xlane.f32.xlu0 %v1523
        %v1530 = vpop.xlane.xlu0 %1529
        %1531 = vadd.xlane.f32.xlu0 %v1524
        %v1532 = vpop.xlane.xlu0 %1531
        %v1533 = vrcp.pop 128.0
        %v1534 = vmul.f32 128.0, %v1533
        %v1535 = vsub.f32 1.0, %v1534
        %v1536 = vmul.f32 %v1533, %v1535
        %v1537 = vadd.f32 %v1533, %v1536
        %vm1538 = vweird.f32 %v1533
        %v1539 = vsel %vm1538, %v1533, %v1537
        %v1540 = vmul.f32 %v1528, %v1539
        %v1541 = vmul.f32 %v1530, %v1539
        %v1542 = vmul.f32 %v1532, %v1539
        %v1543 = vsub.f32 %v1522, %v1540
        %v1544 = vsub.f32 %v1523, %v1541
        %v1545 = vsub.f32 %v1524, %v1542
        %v1546 = vmul.f32 %v1543, %v1543
        %v1547 = vmul.f32 %v1544, %v1544
        %v1548 = vmul.f32 %v1545, %v1545
        %1549 = vadd.xlane.f32.xlu0 %v1546
        %v1550 = vpop.xlane.xlu0 %1549
        %1551 = vadd.xlane.f32.xlu0 %v1547
        %v1552 = vpop.xlane.xlu0 %1551
        %1553 = vadd.xlane.f32.xlu0 %v1548
        %v1554 = vpop.xlane.xlu0 %1553
        %v1555 = vmul.f32 %v1550, %v1539
        %v1556 = vmul.f32 %v1552, %v1539
        %v1557 = vmul.f32 %v1554, %v1539
        %v1558 = vadd.f32 %v1555, 1e-05
        %v1559 = vadd.f32 %v1556, 1e-05
        %v1560 = vadd.f32 %v1557, 1e-05
        %v1561 = vrsqrt.pop %v1558
        %v1562 = vmul.f32 %v1561, %v1558
        %v1563 = vmul.f32 %v1562, %v1561
        %v1564 = vmul.f32 0.5, %v1563
        %v1565 = vsub.f32 1.5, %v1564
        %v1566 = vmul.f32 %v1561, %v1565
        %vm1567 = vweird.f32 %v1558
        %vm1568 = vweird.f32 %v1561
        %vm1569 = vmor %vm1567, %vm1568
        %v1570 = vsel %vm1569, %v1561, %v1566
        %v1571 = vrsqrt.pop %v1559
        %v1572 = vmul.f32 %v1571, %v1559
        %v1573 = vmul.f32 %v1572, %v1571
        %v1574 = vmul.f32 0.5, %v1573
        %v1575 = vsub.f32 1.5, %v1574
        %v1576 = vmul.f32 %v1571, %v1575
        %vm1577 = vweird.f32 %v1559
        %vm1578 = vweird.f32 %v1571
        %vm1579 = vmor %vm1577, %vm1578
        %v1580 = vsel %vm1579, %v1571, %v1576
        %v1581 = vrsqrt.pop %v1560
        %v1582 = vmul.f32 %v1581, %v1560
        %v1583 = vmul.f32 %v1582, %v1581
        %v1584 = vmul.f32 0.5, %v1583
        %v1585 = vsub.f32 1.5, %v1584
        %v1586 = vmul.f32 %v1581, %v1585
        %vm1587 = vweird.f32 %v1560
        %vm1588 = vweird.f32 %v1581
        %vm1589 = vmor %vm1587, %vm1588
        %v1590 = vsel %vm1589, %v1581, %v1586
        %v1591 = vmul.f32 %v1543, %v1570
        %v1592 = vmul.f32 %v1544, %v1580
        %v1593 = vmul.f32 %v1545, %v1590
        %v1595 = vperm.slane %v1525, 0
        %v1597 = vmul.f32 %v1591, %v1595
        %v1598 = vmul.f32 %v1592, %v1595
        %v1599 = vmul.f32 %v1593, %v1595
        %v1601 = vperm.slane %v1526, 0
        %v1603 = vadd.f32 %v1597, %v1601
        %v1604 = vadd.f32 %v1598, %v1601
        %v1605 = vadd.f32 %v1599, %v1601
        %v1606 = vpack.c.bf16 %v1604, %v1603
        %v1607 = vpack.c.bf16 %v1605, %v1605
        %v1608 = vld [vmem:[%s33] sm:$0xff]
        %v1609 = vld [vmem:[%s33 + $0x8] sm:$0xf]
        %v1610 = vld [vmem:[%s33 + $0xc] sm:$0xff]
        %v1611 = vld [vmem:[%s33 + $0x14] sm:$0xf]
        %v1612 = vld [vmem:[%s33 + $0x18] sm:$0xff]
        %v1613 = vld [vmem:[%s33 + $0x20] sm:$0xf]
        %v1614 = vld [vmem:[%s33 + $0x24] sm:$0xff]
        %v1615 = vld [vmem:[%s33 + $0x2c] sm:$0xf]
        %v1616 = vld [vmem:[%s33 + $0x30] sm:$0xff]
        %v1617 = vld [vmem:[%s33 + $0x38] sm:$0xf]
        %v1618 = vld [vmem:[%s33 + $0x3c] sm:$0xff]
        %v1619 = vld [vmem:[%s33 + $0x44] sm:$0xf]
        %v1620 = vld [vmem:[%s33 + $0x48] sm:$0xff]
        %v1621 = vld [vmem:[%s33 + $0x50] sm:$0xf]
        %v1622 = vld [vmem:[%s33 + $0x54] sm:$0xff]
        %v1623 = vld [vmem:[%s33 + $0x5c] sm:$0xf]
        %v1624 = vld [vmem:[%s33 + $0x60] sm:$0xff]
        %v1625 = vld [vmem:[%s33 + $0x68] sm:$0xf]
        %v1626 = vld [vmem:[%s33 + $0x6c] sm:$0xff]
        %v1627 = vld [vmem:[%s33 + $0x74] sm:$0xf]
        %v1628 = vld [vmem:[%s33 + $0x78] sm:$0xff]
        %v1629 = vld [vmem:[%s33 + $0x80] sm:$0xf]
        %v1630 = vld [vmem:[%s33 + $0x84] sm:$0xff]
        %v1631 = vld [vmem:[%s33 + $0x8c] sm:$0xf]
        %v1632 = vld [vmem:[%s33 + $0x90] sm:$0xff]
        %v1633 = vld [vmem:[%s33 + $0x98] sm:$0xf]
        %v1634 = vld [vmem:[%s33 + $0x9c] sm:$0xff]
        %v1635 = vld [vmem:[%s33 + $0xa4] sm:$0xf]
        %v1636 = vld [vmem:[%s33 + $0xa8] sm:$0xff]
        %v1637 = vld [vmem:[%s33 + $0xb0] sm:$0xf]
        %v1638 = vld [vmem:[%s33 + $0xb4] sm:$0xff]
        %v1639 = vld [vmem:[%s33 + $0xbc] sm:$0xf]
        %v1640 = vld [vmem:[%s35] sm:$0x7]
        %v1642 = vperm.slane %v1640, 0
        %v1643 = vperm.slane %v1640, 1
        %v1644 = vperm.slane %v1640, 2
        %v1680 = vunpack.c.l.b16 %v1608
        %v1681 = vunpack.c.h.b16 %v1608
        %v1682 = vunpack.c.l.b16 %v1609
        %v1683 = vunpack.c.l.b16 %v1610
        %v1684 = vunpack.c.h.b16 %v1610
        %v1685 = vunpack.c.l.b16 %v1611
        %v1686 = vunpack.c.l.b16 %v1612
        %v1687 = vunpack.c.h.b16 %v1612
        %v1688 = vunpack.c.l.b16 %v1613
        %v1689 = vunpack.c.l.b16 %v1614
        %v1690 = vunpack.c.h.b16 %v1614
        %v1691 = vunpack.c.l.b16 %v1615
        %v1692 = vunpack.c.l.b16 %v1616
        %v1693 = vunpack.c.h.b16 %v1616
        %v1694 = vunpack.c.l.b16 %v1617
        %v1695 = vunpack.c.l.b16 %v1618
        %v1696 = vunpack.c.h.b16 %v1618
        %v1697 = vunpack.c.l.b16 %v1619
        %v1698 = vunpack.c.l.b16 %v1620
        %v1699 = vunpack.c.h.b16 %v1620
        %v1700 = vunpack.c.l.b16 %v1621
        %v1701 = vunpack.c.l.b16 %v1622
        %v1702 = vunpack.c.h.b16 %v1622
        %v1703 = vunpack.c.l.b16 %v1623
        %v1704 = vunpack.c.l.b16 %v1624
        %v1705 = vunpack.c.h.b16 %v1624
        %v1706 = vunpack.c.l.b16 %v1625
        %v1707 = vunpack.c.l.b16 %v1626
        %v1708 = vunpack.c.h.b16 %v1626
        %v1709 = vunpack.c.l.b16 %v1627
        %v1710 = vunpack.c.l.b16 %v1628
        %v1711 = vunpack.c.h.b16 %v1628
        %v1712 = vunpack.c.l.b16 %v1629
        %v1713 = vunpack.c.l.b16 %v1630
        %v1714 = vunpack.c.h.b16 %v1630
        %v1715 = vunpack.c.l.b16 %v1631
        %v1716 = vunpack.c.l.b16 %v1632
        %v1717 = vunpack.c.h.b16 %v1632
        %v1718 = vunpack.c.l.b16 %v1633
        %v1719 = vunpack.c.l.b16 %v1634
        %v1720 = vunpack.c.h.b16 %v1634
        %v1721 = vunpack.c.l.b16 %v1635
        %v1722 = vunpack.c.l.b16 %v1636
        %v1723 = vunpack.c.h.b16 %v1636
        %v1724 = vunpack.c.l.b16 %v1637
        %v1725 = vunpack.c.l.b16 %v1638
        %v1726 = vunpack.c.h.b16 %v1638
        %v1727 = vunpack.c.l.b16 %v1639
        %v1728 = vpack.c.b16 %v1683, %v1680
        %v1729 = vpack.c.b16 %v1684, %v1681
        %v1730 = vpack.c.b16 %v1685, %v1682
        %v1731 = vpack.c.b16 %v1689, %v1686
        %v1732 = vpack.c.b16 %v1690, %v1687
        %v1733 = vpack.c.b16 %v1691, %v1688
        %v1734 = vpack.c.b16 %v1695, %v1692
        %v1735 = vpack.c.b16 %v1696, %v1693
        %v1736 = vpack.c.b16 %v1697, %v1694
        %v1737 = vpack.c.b16 %v1701, %v1698
        %v1738 = vpack.c.b16 %v1702, %v1699
        %v1739 = vpack.c.b16 %v1703, %v1700
        %v1740 = vpack.c.b16 %v1707, %v1704
        %v1741 = vpack.c.b16 %v1708, %v1705
        %v1742 = vpack.c.b16 %v1709, %v1706
        %v1743 = vpack.c.b16 %v1713, %v1710
        %v1744 = vpack.c.b16 %v1714, %v1711
        %v1745 = vpack.c.b16 %v1715, %v1712
        %v1746 = vpack.c.b16 %v1719, %v1716
        %v1747 = vpack.c.b16 %v1720, %v1717
        %v1748 = vpack.c.b16 %v1721, %v1718
        %v1749 = vpack.c.b16 %v1725, %v1722
        %v1750 = vpack.c.b16 %v1726, %v1723
        %v1751 = vpack.c.b16 %v1727, %v1724
        %1776 = vmatpush.bf16.msra.mxu0 %v1749
        %1777 = vmatpush.bf16.msra.mxu0 %v1746
        %1778 = vmatpush.bf16.msra.mxu0 %v1743
        %1779 = vmatpush.bf16.msra.mxu0 %v1740
        %1780 = vmatpush.bf16.msra.mxu0 %v1737
        %1781 = vmatpush.bf16.msra.mxu0 %v1734
        %1782 = vmatpush.bf16.msra.mxu0 %v1731
        %1783 = vmatpush.bf16.msra.mxu0 %v1728
        %1784 = vmatmul.bf16.gmra.mxu0 %v1606
        %v1785 = vpop.f32.mrf.mxu0
        %v1786 = vadd.f32 %v1642, %v1785
        %v1787 = vpop.f32.mrf.mxu0
        %v1788 = vadd.f32 %v1642, %v1787
        %1789 = vmatmul.bf16.gmra.mxu0 %v1607
        %v1790 = vpop.f32.mrf.mxu0
        %v1791 = vadd.f32 %v1642, %v1790
        %v1792 = vpop.f32.mrf.mxu0
        %1793 = vdwg.mxu0
        %1794 = vmatpush.bf16.msra.mxu0 %v1750
        %1795 = vmatpush.bf16.msra.mxu0 %v1747
        %1796 = vmatpush.bf16.msra.mxu0 %v1744
        %1797 = vmatpush.bf16.msra.mxu0 %v1741
        %1798 = vmatpush.bf16.msra.mxu0 %v1738
        %1799 = vmatpush.bf16.msra.mxu0 %v1735
        %1800 = vmatpush.bf16.msra.mxu0 %v1732
        %1801 = vmatpush.bf16.msra.mxu0 %v1729
        %1802 = vmatmul.bf16.gmra.mxu0 %v1606
        %v1803 = vpop.f32.mrf.mxu0
        %v1804 = vadd.f32 %v1643, %v1803
        %v1805 = vpop.f32.mrf.mxu0
        %v1806 = vadd.f32 %v1643, %v1805
        %1807 = vmatmul.bf16.gmra.mxu0 %v1607
        %v1808 = vpop.f32.mrf.mxu0
        %v1809 = vadd.f32 %v1643, %v1808
        %v1810 = vpop.f32.mrf.mxu0
        %1811 = vdwg.mxu0
        %1812 = vmatpush.bf16.msra.mxu0 %v1751
        %1813 = vmatpush.bf16.msra.mxu0 %v1748
        %1814 = vmatpush.bf16.msra.mxu0 %v1745
        %1815 = vmatpush.bf16.msra.mxu0 %v1742
        %1816 = vmatpush.bf16.msra.mxu0 %v1739
        %1817 = vmatpush.bf16.msra.mxu0 %v1736
        %1818 = vmatpush.bf16.msra.mxu0 %v1733
        %1819 = vmatpush.bf16.msra.mxu0 %v1730
        %1820 = vmatmul.bf16.gmra.mxu0 %v1606
        %v1821 = vpop.f32.mrf.mxu0
        %v1822 = vadd.f32 %v1644, %v1821
        %v1823 = vpop.f32.mrf.mxu0
        %v1824 = vadd.f32 %v1644, %v1823
        %1825 = vmatmul.bf16.gmra.mxu0 %v1607
        %v1826 = vpop.f32.mrf.mxu0
        %v1827 = vadd.f32 %v1644, %v1826
        %v1828 = vpop.f32.mrf.mxu0
        %1829 = vdwg.mxu0
        %v1830 = vmul.f32 %v1786, 0.17677669
        %v1831 = vmul.f32 %v1788, 0.17677669
        %v1832 = vmul.f32 %v1791, 0.17677669
        %1836 = vrot.lane.b32.xlu0 %v1830, 96
        %v1837 = vpop.permute.xlu0 %1836
        %1838 = vrot.lane.b32.xlu0 %v1831, 96
        %v1839 = vpop.permute.xlu0 %1838
        %1840 = vrot.lane.b32.xlu0 %v1832, 96
        %v1841 = vpop.permute.xlu0 %1840
        %1845 = vrot.lane.b32.xlu0 %v1830, 64
        %v1846 = vpop.permute.xlu0 %1845
        %1847 = vrot.lane.b32.xlu0 %v1831, 64
        %v1848 = vpop.permute.xlu0 %1847
        %1849 = vrot.lane.b32.xlu0 %v1832, 64
        %v1850 = vpop.permute.xlu0 %1849
        %1854 = vrot.lane.b32.xlu0 %v1830, 32
        %v1855 = vpop.permute.xlu0 %1854
        %1856 = vrot.lane.b32.xlu0 %v1831, 32
        %v1857 = vpop.permute.xlu0 %1856
        %1858 = vrot.lane.b32.xlu0 %v1832, 32
        %v1859 = vpop.permute.xlu0 %1858
        %1866 = vrot.lane.b32.xlu0 %v1804, 96
        %v1867 = vpop.permute.xlu0 %1866
        %1868 = vrot.lane.b32.xlu0 %v1806, 96
        %v1869 = vpop.permute.xlu0 %1868
        %1870 = vrot.lane.b32.xlu0 %v1809, 96
        %v1871 = vpop.permute.xlu0 %1870
        %1875 = vrot.lane.b32.xlu0 %v1804, 64
        %v1876 = vpop.permute.xlu0 %1875
        %1877 = vrot.lane.b32.xlu0 %v1806, 64
        %v1878 = vpop.permute.xlu0 %1877
        %1879 = vrot.lane.b32.xlu0 %v1809, 64
        %v1880 = vpop.permute.xlu0 %1879
        %1884 = vrot.lane.b32.xlu0 %v1804, 32
        %v1885 = vpop.permute.xlu0 %1884
        %1886 = vrot.lane.b32.xlu0 %v1806, 32
        %v1887 = vpop.permute.xlu0 %1886
        %1888 = vrot.lane.b32.xlu0 %v1809, 32
        %v1889 = vpop.permute.xlu0 %1888
        %1896 = vrot.lane.b32.xlu0 %v1822, 96
        %v1897 = vpop.permute.xlu0 %1896
        %1898 = vrot.lane.b32.xlu0 %v1824, 96
        %v1899 = vpop.permute.xlu0 %1898
        %1900 = vrot.lane.b32.xlu0 %v1827, 96
        %v1901 = vpop.permute.xlu0 %1900
        %1905 = vrot.lane.b32.xlu0 %v1822, 64
        %v1906 = vpop.permute.xlu0 %1905
        %1907 = vrot.lane.b32.xlu0 %v1824, 64
        %v1908 = vpop.permute.xlu0 %1907
        %1909 = vrot.lane.b32.xlu0 %v1827, 64
        %v1910 = vpop.permute.xlu0 %1909
        %1914 = vrot.lane.b32.xlu0 %v1822, 32
        %v1915 = vpop.permute.xlu0 %1914
        %1916 = vrot.lane.b32.xlu0 %v1824, 32
        %v1917 = vpop.permute.xlu0 %1916
        %1918 = vrot.lane.b32.xlu0 %v1827, 32
        %v1919 = vpop.permute.xlu0 %1918
        %v1923 = vpack.c.bf16 %v1831, %v1830
        %v1924 = vpack.c.bf16 %v1837, %v1832
        %v1925 = vpack.c.bf16 %v1841, %v1839
        %v1926 = vpack.c.bf16 %v1848, %v1846
        %v1927 = vpack.c.bf16 %v1855, %v1850
        %v1928 = vpack.c.bf16 %v1859, %v1857
        %v1929 = vpack.c.bf16 %v1806, %v1804
        %v1930 = vpack.c.bf16 %v1867, %v1809
        %v1931 = vpack.c.bf16 %v1871, %v1869
        %v1932 = vpack.c.bf16 %v1878, %v1876
        %v1933 = vpack.c.bf16 %v1885, %v1880
        %v1934 = vpack.c.bf16 %v1889, %v1887
        %v1935 = vld [vmem:[%s31] sm:$0xff]
        %v1936 = vld [vmem:[%s31 + $0x8] sm:$0xff]
        %v1937 = vld [vmem:[%s31 + $0x10] sm:$0xff]
        %v1938 = vld [vmem:[%s31 + $0x18] sm:$0xff]
        %v1939 = vld [vmem:[%s31 + $0x20] sm:$0xff]
        %v1940 = vld [vmem:[%s31 + $0x28] sm:$0xff]
        %v1941 = vld [vmem:[%s31 + $0x30] sm:$0xff]
        %v1942 = vld [vmem:[%s31 + $0x38] sm:$0xff]
        %v1943 = vld [vmem:[%s31 + $0x40] sm:$0xff]
        %v1944 = vld [vmem:[%s31 + $0x48] sm:$0xff]
        %v1945 = vld [vmem:[%s31 + $0x50] sm:$0xff]
        %v1946 = vld [vmem:[%s31 + $0x58] sm:$0xff]
        %v1948 = vsel %vm990, %v1923, 0
        %v1951 = vsel %vm990, %v1924, 0
        %v1954 = vsel %vm990, %v1925, 0
        %v1957 = vsel %vm990, %v1926, 0
        %v1960 = vsel %vm990, %v1927, 0
        %v1963 = vsel %vm990, %v1928, 0
        %v1966 = vsel %vm990, %v1929, 0
        %v1969 = vsel %vm990, %v1930, 0
        %v1972 = vsel %vm990, %v1931, 0
        %v1975 = vsel %vm990, %v1932, 0
        %v1978 = vsel %vm990, %v1933, 0
        %v1981 = vsel %vm990, %v1934, 0
        %1983 = vmatpush.bf16.xpose.msra.mxu0 0
        %1984 = vmatpush.bf16.xpose.msra.mxu0 0
        %1985 = vmatpush.bf16.xpose.msra.mxu0 %v1981
        %1986 = vmatpush.bf16.xpose.msra.mxu0 %v1978
        %1987 = vmatpush.bf16.xpose.msra.mxu0 %v1975
        %1988 = vmatpush.bf16.xpose.msra.mxu0 %v1972
        %1989 = vmatpush.bf16.xpose.msra.mxu0 %v1969
        %1990 = vmatpush.bf16.xpose.msra.mxu0 %v1966
        %1991 = vmatmul.bf16.gmra.mxu0 %v1948
        %v1992 = vpop.f32.mrf.mxu0
        %v1993 = vadd.f32 %v1935, %v1992
        %v1994 = vpop.f32.mrf.mxu0
        %v1995 = vadd.f32 %v1936, %v1994
        %1996 = vmatmul.bf16.gmra.mxu0 %v1951
        %v1997 = vpop.f32.mrf.mxu0
        %v1998 = vadd.f32 %v1937, %v1997
        %v1999 = vpop.f32.mrf.mxu0
        %v2000 = vadd.f32 %v1938, %v1999
        %2001 = vmatmul.bf16.gmra.mxu0 %v1954
        %v2002 = vpop.f32.mrf.mxu0
        %v2003 = vadd.f32 %v1939, %v2002
        %v2004 = vpop.f32.mrf.mxu0
        %v2005 = vadd.f32 %v1940, %v2004
        %2006 = vmatmul.bf16.gmra.mxu0 %v1957
        %v2007 = vpop.f32.mrf.mxu0
        %v2008 = vadd.f32 %v1941, %v2007
        %v2009 = vpop.f32.mrf.mxu0
        %v2010 = vadd.f32 %v1942, %v2009
        %2011 = vmatmul.bf16.gmra.mxu0 %v1960
        %v2012 = vpop.f32.mrf.mxu0
        %v2013 = vadd.f32 %v1943, %v2012
        %v2014 = vpop.f32.mrf.mxu0
        %v2015 = vadd.f32 %v1944, %v2014
        %2016 = vmatmul.bf16.gmra.mxu0 %v1963
        %v2017 = vpop.f32.mrf.mxu0
        %v2018 = vadd.f32 %v1945, %v2017
        %v2019 = vpop.f32.mrf.mxu0
        %v2020 = vadd.f32 %v1946, %v2019
        %2021 = vdwg.mxu0
        %vm2022 = vcmask 785408
        %v2023 = vsel %vm2022, %v1993, -inf
        %2024 = vmax.xlane.f32.xlu0 %v2023
        %v2025 = vpop.xlane.xlu0 %2024
        %v2026 = vsel %vm2022, %v1995, -inf
        %2027 = vmax.xlane.f32.xlu0 %v2026
        %v2028 = vpop.xlane.xlu0 %2027
        %v2029 = vsel %vm2022, %v1998, -inf
        %2030 = vmax.xlane.f32.xlu0 %v2029
        %v2031 = vpop.xlane.xlu0 %2030
        %v2032 = vsel %vm2022, %v2000, -inf
        %2033 = vmax.xlane.f32.xlu0 %v2032
        %v2034 = vpop.xlane.xlu0 %2033
        %v2035 = vsel %vm2022, %v2003, -inf
        %2036 = vmax.xlane.f32.xlu0 %v2035
        %v2037 = vpop.xlane.xlu0 %2036
        %v2038 = vsel %vm2022, %v2005, -inf
        %2039 = vmax.xlane.f32.xlu0 %v2038
        %v2040 = vpop.xlane.xlu0 %2039
        %v2041 = vsel %vm2022, %v2008, -inf
        %2042 = vmax.xlane.f32.xlu0 %v2041
        %v2043 = vpop.xlane.xlu0 %2042
        %v2044 = vsel %vm2022, %v2010, -inf
        %2045 = vmax.xlane.f32.xlu0 %v2044
        %v2046 = vpop.xlane.xlu0 %2045
        %v2047 = vsel %vm2022, %v2013, -inf
        %2048 = vmax.xlane.f32.xlu0 %v2047
        %v2049 = vpop.xlane.xlu0 %2048
        %v2050 = vsel %vm2022, %v2015, -inf
        %2051 = vmax.xlane.f32.xlu0 %v2050
        %v2052 = vpop.xlane.xlu0 %2051
        %v2053 = vsel %vm2022, %v2018, -inf
        %2054 = vmax.xlane.f32.xlu0 %v2053
        %v2055 = vpop.xlane.xlu0 %2054
        %v2056 = vsel %vm2022, %v2020, -inf
        %2057 = vmax.xlane.f32.xlu0 %v2056
        %v2058 = vpop.xlane.xlu0 %2057
        %v2059 = vsub.f32 %v1993, %v2025
        %v2060 = vsub.f32 %v1995, %v2028
        %v2061 = vsub.f32 %v1998, %v2031
        %v2062 = vsub.f32 %v2000, %v2034
        %v2063 = vsub.f32 %v2003, %v2037
        %v2064 = vsub.f32 %v2005, %v2040
        %v2065 = vsub.f32 %v2008, %v2043
        %v2066 = vsub.f32 %v2010, %v2046
        %v2067 = vsub.f32 %v2013, %v2049
        %v2068 = vsub.f32 %v2015, %v2052
        %v2069 = vsub.f32 %v2018, %v2055
        %v2070 = vsub.f32 %v2020, %v2058
        %v2071 = vmul.f32 %v2059, 1.442695
        %v2072 = vpow.pop %v2071
        %v2073 = vmul.f32 %v2060, 1.442695
        %v2074 = vpow.pop %v2073
        %v2075 = vmul.f32 %v2061, 1.442695
        %v2076 = vpow.pop %v2075
        %v2077 = vmul.f32 %v2062, 1.442695
        %v2078 = vpow.pop %v2077
        %v2079 = vmul.f32 %v2063, 1.442695
        %v2080 = vpow.pop %v2079
        %v2081 = vmul.f32 %v2064, 1.442695
        %v2082 = vpow.pop %v2081
        %v2083 = vmul.f32 %v2065, 1.442695
        %v2084 = vpow.pop %v2083
        %v2085 = vmul.f32 %v2066, 1.442695
        %v2086 = vpow.pop %v2085
        %v2087 = vmul.f32 %v2067, 1.442695
        %v2088 = vpow.pop %v2087
        %v2089 = vmul.f32 %v2068, 1.442695
        %v2090 = vpow.pop %v2089
        %v2091 = vmul.f32 %v2069, 1.442695
        %v2092 = vpow.pop %v2091
        %v2093 = vmul.f32 %v2070, 1.442695
        %v2094 = vpow.pop %v2093
        %v2095 = vsel %vm2022, %v2072, 0.0
        %2096 = vadd.xlane.f32.xlu0 %v2095
        %v2097 = vpop.xlane.xlu0 %2096
        %v2098 = vsel %vm2022, %v2074, 0.0
        %2099 = vadd.xlane.f32.xlu0 %v2098
        %v2100 = vpop.xlane.xlu0 %2099
        %v2101 = vsel %vm2022, %v2076, 0.0
        %2102 = vadd.xlane.f32.xlu0 %v2101
        %v2103 = vpop.xlane.xlu0 %2102
        %v2104 = vsel %vm2022, %v2078, 0.0
        %2105 = vadd.xlane.f32.xlu0 %v2104
        %v2106 = vpop.xlane.xlu0 %2105
        %v2107 = vsel %vm2022, %v2080, 0.0
        %2108 = vadd.xlane.f32.xlu0 %v2107
        %v2109 = vpop.xlane.xlu0 %2108
        %v2110 = vsel %vm2022, %v2082, 0.0
        %2111 = vadd.xlane.f32.xlu0 %v2110
        %v2112 = vpop.xlane.xlu0 %2111
        %v2113 = vsel %vm2022, %v2084, 0.0
        %2114 = vadd.xlane.f32.xlu0 %v2113
        %v2115 = vpop.xlane.xlu0 %2114
        %v2116 = vsel %vm2022, %v2086, 0.0
        %2117 = vadd.xlane.f32.xlu0 %v2116
        %v2118 = vpop.xlane.xlu0 %2117
        %v2119 = vsel %vm2022, %v2088, 0.0
        %2120 = vadd.xlane.f32.xlu0 %v2119
        %v2121 = vpop.xlane.xlu0 %2120
        %v2122 = vsel %vm2022, %v2090, 0.0
        %2123 = vadd.xlane.f32.xlu0 %v2122
        %v2124 = vpop.xlane.xlu0 %2123
        %v2125 = vsel %vm2022, %v2092, 0.0
        %2126 = vadd.xlane.f32.xlu0 %v2125
        %v2127 = vpop.xlane.xlu0 %2126
        %v2128 = vsel %vm2022, %v2094, 0.0
        %2129 = vadd.xlane.f32.xlu0 %v2128
        %v2130 = vpop.xlane.xlu0 %2129
        %v2131 = vrcp.pop %v2097
        %v2132 = vrcp.pop %v2100
        %v2133 = vrcp.pop %v2103
        %v2134 = vrcp.pop %v2106
        %v2135 = vrcp.pop %v2109
        %v2136 = vrcp.pop %v2112
        %v2137 = vrcp.pop %v2115
        %v2138 = vrcp.pop %v2118
        %v2139 = vrcp.pop %v2121
        %v2140 = vrcp.pop %v2124
        %v2141 = vrcp.pop %v2127
        %v2142 = vrcp.pop %v2130
        %v2143 = vmul.f32 %v2072, %v2131
        %v2144 = vmul.f32 %v2074, %v2132
        %v2145 = vmul.f32 %v2076, %v2133
        %v2146 = vmul.f32 %v2078, %v2134
        %v2147 = vmul.f32 %v2080, %v2135
        %v2148 = vmul.f32 %v2082, %v2136
        %v2149 = vmul.f32 %v2084, %v2137
        %v2150 = vmul.f32 %v2086, %v2138
        %v2151 = vmul.f32 %v2088, %v2139
        %v2152 = vmul.f32 %v2090, %v2140
        %v2153 = vmul.f32 %v2092, %v2141
        %v2154 = vmul.f32 %v2094, %v2142
        %v2155 = vpack.c.bf16 %v2144, %v2143
        %v2156 = vpack.c.bf16 %v2146, %v2145
        %v2157 = vpack.c.bf16 %v2148, %v2147
        %v2158 = vpack.c.bf16 %v2150, %v2149
        %v2159 = vpack.c.bf16 %v2152, %v2151
        %v2160 = vpack.c.bf16 %v2154, %v2153
        %v2161 = vpack.c.bf16 %v1824, %v1822
        %v2162 = vpack.c.bf16 %v1897, %v1827
        %v2163 = vpack.c.bf16 %v1901, %v1899
        %v2164 = vpack.c.bf16 %v1908, %v1906
        %v2165 = vpack.c.bf16 %v1915, %v1910
        %v2166 = vpack.c.bf16 %v1919, %v1917
        %v2168 = vsel %vm2022, %v2155, 0
        %v2171 = vsel %vm2022, %v2156, 0
        %v2174 = vsel %vm2022, %v2157, 0
        %v2177 = vsel %vm2022, %v2158, 0
        %v2180 = vsel %vm2022, %v2159, 0
        %v2183 = vsel %vm2022, %v2160, 0
        %2185 = vmatpush.bf16.msra.mxu0 0
        %2186 = vmatpush.bf16.msra.mxu0 0
        %2187 = vmatpush.bf16.msra.mxu0 %v2166
        %2188 = vmatpush.bf16.msra.mxu0 %v2165
        %2189 = vmatpush.bf16.msra.mxu0 %v2164
        %2190 = vmatpush.bf16.msra.mxu0 %v2163
        %2191 = vmatpush.bf16.msra.mxu0 %v2162
        %2192 = vmatpush.bf16.msra.mxu0 %v2161
        %2193 = vmatmul.bf16.gmra.mxu0 %v2168
        %v2194 = vpop.f32.mrf.mxu0
        %v2195 = vadd.f32 0.0, %v2194
        %v2196 = vpop.f32.mrf.mxu0
        %v2197 = vadd.f32 0.0, %v2196
        %2198 = vmatmul.bf16.gmra.mxu0 %v2171
        %v2199 = vpop.f32.mrf.mxu0
        %v2200 = vadd.f32 0.0, %v2199
        %v2201 = vpop.f32.mrf.mxu0
        %v2202 = vadd.f32 0.0, %v2201
        %2203 = vmatmul.bf16.gmra.mxu0 %v2174
        %v2204 = vpop.f32.mrf.mxu0
        %v2205 = vadd.f32 0.0, %v2204
        %v2206 = vpop.f32.mrf.mxu0
        %v2207 = vadd.f32 0.0, %v2206
        %2208 = vmatmul.bf16.gmra.mxu0 %v2177
        %v2209 = vpop.f32.mrf.mxu0
        %v2210 = vadd.f32 0.0, %v2209
        %v2211 = vpop.f32.mrf.mxu0
        %v2212 = vadd.f32 0.0, %v2211
        %2213 = vmatmul.bf16.gmra.mxu0 %v2180
        %v2214 = vpop.f32.mrf.mxu0
        %v2215 = vadd.f32 0.0, %v2214
        %v2216 = vpop.f32.mrf.mxu0
        %v2217 = vadd.f32 0.0, %v2216
        %2218 = vmatmul.bf16.gmra.mxu0 %v2183
        %v2219 = vpop.f32.mrf.mxu0
        %v2220 = vadd.f32 0.0, %v2219
        %v2221 = vpop.f32.mrf.mxu0
        %v2222 = vadd.f32 0.0, %v2221
        %2223 = vdwg.mxu0
        %2227 = vrot.lane.b32.xlu0 %v2202, 32
        %v2228 = vpop.permute.xlu0 %2227
        %2229 = vrot.lane.b32.xlu0 %v2205, 32
        %v2230 = vpop.permute.xlu0 %2229
        %2231 = vrot.lane.b32.xlu0 %v2207, 32
        %v2232 = vpop.permute.xlu0 %2231
        %2239 = vrot.lane.b32.xlu0 %v2210, 64
        %v2240 = vpop.permute.xlu0 %2239
        %2241 = vrot.lane.b32.xlu0 %v2212, 64
        %v2242 = vpop.permute.xlu0 %2241
        %2243 = vrot.lane.b32.xlu0 %v2215, 64
        %v2244 = vpop.permute.xlu0 %2243
        %2251 = vrot.lane.b32.xlu0 %v2217, 96
        %v2252 = vpop.permute.xlu0 %2251
        %2253 = vrot.lane.b32.xlu0 %v2220, 96
        %v2254 = vpop.permute.xlu0 %2253
        %2255 = vrot.lane.b32.xlu0 %v2222, 96
        %v2256 = vpop.permute.xlu0 %2255
        %v2260 = vsel %vm990, %v2195, %v2228
        %v2261 = vsel %vm990, %v2197, %v2230
        %v2262 = vsel %vm990, %v2200, %v2232
        %v2263 = vsel %vm1366, %v2260, %v2240
        %v2264 = vsel %vm1366, %v2261, %v2242
        %v2265 = vsel %vm1366, %v2262, %v2244
        %v2266 = vsel %vm2022, %v2263, %v2252
        %v2267 = vsel %vm2022, %v2264, %v2254
        %v2268 = vsel %vm2022, %v2265, %v2256
        %v2269 = vpack.c.bf16 %v2267, %v2266
        %v2270 = vpack.c.bf16 %v2268, %v2268
        %v2271 = vld [vmem:[%s37] sm:$0xf]
        %v2272 = vld [vmem:[%s37 + $0x4] sm:$0xf]
        %v2273 = vld [vmem:[%s37 + $0x8] sm:$0xf]
        %v2274 = vld [vmem:[%s37 + $0xc] sm:$0xf]
        %v2275 = vld [vmem:[%s37 + $0x10] sm:$0xf]
        %v2276 = vld [vmem:[%s37 + $0x14] sm:$0xf]
        %v2277 = vld [vmem:[%s37 + $0x18] sm:$0xf]
        %v2278 = vld [vmem:[%s37 + $0x1c] sm:$0xf]
        %v2279 = vld [vmem:[%s37 + $0x20] sm:$0xf]
        %v2280 = vld [vmem:[%s37 + $0x24] sm:$0xf]
        %v2281 = vld [vmem:[%s37 + $0x28] sm:$0xf]
        %v2282 = vld [vmem:[%s37 + $0x2c] sm:$0xf]
        %v2283 = vld [vmem:[%s37 + $0x30] sm:$0xf]
        %v2284 = vld [vmem:[%s37 + $0x34] sm:$0xf]
        %v2285 = vld [vmem:[%s37 + $0x38] sm:$0xf]
        %v2286 = vld [vmem:[%s37 + $0x3c] sm:$0xf]
        %v2287 = vld [vmem:[%s39] sm:$0x1]
        %v2289 = vperm.slane %v2287, 0
        %v2307 = vunpack.c.l.b16 %v2271
        %v2308 = vunpack.c.l.b16 %v2272
        %v2309 = vunpack.c.l.b16 %v2273
        %v2310 = vunpack.c.l.b16 %v2274
        %v2311 = vunpack.c.l.b16 %v2275
        %v2312 = vunpack.c.l.b16 %v2276
        %v2313 = vunpack.c.l.b16 %v2277
        %v2314 = vunpack.c.l.b16 %v2278
        %v2315 = vunpack.c.l.b16 %v2279
        %v2316 = vunpack.c.l.b16 %v2280
        %v2317 = vunpack.c.l.b16 %v2281
        %v2318 = vunpack.c.l.b16 %v2282
        %v2319 = vunpack.c.l.b16 %v2283
        %v2320 = vunpack.c.l.b16 %v2284
        %v2321 = vunpack.c.l.b16 %v2285
        %v2322 = vunpack.c.l.b16 %v2286
        %v2323 = vpack.c.b16 %v2308, %v2307
        %v2324 = vpack.c.b16 %v2310, %v2309
        %v2325 = vpack.c.b16 %v2312, %v2311
        %v2326 = vpack.c.b16 %v2314, %v2313
        %v2327 = vpack.c.b16 %v2316, %v2315
        %v2328 = vpack.c.b16 %v2318, %v2317
        %v2329 = vpack.c.b16 %v2320, %v2319
        %v2330 = vpack.c.b16 %v2322, %v2321
        %2339 = vmatpush.bf16.msra.mxu0 %v2330
        %2340 = vmatpush.bf16.msra.mxu0 %v2329
        %2341 = vmatpush.bf16.msra.mxu0 %v2328
        %2342 = vmatpush.bf16.msra.mxu0 %v2327
        %2343 = vmatpush.bf16.msra.mxu0 %v2326
        %2344 = vmatpush.bf16.msra.mxu0 %v2325
        %2345 = vmatpush.bf16.msra.mxu0 %v2324
        %2346 = vmatpush.bf16.msra.mxu0 %v2323
        %2347 = vmatmul.bf16.gmra.mxu0 %v2269
        %v2348 = vpop.f32.mrf.mxu0
        %v2349 = vadd.f32 %v2289, %v2348
        %v2350 = vpop.f32.mrf.mxu0
        %v2351 = vadd.f32 %v2289, %v2350
        %2352 = vmatmul.bf16.gmra.mxu0 %v2270
        %v2353 = vpop.f32.mrf.mxu0
        %v2354 = vadd.f32 %v2289, %v2353
        %v2355 = vpop.f32.mrf.mxu0
        %2356 = vdwg.mxu0
        %v2357 = vadd.f32 %v1603, %v2349
        %v2358 = vadd.f32 %v1604, %v2351
        %v2359 = vadd.f32 %v1605, %v2354
        %v2360 = vld [vmem:[%s41] sm:$0x1]
        %v2361 = vld [vmem:[%s43] sm:$0x1]
        %2362 = vadd.xlane.f32.xlu0 %v2357
        %v2363 = vpop.xlane.xlu0 %2362
        %2364 = vadd.xlane.f32.xlu0 %v2358
        %v2365 = vpop.xlane.xlu0 %2364
        %2366 = vadd.xlane.f32.xlu0 %v2359
        %v2367 = vpop.xlane.xlu0 %2366
        %v2368 = vmul.f32 %v2363, %v1539
        %v2369 = vmul.f32 %v2365, %v1539
        %v2370 = vmul.f32 %v2367, %v1539
        %v2371 = vsub.f32 %v2357, %v2368
        %v2372 = vsub.f32 %v2358, %v2369
        %v2373 = vsub.f32 %v2359, %v2370
        %v2374 = vmul.f32 %v2371, %v2371
        %v2375 = vmul.f32 %v2372, %v2372
        %v2376 = vmul.f32 %v2373, %v2373
        %2377 = vadd.xlane.f32.xlu0 %v2374
        %v2378 = vpop.xlane.xlu0 %2377
        %2379 = vadd.xlane.f32.xlu0 %v2375
        %v2380 = vpop.xlane.xlu0 %2379
        %2381 = vadd.xlane.f32.xlu0 %v2376
        %v2382 = vpop.xlane.xlu0 %2381
        %v2383 = vmul.f32 %v2378, %v1539
        %v2384 = vmul.f32 %v2380, %v1539
        %v2385 = vmul.f32 %v2382, %v1539
        %v2386 = vadd.f32 %v2383, 1e-05
        %v2387 = vadd.f32 %v2384, 1e-05
        %v2388 = vadd.f32 %v2385, 1e-05
        %v2389 = vrsqrt.pop %v2386
        %v2390 = vmul.f32 %v2389, %v2386
        %v2391 = vmul.f32 %v2390, %v2389
        %v2392 = vmul.f32 0.5, %v2391
        %v2393 = vsub.f32 1.5, %v2392
        %v2394 = vmul.f32 %v2389, %v2393
        %vm2395 = vweird.f32 %v2386
        %vm2396 = vweird.f32 %v2389
        %vm2397 = vmor %vm2395, %vm2396
        %v2398 = vsel %vm2397, %v2389, %v2394
        %v2399 = vrsqrt.pop %v2387
        %v2400 = vmul.f32 %v2399, %v2387
        %v2401 = vmul.f32 %v2400, %v2399
        %v2402 = vmul.f32 0.5, %v2401
        %v2403 = vsub.f32 1.5, %v2402
        %v2404 = vmul.f32 %v2399, %v2403
        %vm2405 = vweird.f32 %v2387
        %vm2406 = vweird.f32 %v2399
        %vm2407 = vmor %vm2405, %vm2406
        %v2408 = vsel %vm2407, %v2399, %v2404
        %v2409 = vrsqrt.pop %v2388
        %v2410 = vmul.f32 %v2409, %v2388
        %v2411 = vmul.f32 %v2410, %v2409
        %v2412 = vmul.f32 0.5, %v2411
        %v2413 = vsub.f32 1.5, %v2412
        %v2414 = vmul.f32 %v2409, %v2413
        %vm2415 = vweird.f32 %v2388
        %vm2416 = vweird.f32 %v2409
        %vm2417 = vmor %vm2415, %vm2416
        %v2418 = vsel %vm2417, %v2409, %v2414
        %v2419 = vmul.f32 %v2371, %v2398
        %v2420 = vmul.f32 %v2372, %v2408
        %v2421 = vmul.f32 %v2373, %v2418
        %v2423 = vperm.slane %v2360, 0
        %v2425 = vmul.f32 %v2419, %v2423
        %v2426 = vmul.f32 %v2420, %v2423
        %v2427 = vmul.f32 %v2421, %v2423
        %v2429 = vperm.slane %v2361, 0
        %v2431 = vadd.f32 %v2425, %v2429
        %v2432 = vadd.f32 %v2426, %v2429
        %v2433 = vadd.f32 %v2427, %v2429
        %v2434 = vpack.c.bf16 %v2432, %v2431
        %v2435 = vpack.c.bf16 %v2433, %v2433
        %v2436 = vld [vmem:[%s45] sm:$0xf]
        %v2437 = vld [vmem:[%s45 + $0x4] sm:$0xf]
        %v2438 = vld [vmem:[%s45 + $0x8] sm:$0xf]
        %v2439 = vld [vmem:[%s45 + $0xc] sm:$0xf]
        %v2440 = vld [vmem:[%s45 + $0x10] sm:$0xf]
        %v2441 = vld [vmem:[%s45 + $0x14] sm:$0xf]
        %v2442 = vld [vmem:[%s45 + $0x18] sm:$0xf]
        %v2443 = vld [vmem:[%s45 + $0x1c] sm:$0xf]
        %v2444 = vld [vmem:[%s45 + $0x20] sm:$0xf]
        %v2445 = vld [vmem:[%s45 + $0x24] sm:$0xf]
        %v2446 = vld [vmem:[%s45 + $0x28] sm:$0xf]
        %v2447 = vld [vmem:[%s45 + $0x2c] sm:$0xf]
        %v2448 = vld [vmem:[%s45 + $0x30] sm:$0xf]
        %v2449 = vld [vmem:[%s45 + $0x34] sm:$0xf]
        %v2450 = vld [vmem:[%s45 + $0x38] sm:$0xf]
        %v2451 = vld [vmem:[%s45 + $0x3c] sm:$0xf]
        %v2452 = vld [vmem:[%s47] sm:$0x1]
        %v2454 = vperm.slane %v2452, 0
        %v2472 = vunpack.c.l.b16 %v2436
        %v2473 = vunpack.c.l.b16 %v2437
        %v2474 = vunpack.c.l.b16 %v2438
        %v2475 = vunpack.c.l.b16 %v2439
        %v2476 = vunpack.c.l.b16 %v2440
        %v2477 = vunpack.c.l.b16 %v2441
        %v2478 = vunpack.c.l.b16 %v2442
        %v2479 = vunpack.c.l.b16 %v2443
        %v2480 = vunpack.c.l.b16 %v2444
        %v2481 = vunpack.c.l.b16 %v2445
        %v2482 = vunpack.c.l.b16 %v2446
        %v2483 = vunpack.c.l.b16 %v2447
        %v2484 = vunpack.c.l.b16 %v2448
        %v2485 = vunpack.c.l.b16 %v2449
        %v2486 = vunpack.c.l.b16 %v2450
        %v2487 = vunpack.c.l.b16 %v2451
        %v2488 = vpack.c.b16 %v2473, %v2472
        %v2489 = vpack.c.b16 %v2475, %v2474
        %v2490 = vpack.c.b16 %v2477, %v2476
        %v2491 = vpack.c.b16 %v2479, %v2478
        %v2492 = vpack.c.b16 %v2481, %v2480
        %v2493 = vpack.c.b16 %v2483, %v2482
        %v2494 = vpack.c.b16 %v2485, %v2484
        %v2495 = vpack.c.b16 %v2487, %v2486
        %2504 = vmatpush.bf16.msra.mxu0 %v2495
        %2505 = vmatpush.bf16.msra.mxu0 %v2494
        %2506 = vmatpush.bf16.msra.mxu0 %v2493
        %2507 = vmatpush.bf16.msra.mxu0 %v2492
        %2508 = vmatpush.bf16.msra.mxu0 %v2491
        %2509 = vmatpush.bf16.msra.mxu0 %v2490
        %2510 = vmatpush.bf16.msra.mxu0 %v2489
        %2511 = vmatpush.bf16.msra.mxu0 %v2488
        %2512 = vmatmul.bf16.gmra.mxu0 %v2434
        %v2513 = vpop.f32.mrf.mxu0
        %v2514 = vadd.f32 %v2454, %v2513
        %v2515 = vpop.f32.mrf.mxu0
        %v2516 = vadd.f32 %v2454, %v2515
        %2517 = vmatmul.bf16.gmra.mxu0 %v2435
        %v2518 = vpop.f32.mrf.mxu0
        %v2519 = vadd.f32 %v2454, %v2518
        %v2520 = vpop.f32.mrf.mxu0
        %2521 = vdwg.mxu0
        %v2522 = vmax.f32 %v2514, 0.0
        %v2523 = vmax.f32 %v2516, 0.0
        %v2524 = vmax.f32 %v2519, 0.0
        %v2525 = vpack.c.bf16 %v2523, %v2522
        %v2526 = vpack.c.bf16 %v2524, %v2524
        %v2527 = vld [vmem:[%s49] sm:$0xf]
        %v2528 = vld [vmem:[%s49 + $0x4] sm:$0xf]
        %v2529 = vld [vmem:[%s49 + $0x8] sm:$0xf]
        %v2530 = vld [vmem:[%s49 + $0xc] sm:$0xf]
        %v2531 = vld [vmem:[%s49 + $0x10] sm:$0xf]
        %v2532 = vld [vmem:[%s49 + $0x14] sm:$0xf]
        %v2533 = vld [vmem:[%s49 + $0x18] sm:$0xf]
        %v2534 = vld [vmem:[%s49 + $0x1c] sm:$0xf]
        %v2535 = vld [vmem:[%s49 + $0x20] sm:$0xf]
        %v2536 = vld [vmem:[%s49 + $0x24] sm:$0xf]
        %v2537 = vld [vmem:[%s49 + $0x28] sm:$0xf]
        %v2538 = vld [vmem:[%s49 + $0x2c] sm:$0xf]
        %v2539 = vld [vmem:[%s49 + $0x30] sm:$0xf]
        %v2540 = vld [vmem:[%s49 + $0x34] sm:$0xf]
        %v2541 = vld [vmem:[%s49 + $0x38] sm:$0xf]
        %v2542 = vld [vmem:[%s49 + $0x3c] sm:$0xf]
        %v2543 = vld [vmem:[%s51] sm:$0x1]
        %v2545 = vperm.slane %v2543, 0
        %v2563 = vunpack.c.l.b16 %v2527
        %v2564 = vunpack.c.l.b16 %v2528
        %v2565 = vunpack.c.l.b16 %v2529
        %v2566 = vunpack.c.l.b16 %v2530
        %v2567 = vunpack.c.l.b16 %v2531
        %v2568 = vunpack.c.l.b16 %v2532
        %v2569 = vunpack.c.l.b16 %v2533
        %v2570 = vunpack.c.l.b16 %v2534
        %v2571 = vunpack.c.l.b16 %v2535
        %v2572 = vunpack.c.l.b16 %v2536
        %v2573 = vunpack.c.l.b16 %v2537
        %v2574 = vunpack.c.l.b16 %v2538
        %v2575 = vunpack.c.l.b16 %v2539
        %v2576 = vunpack.c.l.b16 %v2540
        %v2577 = vunpack.c.l.b16 %v2541
        %v2578 = vunpack.c.l.b16 %v2542
        %v2579 = vpack.c.b16 %v2564, %v2563
        %v2580 = vpack.c.b16 %v2566, %v2565
        %v2581 = vpack.c.b16 %v2568, %v2567
        %v2582 = vpack.c.b16 %v2570, %v2569
        %v2583 = vpack.c.b16 %v2572, %v2571
        %v2584 = vpack.c.b16 %v2574, %v2573
        %v2585 = vpack.c.b16 %v2576, %v2575
        %v2586 = vpack.c.b16 %v2578, %v2577
        %2595 = vmatpush.bf16.msra.mxu0 %v2586
        %2596 = vmatpush.bf16.msra.mxu0 %v2585
        %2597 = vmatpush.bf16.msra.mxu0 %v2584
        %2598 = vmatpush.bf16.msra.mxu0 %v2583
        %2599 = vmatpush.bf16.msra.mxu0 %v2582
        %2600 = vmatpush.bf16.msra.mxu0 %v2581
        %2601 = vmatpush.bf16.msra.mxu0 %v2580
        %2602 = vmatpush.bf16.msra.mxu0 %v2579
        %2603 = vmatmul.bf16.gmra.mxu0 %v2525
        %v2604 = vpop.f32.mrf.mxu0
        %v2605 = vadd.f32 %v2545, %v2604
        %v2606 = vpop.f32.mrf.mxu0
        %v2607 = vadd.f32 %v2545, %v2606
        %2608 = vmatmul.bf16.gmra.mxu0 %v2526
        %v2609 = vpop.f32.mrf.mxu0
        %v2610 = vadd.f32 %v2545, %v2609
        %v2611 = vpop.f32.mrf.mxu0
        %2612 = vdwg.mxu0
        %v2613 = vadd.f32 %v2431, %v2605
        %v2614 = vadd.f32 %v2432, %v2607
        %v2615 = vadd.f32 %v2433, %v2610
        %v2616 = vld [vmem:[%s53] sm:$0x1]
        %v2617 = vld [vmem:[%s55] sm:$0x1]
        %2618 = vadd.xlane.f32.xlu0 %v2613
        %v2619 = vpop.xlane.xlu0 %2618
        %2620 = vadd.xlane.f32.xlu0 %v2614
        %v2621 = vpop.xlane.xlu0 %2620
        %2622 = vadd.xlane.f32.xlu0 %v2615
        %v2623 = vpop.xlane.xlu0 %2622
        %v2624 = vmul.f32 %v2619, %v1539
        %v2625 = vmul.f32 %v2621, %v1539
        %v2626 = vmul.f32 %v2623, %v1539
        %v2627 = vsub.f32 %v2613, %v2624
        %v2628 = vsub.f32 %v2614, %v2625
        %v2629 = vsub.f32 %v2615, %v2626
        %v2630 = vmul.f32 %v2627, %v2627
        %v2631 = vmul.f32 %v2628, %v2628
        %v2632 = vmul.f32 %v2629, %v2629
        %2633 = vadd.xlane.f32.xlu0 %v2630
        %v2634 = vpop.xlane.xlu0 %2633
        %2635 = vadd.xlane.f32.xlu0 %v2631
        %v2636 = vpop.xlane.xlu0 %2635
        %2637 = vadd.xlane.f32.xlu0 %v2632
        %v2638 = vpop.xlane.xlu0 %2637
        %v2639 = vmul.f32 %v2634, %v1539
        %v2640 = vmul.f32 %v2636, %v1539
        %v2641 = vmul.f32 %v2638, %v1539
        %v2642 = vadd.f32 %v2639, 1e-05
        %v2643 = vadd.f32 %v2640, 1e-05
        %v2644 = vadd.f32 %v2641, 1e-05
        %v2645 = vrsqrt.pop %v2642
        %v2646 = vmul.f32 %v2645, %v2642
        %v2647 = vmul.f32 %v2646, %v2645
        %v2648 = vmul.f32 0.5, %v2647
        %v2649 = vsub.f32 1.5, %v2648
        %v2650 = vmul.f32 %v2645, %v2649
        %vm2651 = vweird.f32 %v2642
        %vm2652 = vweird.f32 %v2645
        %vm2653 = vmor %vm2651, %vm2652
        %v2654 = vsel %vm2653, %v2645, %v2650
        %v2655 = vrsqrt.pop %v2643
        %v2656 = vmul.f32 %v2655, %v2643
        %v2657 = vmul.f32 %v2656, %v2655
        %v2658 = vmul.f32 0.5, %v2657
        %v2659 = vsub.f32 1.5, %v2658
        %v2660 = vmul.f32 %v2655, %v2659
        %vm2661 = vweird.f32 %v2643
        %vm2662 = vweird.f32 %v2655
        %vm2663 = vmor %vm2661, %vm2662
        %v2664 = vsel %vm2663, %v2655, %v2660
        %v2665 = vrsqrt.pop %v2644
        %v2666 = vmul.f32 %v2665, %v2644
        %v2667 = vmul.f32 %v2666, %v2665
        %v2668 = vmul.f32 0.5, %v2667
        %v2669 = vsub.f32 1.5, %v2668
        %v2670 = vmul.f32 %v2665, %v2669
        %vm2671 = vweird.f32 %v2644
        %vm2672 = vweird.f32 %v2665
        %vm2673 = vmor %vm2671, %vm2672
        %v2674 = vsel %vm2673, %v2665, %v2670
        %v2675 = vmul.f32 %v2627, %v2654
        %v2676 = vmul.f32 %v2628, %v2664
        %v2677 = vmul.f32 %v2629, %v2674
        %v2679 = vperm.slane %v2616, 0
        %v2681 = vmul.f32 %v2675, %v2679
        %v2682 = vmul.f32 %v2676, %v2679
        %v2683 = vmul.f32 %v2677, %v2679
        %v2685 = vperm.slane %v2617, 0
        %v2687 = vadd.f32 %v2681, %v2685
        %v2688 = vadd.f32 %v2682, %v2685
        %v2689 = vadd.f32 %v2683, %v2685
        %vm2693 = vcmask 1046528
        %v2694 = vrot.slane %v2687, 1
        %v2695 = vrot.slane %v2688, 1
        %v2696 = vsel %vm2693, %v2694, %v2695
        %v2697 = vrot.slane %v2689, 1
        %v2698 = vsel %vm2693, %v2695, %v2697
        %v2701 = vadd.f32 %v2696, %v2698
        %v2702 = vrot.slane %v2701, 4
        %v2703 = vadd.f32 %v2701, %v2702
        %v2704 = vrot.slane %v2703, 2
        %v2705 = vadd.f32 %v2703, %v2704
        %v2706 = vrot.slane %v2705, 1
        %v2707 = vadd.f32 %v2705, %v2706
        %v2708 = vrcp.pop 16.0
        %v2709 = vmul.f32 16.0, %v2708
        %v2710 = vsub.f32 1.0, %v2709
        %v2711 = vmul.f32 %v2708, %v2710
        %v2712 = vadd.f32 %v2708, %v2711
        %vm2713 = vweird.f32 %v2708
        %v2714 = vsel %vm2713, %v2708, %v2712
        %v2715 = vmul.f32 %v2707, %v2714
        %v2716 = vpack.c.bf16 %v2687, %v2687
        %v2717 = vpack.c.bf16 %v2715, %v2715
        %v2718 = vld [vmem:[%s57] sm:$0xf]
        %v2719 = vld [vmem:[%s57 + $0x4] sm:$0xf]
        %v2720 = vld [vmem:[%s57 + $0x8] sm:$0xf]
        %v2721 = vld [vmem:[%s57 + $0xc] sm:$0xf]
        %v2722 = vld [vmem:[%s57 + $0x10] sm:$0xf]
        %v2723 = vld [vmem:[%s57 + $0x14] sm:$0xf]
        %v2724 = vld [vmem:[%s57 + $0x18] sm:$0xf]
        %v2725 = vld [vmem:[%s57 + $0x1c] sm:$0xf]
        %v2726 = vld [vmem:[%s57 + $0x20] sm:$0xf]
        %v2727 = vld [vmem:[%s57 + $0x24] sm:$0xf]
        %v2728 = vld [vmem:[%s57 + $0x28] sm:$0xf]
        %v2729 = vld [vmem:[%s57 + $0x2c] sm:$0xf]
        %v2730 = vld [vmem:[%s57 + $0x30] sm:$0xf]
        %v2731 = vld [vmem:[%s57 + $0x34] sm:$0xf]
        %v2732 = vld [vmem:[%s57 + $0x38] sm:$0xf]
        %v2733 = vld [vmem:[%s57 + $0x3c] sm:$0xf]
        %v2734 = vld [vmem:[%s57 + $0x40] sm:$0xf]
        %v2735 = vld [vmem:[%s57 + $0x44] sm:$0xf]
        %v2736 = vld [vmem:[%s57 + $0x48] sm:$0xf]
        %v2737 = vld [vmem:[%s57 + $0x4c] sm:$0xf]
        %v2738 = vld [vmem:[%s57 + $0x50] sm:$0xf]
        %v2739 = vld [vmem:[%s57 + $0x54] sm:$0xf]
        %v2740 = vld [vmem:[%s57 + $0x58] sm:$0xf]
        %v2741 = vld [vmem:[%s57 + $0x5c] sm:$0xf]
        %v2742 = vld [vmem:[%s57 + $0x60] sm:$0xf]
        %v2743 = vld [vmem:[%s57 + $0x64] sm:$0xf]
        %v2744 = vld [vmem:[%s57 + $0x68] sm:$0xf]
        %v2745 = vld [vmem:[%s57 + $0x6c] sm:$0xf]
        %v2746 = vld [vmem:[%s57 + $0x70] sm:$0xf]
        %v2747 = vld [vmem:[%s57 + $0x74] sm:$0xf]
        %v2748 = vld [vmem:[%s57 + $0x78] sm:$0xf]
        %v2749 = vld [vmem:[%s57 + $0x7c] sm:$0xf]
        %v2750 = vld [vmem:[%s59] sm:$0x1]
        %v2783 = vunpack.c.l.b16 %v2718
        %v2784 = vunpack.c.l.b16 %v2719
        %v2785 = vunpack.c.l.b16 %v2720
        %v2786 = vunpack.c.l.b16 %v2721
        %v2787 = vunpack.c.l.b16 %v2722
        %v2788 = vunpack.c.l.b16 %v2723
        %v2789 = vunpack.c.l.b16 %v2724
        %v2790 = vunpack.c.l.b16 %v2725
        %v2791 = vunpack.c.l.b16 %v2726
        %v2792 = vunpack.c.l.b16 %v2727
        %v2793 = vunpack.c.l.b16 %v2728
        %v2794 = vunpack.c.l.b16 %v2729
        %v2795 = vunpack.c.l.b16 %v2730
        %v2796 = vunpack.c.l.b16 %v2731
        %v2797 = vunpack.c.l.b16 %v2732
        %v2798 = vunpack.c.l.b16 %v2733
        %v2799 = vunpack.c.l.b16 %v2734
        %v2800 = vunpack.c.l.b16 %v2735
        %v2801 = vunpack.c.l.b16 %v2736
        %v2802 = vunpack.c.l.b16 %v2737
        %v2803 = vunpack.c.l.b16 %v2738
        %v2804 = vunpack.c.l.b16 %v2739
        %v2805 = vunpack.c.l.b16 %v2740
        %v2806 = vunpack.c.l.b16 %v2741
        %v2807 = vunpack.c.l.b16 %v2742
        %v2808 = vunpack.c.l.b16 %v2743
        %v2809 = vunpack.c.l.b16 %v2744
        %v2810 = vunpack.c.l.b16 %v2745
        %v2811 = vunpack.c.l.b16 %v2746
        %v2812 = vunpack.c.l.b16 %v2747
        %v2813 = vunpack.c.l.b16 %v2748
        %v2814 = vunpack.c.l.b16 %v2749
        %v2815 = vpack.c.b16 %v2784, %v2783
        %v2816 = vpack.c.b16 %v2786, %v2785
        %v2817 = vpack.c.b16 %v2788, %v2787
        %v2818 = vpack.c.b16 %v2790, %v2789
        %v2819 = vpack.c.b16 %v2792, %v2791
        %v2820 = vpack.c.b16 %v2794, %v2793
        %v2821 = vpack.c.b16 %v2796, %v2795
        %v2822 = vpack.c.b16 %v2798, %v2797
        %v2823 = vpack.c.b16 %v2800, %v2799
        %v2824 = vpack.c.b16 %v2802, %v2801
        %v2825 = vpack.c.b16 %v2804, %v2803
        %v2826 = vpack.c.b16 %v2806, %v2805
        %v2827 = vpack.c.b16 %v2808, %v2807
        %v2828 = vpack.c.b16 %v2810, %v2809
        %v2829 = vpack.c.b16 %v2812, %v2811
        %v2830 = vpack.c.b16 %v2814, %v2813
        %2847 = vmatpush.bf16.msra.mxu0 %v2822
        %2848 = vmatpush.bf16.msra.mxu0 %v2821
        %2849 = vmatpush.bf16.msra.mxu0 %v2820
        %2850 = vmatpush.bf16.msra.mxu0 %v2819
        %2851 = vmatpush.bf16.msra.mxu0 %v2818
        %2852 = vmatpush.bf16.msra.mxu0 %v2817
        %2853 = vmatpush.bf16.msra.mxu0 %v2816
        %2854 = vmatpush.bf16.msra.mxu0 %v2815
        %2855 = vmatmul.bf16.gmra.mxu0 %v2716
        %v2856 = vpop.f32.mrf.mxu0
        %v2857 = vadd.f32 %v2750, %v2856
        %v2858 = vpop.f32.mrf.mxu0
        %2859 = vdwg.mxu0
        %2860 = vmatpush.bf16.msra.mxu0 %v2830
        %2861 = vmatpush.bf16.msra.mxu0 %v2829
        %2862 = vmatpush.bf16.msra.mxu0 %v2828
        %2863 = vmatpush.bf16.msra.mxu0 %v2827
        %2864 = vmatpush.bf16.msra.mxu0 %v2826
        %2865 = vmatpush.bf16.msra.mxu0 %v2825
        %2866 = vmatpush.bf16.msra.mxu0 %v2824
        %2867 = vmatpush.bf16.msra.mxu0 %v2823
        %2868 = vmatmul.bf16.gmra.mxu0 %v2717
        %v2869 = vpop.f32.mrf.mxu0
        %v2870 = vadd.f32 %v2857, %v2869
        %v2871 = vpop.f32.mrf.mxu0
        %2872 = vdwg.mxu0
        %v2873 = vmax.f32 %v2870, 0.0
        %vm2874 = vcmask 516096
        %2875 = vst.msk [vmem:[%s933] sm:$0x1] %vm2874, %v2873
        %s2876 = sand.u32 %s723, 1
        %s2877 = scalar_lea.sflag [#allocation3], %s2876
        %s2878 = sand.u32 %s723, 1
        %s2879 = scalar_lea.vmem [#allocation2], %s2878
        // Predicated region
        $region141: #{loco_transformer_v3_forward.5} parent=139 // pred_check
          %p2880 = pneg %p733
        $region142: #{loco_transformer_v3_forward.5} parent=139 // pred_check_branch
          %2882 = sbr.rel (%p2880) target = $region144
        $region143: #{loco_transformer_v3_forward.5} parent=139 // pred_region
          %2884 = vsyncadd %s2877, 0
          %s2885 = scalar_lea.hbm %s61, %s75
          %s2887 = sshll.u32 %s2879, 4
          %s2888 = int_to_ptr.vmem [resolvable:$true] %s2887
          %s2889 = sshll.u32 %s2885, 4
          %s2890 = int_to_ptr.hbm [resolvable:$true] %s2889
          %2892 = dma.vmem_to_hbm [thread:$0]  %s2888, 16, %s2890, %s2877
        $region144: #{loco_transformer_v3_forward.5} parent=139 // pred_fallthru
          _
      $region140: #{loco_transformer_v3_forward.5} parent=5 // pred_fallthru
        _
      %p2893 = scmp.le.s32.totalorder 2, %s70
      // Predicated region
      $region145: #{loco_transformer_v3_forward.5} parent=5 // pred_check
        %p2894 = pneg %p2893
      $region146: #{loco_transformer_v3_forward.5} parent=5 // pred_check_branch
        %2896 = sbr.rel (%p2894) target = $region148
      $region147: #{loco_transformer_v3_forward.5} parent=5 // pred_region
        %s2897 = ssub.s32 %s70, 2
        // Predicated region
        $region149: #{loco_transformer_v3_forward.5} parent=147 // pred_check
          %p2898 = pneg %p739
        $region150: #{loco_transformer_v3_forward.5} parent=147 // pred_check_branch
          %2900 = sbr.rel (%p2898) target = $region152
        $region151: #{loco_transformer_v3_forward.5} parent=147 // pred_region
          %s2901 = sand.u32 %s724, 1
          %s2902 = scalar_lea.sflag [#allocation3], %s2901
          %s2903 = sand.u32 %s724, 1
          %s2904 = scalar_lea.vmem [#allocation2], %s2903
          %2906 = dma.done %s2902, 16
        $region152: #{loco_transformer_v3_forward.5} parent=147 // pred_fallthru
          _
      $region148: #{loco_transformer_v3_forward.5} parent=5 // pred_fallthru
        _
    $region6: #{loco_transformer_v3_forward.5} parent=1 // loop_footer
      %s74 = sadd.s32 1, %s70
    $region7: #{loco_transformer_v3_forward.5} parent=1 // loop_footer_branch
      %69 = sbr.rel target = $region3
    $region8: #{loco_transformer_v3_forward.5} parent=1 // loop_exit
      _
    %2907 = vsyncpa [#allocation3], 1
    %s2908 = scalar_lea.sflag [#allocation3], 1
    %2909 = vsyncpa %s2908, 1

</llo_original>
